<compile_context>
chip_gen: v7x
topology: tpu7x:2x2x1
jax: 0.10.0
libtpu: 0.0.40
codegen_flags: <defaults>
</compile_context>

<pallas_src>
import numpy as np
import jax
import jax.numpy as jnp
from jax import lax
from jax.experimental import pallas as pl
from jax.experimental.pallas import tpu as pltpu


def _resnet_blocks_kernel(
    emb_ref, h0_ref,
    ln_w_ref, ln_b_ref,
    w_h_ref, w_emb_ref, b_he_ref,
    wint_ref, bint_ref,
    wout_ref,
    o_ref,
):
    n_layers = ln_w_ref.shape[0]
    emb = emb_ref[...]          # bf16 (bt, emb_dim), loaded once per batch tile
    x0 = h0_ref[...]            # f32  (bt, h_dim)

    def layer(l, x):
        # LayerNorm over features (PyTorch default eps = 1e-5), f32.
        mu = jnp.mean(x, axis=-1, keepdims=True)
        var = jnp.mean((x - mu) ** 2, axis=-1, keepdims=True)
        h = (x - mu) * lax.rsqrt(var + 1e-5) * ln_w_ref[l] + ln_b_ref[l]
        h = h * jax.nn.sigmoid(h)                       # SiLU, f32

        # layer_h(h) + layer_emb(emb): two MXU matmuls, no concat materialized.
        z = (
            jnp.dot(h.astype(jnp.bfloat16), w_h_ref[l],
                    preferred_element_type=jnp.float32)
            + jnp.dot(emb, w_emb_ref[l], preferred_element_type=jnp.float32)
            + b_he_ref[l]
        )
        z = z * jax.nn.sigmoid(z)

        # layer_int: Linear(hw -> hw)
        z = jnp.dot(z.astype(jnp.bfloat16), wint_ref[l],
                    preferred_element_type=jnp.float32) + bint_ref[l]
        z = z * jax.nn.sigmoid(z)

        # layer_out: Linear(hw -> h_dim, bias=False), residual add in f32.
        z = jnp.dot(z.astype(jnp.bfloat16), wout_ref[l],
                    preferred_element_type=jnp.float32)
        return x + z

    o_ref[...] = lax.fori_loop(0, n_layers, layer, x0, unroll=True)


def resnet_diffusion_forward(x, t, params, *, n_steps):
    bf16, f32 = jnp.bfloat16, jnp.float32

    # learned time embedding: t = (t * n_steps).long(); emb = time_embed(t).
    # Clamped so t == 1.0 cannot index past the table (PyTorch would fault).
    t_idx = jnp.clip((t * n_steps).astype(jnp.int32), 0, n_steps - 1)
    emb = jnp.take(params["emb_table"], t_idx, axis=0).astype(bf16)

    batch, x_dim = x.shape
    n_layers, _, h_dim = params["ln_w"].shape
    emb_dim = params["w_emb"].shape[1]
    hw = params["wint"].shape[1]

    # Lane-sparse (x_dim tiny) input projection: plain XLA matmul outside the
    # kernel, so the kernel only ever touches 128-lane-dense activations.
    h0 = (
        jnp.dot(x.astype(bf16), params["w_in"], preferred_element_type=f32)
        + params["b_in"]
    )

    # Batch tile: prefer >= 2 tiles so the "parallel" axis can shard across
    # v7x's two TensorCores; fall back to one full-batch tile.
    bt = batch
    for cand in (512, 256, 128):
        if batch % cand == 0 and batch // cand >= 2:
            bt = cand
            break
    else:
        for cand in (512, 256, 128):
            if batch % cand == 0:
                bt = cand
                break
    nb = batch // bt

    weight_args = (
        params["ln_w"], params["ln_b"],
        params["w_h"], params["w_emb"], params["b_he"],
        params["wint"], params["bint"],
        params["wout"],
    )

    def resident_spec(arr):
        # Full-array block, constant block index: DMA'd once, stays in VMEM
        # across all batch-tile grid steps.
        return pl.BlockSpec(arr.shape, lambda b, _nd=arr.ndim: (0,) * _nd)

    in_specs = [
        pl.BlockSpec((bt, emb_dim), lambda b: (b, 0)),   # emb (bf16)
        pl.BlockSpec((bt, h_dim), lambda b: (b, 0)),     # h0  (f32)
    ] + [resident_spec(a) for a in weight_args]
    out_spec = pl.BlockSpec((bt, h_dim), lambda b: (b, 0))

    # VMEM budget: resident weights + double-buffered activations + slack,
    # capped at ~75% of this chip's physical VMEM (96 MiB on 128 MiB parts,
    # 48 MiB on v7x) so the compiler keeps internal-scratch headroom.
    w_bytes = sum(int(np.prod(a.shape)) * a.dtype.itemsize for a in weight_args)
    act_bytes = bt * (2 * emb_dim + 2 * 4 * h_dim + 3 * 4 * hw)
    needed = 2 * w_bytes + 4 * act_bytes + (8 << 20)
    try:
        vmem_cap = pltpu.get_tpu_info().vmem_capacity_bytes
    except Exception:
        vmem_cap = 64 << 20
    vmem_limit = int(min(max(needed, 32 << 20), vmem_cap * 3 // 4))
    # TODO(synk): fall back to a layer-streaming (nb, n_layers) grid when the
    # all-layer-resident weights would not fit under vmem_limit.

    flops = 2 * batch * n_layers * (h_dim * hw + emb_dim * hw + hw * hw + hw * h_dim)
    transcendentals = batch * n_layers * (h_dim + 2 * hw)
    bytes_accessed = (
        w_bytes                        # every weight read exactly once
        + batch * emb_dim * 2          # emb in (bf16)
        + batch * h_dim * 4 * 2        # h0 in + h out (f32)
    )

    h_out = pl.pallas_call(
        _resnet_blocks_kernel,
        out_shape=jax.ShapeDtypeStruct((batch, h_dim), f32),
        grid=(nb,),
        in_specs=in_specs,
        out_specs=out_spec,
        compiler_params=pltpu.CompilerParams(
            dimension_semantics=("parallel",),
            vmem_limit_bytes=vmem_limit,
        ),
        cost_estimate=pl.CostEstimate(
            flops=int(flops),
            transcendentals=int(transcendentals),
            bytes_accessed=int(bytes_accessed),
        ),
    )(emb, h0, *weight_args)

    # output_layer (bias=False), lane-sparse x_dim -> plain XLA matmul outside.
    return jnp.dot(h_out.astype(bf16), params["w_final"], preferred_element_type=f32)


def init_params(key, *, n_steps, n_layers, x_dim, h_dim, emb_dim, widen):
    hw = h_dim * widen
    ks = jax.random.split(key, 12)

    def lin(k, fan_in, shape, dtype=jnp.float32):
        # PyTorch nn.Linear default: U(-1/sqrt(fan_in), 1/sqrt(fan_in))
        bound = 1.0 / np.sqrt(fan_in)
        return jax.random.uniform(k, shape, jnp.float32, -bound, bound).astype(dtype)

    bf16 = jnp.bfloat16
    # NOTE: the PyTorch module zero-initializes layer_out / output_layer
    # weights (making the forward output identically zero); here they are
    # deterministic random so the numerical check is meaningful.
    return dict(
        emb_table=jax.random.normal(ks[0], (n_steps, emb_dim), jnp.float32),
        w_in=lin(ks[1], x_dim, (x_dim, h_dim), bf16),
        b_in=lin(ks[2], x_dim, (1, h_dim)),
        ln_w=jnp.ones((n_layers, 1, h_dim), jnp.float32),   # LayerNorm default
        ln_b=jnp.zeros((n_layers, 1, h_dim), jnp.float32),
        w_h=lin(ks[3], h_dim, (n_layers, h_dim, hw), bf16),
        w_emb=lin(ks[5], emb_dim, (n_layers, emb_dim, hw), bf16),
        # combined bias b_h + b_emb (the two bias adds commute with the sum).
        b_he=lin(ks[4], h_dim, (n_layers, 1, hw)) + lin(ks[6], emb_dim, (n_layers, 1, hw)),
        wint=lin(ks[7], hw, (n_layers, hw, hw), bf16),
        bint=lin(ks[8], hw, (n_layers, 1, hw)),
        wout=lin(ks[9], hw, (n_layers, hw, h_dim), bf16),
        w_final=lin(ks[10], h_dim, (h_dim, x_dim), bf16),
    )


def reference_forward(x, t, params, *, n_steps, n_layers):
    # pure-JAX reference mirroring the PyTorch forward (and the kernel's
    # bf16-matmul / f32-accumulate precision model).
    bf, f32 = jnp.bfloat16, jnp.float32
    t_idx = jnp.clip((t * n_steps).astype(jnp.int32), 0, n_steps - 1)
    emb = params["emb_table"][t_idx].astype(bf)
    h = (
        jnp.dot(x.astype(bf), params["w_in"], preferred_element_type=f32)
        + params["b_in"]
    )
    for l in range(n_layers):
        mu = jnp.mean(h, axis=-1, keepdims=True)
        var = jnp.mean((h - mu) ** 2, axis=-1, keepdims=True)
        z = (h - mu) / jnp.sqrt(var + 1e-5) * params["ln_w"][l] + params["ln_b"][l]
        z = jax.nn.silu(z)
        z = (
            jnp.dot(z.astype(bf), params["w_h"][l], preferred_element_type=f32)
            + jnp.dot(emb, params["w_emb"][l], preferred_element_type=f32)
            + params["b_he"][l]
        )
        z = jax.nn.silu(z)
        z = (
            jnp.dot(z.astype(bf), params["wint"][l], preferred_element_type=f32)
            + params["bint"][l]
        )
        z = jax.nn.silu(z)
        z = jnp.dot(z.astype(bf), params["wout"][l], preferred_element_type=f32)
        h = h + z
    return jnp.dot(h.astype(bf), params["w_final"], preferred_element_type=f32)


if __name__ == "__main__":
    # small but lane-dense demo shapes (feature dims are multiples of 128).
    n_steps, n_layers, x_dim, h_dim, emb_dim, widen = 10, 4, 4, 128, 128, 2
    batch = 8

    key = jax.random.PRNGKey(0)
    kp, kx, kt = jax.random.split(key, 3)
    params = init_params(
        kp, n_steps=n_steps, n_layers=n_layers,
        x_dim=x_dim, h_dim=h_dim, emb_dim=emb_dim, widen=widen,
    )
    x = jax.random.normal(kx, (batch, x_dim), jnp.float32)
    t = jax.random.uniform(kt, (batch,), jnp.float32)  # diffusion time in [0, 1)

    out = jax.block_until_ready(
        resnet_diffusion_forward(x, t, params, n_steps=n_steps)
    )
    ref = reference_forward(x, t, params, n_steps=n_steps, n_layers=n_layers)
    np.testing.assert_allclose(
        np.asarray(out), np.asarray(ref), rtol=2e-2, atol=2e-2
    )
    print("KERNEL_OK")
</pallas_src>

<mosaic_0001>
module attributes {stable_mosaic.version = 11 : i64} {
  func.func @_resnet_blocks_kernel(%arg0: i32, %arg1: memref<8x128xbf16, #tpu.memory_space<vmem>>, %arg2: memref<8x128xf32, #tpu.memory_space<vmem>>, %arg3: memref<4x1x128xf32, #tpu.memory_space<vmem>>, %arg4: memref<4x1x128xf32, #tpu.memory_space<vmem>>, %arg5: memref<4x128x256xbf16, #tpu.memory_space<vmem>>, %arg6: memref<4x128x256xbf16, #tpu.memory_space<vmem>>, %arg7: memref<4x1x256xf32, #tpu.memory_space<vmem>>, %arg8: memref<4x256x256xbf16, #tpu.memory_space<vmem>>, %arg9: memref<4x1x256xf32, #tpu.memory_space<vmem>>, %arg10: memref<4x256x128xbf16, #tpu.memory_space<vmem>>, %arg11: memref<8x128xf32, #tpu.memory_space<vmem>>) attributes {dimension_semantics = [#tpu.dimension_semantics<parallel>], iteration_bounds = array<i64: 1>, scalar_prefetch = 0 : i64, scratch_operands = 0 : i64, tpu.core_type = #tpu.core_type<tc>, window_params = [{transform_indices = @transform_0, window_bounds = array<i64: 8, 128>}, {transform_indices = @transform_1, window_bounds = array<i64: 8, 128>}, {pipeline_mode = #tpu.pipeline_mode<synchronous>, transform_indices = @transform_2, window_bounds = array<i64: 4, 1, 128>}, {pipeline_mode = #tpu.pipeline_mode<synchronous>, transform_indices = @transform_3, window_bounds = array<i64: 4, 1, 128>}, {pipeline_mode = #tpu.pipeline_mode<synchronous>, transform_indices = @transform_4, window_bounds = array<i64: 4, 128, 256>}, {pipeline_mode = #tpu.pipeline_mode<synchronous>, transform_indices = @transform_5, window_bounds = array<i64: 4, 128, 256>}, {pipeline_mode = #tpu.pipeline_mode<synchronous>, transform_indices = @transform_6, window_bounds = array<i64: 4, 1, 256>}, {pipeline_mode = #tpu.pipeline_mode<synchronous>, transform_indices = @transform_7, window_bounds = array<i64: 4, 256, 256>}, {pipeline_mode = #tpu.pipeline_mode<synchronous>, transform_indices = @transform_8, window_bounds = array<i64: 4, 1, 256>}, {pipeline_mode = #tpu.pipeline_mode<synchronous>, transform_indices = @transform_9, window_bounds = array<i64: 4, 256, 128>}, {transform_indices = @transform_10, window_bounds = array<i64: 8, 128>}]} {
    %c0 = arith.constant 0 : index
    %c0_0 = arith.constant 0 : index
    %0 = vector.load %arg1[%c0, %c0_0] : memref<8x128xbf16, #tpu.memory_space<vmem>>, vector<8x128xbf16>
    %c0_1 = arith.constant 0 : index
    %c0_2 = arith.constant 0 : index
    %1 = vector.load %arg2[%c0_1, %c0_2] : memref<8x128xf32, #tpu.memory_space<vmem>>, vector<8x128xf32>
    %c0_i32 = arith.constant 0 : i32
    %cst = arith.constant dense<0.000000e+00> : vector<8xf32>
    %2 = vector.multi_reduction <add>, %1, %cst [1] : vector<8x128xf32> to vector<8xf32>
    %3 = vector.shape_cast %2 : vector<8xf32> to vector<8x1xf32>
    %cst_3 = arith.constant 1.280000e+02 : f32
    %4 = vector.broadcast %cst_3 : f32 to vector<8x1xf32>
    %5 = arith.divf %3, %4 : vector<8x1xf32>
    %6 = vector.broadcast %5 : vector<8x1xf32> to vector<8x128xf32>
    %7 = arith.subf %1, %6 : vector<8x128xf32>
    %8 = arith.mulf %7, %7 : vector<8x128xf32>
    %cst_4 = arith.constant dense<0.000000e+00> : vector<8xf32>
    %9 = vector.multi_reduction <add>, %8, %cst_4 [1] : vector<8x128xf32> to vector<8xf32>
    %10 = vector.shape_cast %9 : vector<8xf32> to vector<8x1xf32>
    %cst_5 = arith.constant 1.280000e+02 : f32
    %11 = vector.broadcast %cst_5 : f32 to vector<8x1xf32>
    %12 = arith.divf %10, %11 : vector<8x1xf32>
    %13 = vector.broadcast %5 : vector<8x1xf32> to vector<8x128xf32>
    %14 = arith.subf %1, %13 : vector<8x128xf32>
    %cst_6 = arith.constant 9.99999974E-6 : f32
    %15 = vector.broadcast %cst_6 : f32 to vector<8x1xf32>
    %16 = arith.addf %12, %15 : vector<8x1xf32>
    %17 = math.rsqrt %16 : vector<8x1xf32>
    %18 = vector.broadcast %17 : vector<8x1xf32> to vector<8x128xf32>
    %19 = arith.mulf %14, %18 : vector<8x128xf32>
    %20 = arith.index_cast %c0_i32 : i32 to index
    %c0_7 = arith.constant 0 : index
    %c0_8 = arith.constant 0 : index
    %21 = vector.load %arg3[%20, %c0_7, %c0_8] : memref<4x1x128xf32, #tpu.memory_space<vmem>>, vector<1x1x128xf32>
    %22 = vector.shape_cast %21 : vector<1x1x128xf32> to vector<1x128xf32>
    %23 = vector.broadcast %22 : vector<1x128xf32> to vector<8x128xf32>
    %24 = arith.mulf %19, %23 : vector<8x128xf32>
    %25 = arith.index_cast %c0_i32 : i32 to index
    %c0_9 = arith.constant 0 : index
    %c0_10 = arith.constant 0 : index
    %26 = vector.load %arg4[%25, %c0_9, %c0_10] : memref<4x1x128xf32, #tpu.memory_space<vmem>>, vector<1x1x128xf32>
    %27 = vector.shape_cast %26 : vector<1x1x128xf32> to vector<1x128xf32>
    %28 = vector.broadcast %27 : vector<1x128xf32> to vector<8x128xf32>
    %29 = arith.addf %24, %28 : vector<8x128xf32>
    %30 = arith.negf %29 : vector<8x128xf32>
    %31 = math.exp %30 : vector<8x128xf32>
    %cst_11 = arith.constant 1.000000e+00 : f32
    %32 = vector.broadcast %cst_11 : f32 to vector<8x128xf32>
    %33 = arith.addf %32, %31 : vector<8x128xf32>
    %34 = arith.divf %32, %33 : vector<8x128xf32>
    %35 = arith.mulf %29, %34 : vector<8x128xf32>
    %36 = arith.truncf %35 : vector<8x128xf32> to vector<8x128xbf16>
    %37 = arith.index_cast %c0_i32 : i32 to index
    %c0_12 = arith.constant 0 : index
    %c0_13 = arith.constant 0 : index
    %38 = vector.load %arg5[%37, %c0_12, %c0_13] : memref<4x128x256xbf16, #tpu.memory_space<vmem>>, vector<1x128x256xbf16>
    %39 = vector.shape_cast %38 : vector<1x128x256xbf16> to vector<128x256xbf16>
    %cst_14 = arith.constant dense<0.000000e+00> : vector<8x256xf32>
    %40 = tpu.matmul %36, %39, %cst_14 {dimension_numbers = #tpu.dot_dimension_numbers<[1], [0], [0], [1], [0, 0, 1, 1], [], []>} : vector<8x128xbf16>, vector<128x256xbf16>, vector<8x256xf32> -> vector<8x256xf32>
    %41 = arith.index_cast %c0_i32 : i32 to index
    %c0_15 = arith.constant 0 : index
    %c0_16 = arith.constant 0 : index
    %42 = vector.load %arg6[%41, %c0_15, %c0_16] : memref<4x128x256xbf16, #tpu.memory_space<vmem>>, vector<1x128x256xbf16>
    %43 = vector.shape_cast %42 : vector<1x128x256xbf16> to vector<128x256xbf16>
    %cst_17 = arith.constant dense<0.000000e+00> : vector<8x256xf32>
    %44 = tpu.matmul %0, %43, %cst_17 {dimension_numbers = #tpu.dot_dimension_numbers<[1], [0], [0], [1], [0, 0, 1, 1], [], []>} : vector<8x128xbf16>, vector<128x256xbf16>, vector<8x256xf32> -> vector<8x256xf32>
    %45 = arith.addf %40, %44 : vector<8x256xf32>
    %46 = arith.index_cast %c0_i32 : i32 to index
    %c0_18 = arith.constant 0 : index
    %c0_19 = arith.constant 0 : index
    %47 = vector.load %arg7[%46, %c0_18, %c0_19] : memref<4x1x256xf32, #tpu.memory_space<vmem>>, vector<1x1x256xf32>
    %48 = vector.shape_cast %47 : vector<1x1x256xf32> to vector<1x256xf32>
    %49 = vector.broadcast %48 : vector<1x256xf32> to vector<8x256xf32>
    %50 = arith.addf %45, %49 : vector<8x256xf32>
    %51 = arith.negf %50 : vector<8x256xf32>
    %52 = math.exp %51 : vector<8x256xf32>
    %cst_20 = arith.constant 1.000000e+00 : f32
    %53 = vector.broadcast %cst_20 : f32 to vector<8x256xf32>
    %54 = arith.addf %53, %52 : vector<8x256xf32>
    %55 = arith.divf %53, %54 : vector<8x256xf32>
    %56 = arith.mulf %50, %55 : vector<8x256xf32>
    %57 = arith.truncf %56 : vector<8x256xf32> to vector<8x256xbf16>
    %58 = arith.index_cast %c0_i32 : i32 to index
    %c0_21 = arith.constant 0 : index
    %c0_22 = arith.constant 0 : index
    %59 = vector.load %arg8[%58, %c0_21, %c0_22] : memref<4x256x256xbf16, #tpu.memory_space<vmem>>, vector<1x256x256xbf16>
    %60 = vector.shape_cast %59 : vector<1x256x256xbf16> to vector<256x256xbf16>
    %cst_23 = arith.constant dense<0.000000e+00> : vector<8x256xf32>
    %61 = tpu.matmul %57, %60, %cst_23 {dimension_numbers = #tpu.dot_dimension_numbers<[1], [0], [0], [1], [0, 0, 1, 1], [], []>} : vector<8x256xbf16>, vector<256x256xbf16>, vector<8x256xf32> -> vector<8x256xf32>
    %62 = arith.index_cast %c0_i32 : i32 to index
    %c0_24 = arith.constant 0 : index
    %c0_25 = arith.constant 0 : index
    %63 = vector.load %arg9[%62, %c0_24, %c0_25] : memref<4x1x256xf32, #tpu.memory_space<vmem>>, vector<1x1x256xf32>
    %64 = vector.shape_cast %63 : vector<1x1x256xf32> to vector<1x256xf32>
    %65 = vector.broadcast %64 : vector<1x256xf32> to vector<8x256xf32>
    %66 = arith.addf %61, %65 : vector<8x256xf32>
    %67 = arith.negf %66 : vector<8x256xf32>
    %68 = math.exp %67 : vector<8x256xf32>
    %cst_26 = arith.constant 1.000000e+00 : f32
    %69 = vector.broadcast %cst_26 : f32 to vector<8x256xf32>
    %70 = arith.addf %69, %68 : vector<8x256xf32>
    %71 = arith.divf %69, %70 : vector<8x256xf32>
    %72 = arith.mulf %66, %71 : vector<8x256xf32>
    %73 = arith.truncf %72 : vector<8x256xf32> to vector<8x256xbf16>
    %74 = arith.index_cast %c0_i32 : i32 to index
    %c0_27 = arith.constant 0 : index
    %c0_28 = arith.constant 0 : index
    %75 = vector.load %arg10[%74, %c0_27, %c0_28] : memref<4x256x128xbf16, #tpu.memory_space<vmem>>, vector<1x256x128xbf16>
    %76 = vector.shape_cast %75 : vector<1x256x128xbf16> to vector<256x128xbf16>
    %cst_29 = arith.constant dense<0.000000e+00> : vector<8x128xf32>
    %77 = tpu.matmul %73, %76, %cst_29 {dimension_numbers = #tpu.dot_dimension_numbers<[1], [0], [0], [1], [0, 0, 1, 1], [], []>} : vector<8x256xbf16>, vector<256x128xbf16>, vector<8x128xf32> -> vector<8x128xf32>
    %78 = arith.addf %1, %77 : vector<8x128xf32>
    %c1_i32 = arith.constant 1 : i32
    %cst_30 = arith.constant dense<0.000000e+00> : vector<8xf32>
    %79 = vector.multi_reduction <add>, %78, %cst_30 [1] : vector<8x128xf32> to vector<8xf32>
    %80 = vector.shape_cast %79 : vector<8xf32> to vector<8x1xf32>
    %cst_31 = arith.constant 1.280000e+02 : f32
    %81 = vector.broadcast %cst_31 : f32 to vector<8x1xf32>
    %82 = arith.divf %80, %81 : vector<8x1xf32>
    %83 = vector.broadcast %82 : vector<8x1xf32> to vector<8x128xf32>
    %84 = arith.subf %78, %83 : vector<8x128xf32>
    %85 = arith.mulf %84, %84 : vector<8x128xf32>
    %cst_32 = arith.constant dense<0.000000e+00> : vector<8xf32>
    %86 = vector.multi_reduction <add>, %85, %cst_32 [1] : vector<8x128xf32> to vector<8xf32>
    %87 = vector.shape_cast %86 : vector<8xf32> to vector<8x1xf32>
    %cst_33 = arith.constant 1.280000e+02 : f32
    %88 = vector.broadcast %cst_33 : f32 to vector<8x1xf32>
    %89 = arith.divf %87, %88 : vector<8x1xf32>
    %90 = vector.broadcast %82 : vector<8x1xf32> to vector<8x128xf32>
    %91 = arith.subf %78, %90 : vector<8x128xf32>
    %cst_34 = arith.constant 9.99999974E-6 : f32
    %92 = vector.broadcast %cst_34 : f32 to vector<8x1xf32>
    %93 = arith.addf %89, %92 : vector<8x1xf32>
    %94 = math.rsqrt %93 : vector<8x1xf32>
    %95 = vector.broadcast %94 : vector<8x1xf32> to vector<8x128xf32>
    %96 = arith.mulf %91, %95 : vector<8x128xf32>
    %97 = arith.index_cast %c1_i32 : i32 to index
    %c0_35 = arith.constant 0 : index
    %c0_36 = arith.constant 0 : index
    %98 = vector.load %arg3[%97, %c0_35, %c0_36] : memref<4x1x128xf32, #tpu.memory_space<vmem>>, vector<1x1x128xf32>
    %99 = vector.shape_cast %98 : vector<1x1x128xf32> to vector<1x128xf32>
    %100 = vector.broadcast %99 : vector<1x128xf32> to vector<8x128xf32>
    %101 = arith.mulf %96, %100 : vector<8x128xf32>
    %102 = arith.index_cast %c1_i32 : i32 to index
    %c0_37 = arith.constant 0 : index
    %c0_38 = arith.constant 0 : index
    %103 = vector.load %arg4[%102, %c0_37, %c0_38] : memref<4x1x128xf32, #tpu.memory_space<vmem>>, vector<1x1x128xf32>
    %104 = vector.shape_cast %103 : vector<1x1x128xf32> to vector<1x128xf32>
    %105 = vector.broadcast %104 : vector<1x128xf32> to vector<8x128xf32>
    %106 = arith.addf %101, %105 : vector<8x128xf32>
    %107 = arith.negf %106 : vector<8x128xf32>
    %108 = math.exp %107 : vector<8x128xf32>
    %cst_39 = arith.constant 1.000000e+00 : f32
    %109 = vector.broadcast %cst_39 : f32 to vector<8x128xf32>
    %110 = arith.addf %109, %108 : vector<8x128xf32>
    %111 = arith.divf %109, %110 : vector<8x128xf32>
    %112 = arith.mulf %106, %111 : vector<8x128xf32>
    %113 = arith.truncf %112 : vector<8x128xf32> to vector<8x128xbf16>
    %114 = arith.index_cast %c1_i32 : i32 to index
    %c0_40 = arith.constant 0 : index
    %c0_41 = arith.constant 0 : index
    %115 = vector.load %arg5[%114, %c0_40, %c0_41] : memref<4x128x256xbf16, #tpu.memory_space<vmem>>, vector<1x128x256xbf16>
    %116 = vector.shape_cast %115 : vector<1x128x256xbf16> to vector<128x256xbf16>
    %cst_42 = arith.constant dense<0.000000e+00> : vector<8x256xf32>
    %117 = tpu.matmul %113, %116, %cst_42 {dimension_numbers = #tpu.dot_dimension_numbers<[1], [0], [0], [1], [0, 0, 1, 1], [], []>} : vector<8x128xbf16>, vector<128x256xbf16>, vector<8x256xf32> -> vector<8x256xf32>
    %118 = arith.index_cast %c1_i32 : i32 to index
    %c0_43 = arith.constant 0 : index
    %c0_44 = arith.constant 0 : index
    %119 = vector.load %arg6[%118, %c0_43, %c0_44] : memref<4x128x256xbf16, #tpu.memory_space<vmem>>, vector<1x128x256xbf16>
    %120 = vector.shape_cast %119 : vector<1x128x256xbf16> to vector<128x256xbf16>
    %cst_45 = arith.constant dense<0.000000e+00> : vector<8x256xf32>
    %121 = tpu.matmul %0, %120, %cst_45 {dimension_numbers = #tpu.dot_dimension_numbers<[1], [0], [0], [1], [0, 0, 1, 1], [], []>} : vector<8x128xbf16>, vector<128x256xbf16>, vector<8x256xf32> -> vector<8x256xf32>
    %122 = arith.addf %117, %121 : vector<8x256xf32>
    %123 = arith.index_cast %c1_i32 : i32 to index
    %c0_46 = arith.constant 0 : index
    %c0_47 = arith.constant 0 : index
    %124 = vector.load %arg7[%123, %c0_46, %c0_47] : memref<4x1x256xf32, #tpu.memory_space<vmem>>, vector<1x1x256xf32>
    %125 = vector.shape_cast %124 : vector<1x1x256xf32> to vector<1x256xf32>
    %126 = vector.broadcast %125 : vector<1x256xf32> to vector<8x256xf32>
    %127 = arith.addf %122, %126 : vector<8x256xf32>
    %128 = arith.negf %127 : vector<8x256xf32>
    %129 = math.exp %128 : vector<8x256xf32>
    %cst_48 = arith.constant 1.000000e+00 : f32
    %130 = vector.broadcast %cst_48 : f32 to vector<8x256xf32>
    %131 = arith.addf %130, %129 : vector<8x256xf32>
    %132 = arith.divf %130, %131 : vector<8x256xf32>
    %133 = arith.mulf %127, %132 : vector<8x256xf32>
    %134 = arith.truncf %133 : vector<8x256xf32> to vector<8x256xbf16>
    %135 = arith.index_cast %c1_i32 : i32 to index
    %c0_49 = arith.constant 0 : index
    %c0_50 = arith.constant 0 : index
    %136 = vector.load %arg8[%135, %c0_49, %c0_50] : memref<4x256x256xbf16, #tpu.memory_space<vmem>>, vector<1x256x256xbf16>
    %137 = vector.shape_cast %136 : vector<1x256x256xbf16> to vector<256x256xbf16>
    %cst_51 = arith.constant dense<0.000000e+00> : vector<8x256xf32>
    %138 = tpu.matmul %134, %137, %cst_51 {dimension_numbers = #tpu.dot_dimension_numbers<[1], [0], [0], [1], [0, 0, 1, 1], [], []>} : vector<8x256xbf16>, vector<256x256xbf16>, vector<8x256xf32> -> vector<8x256xf32>
    %139 = arith.index_cast %c1_i32 : i32 to index
    %c0_52 = arith.constant 0 : index
    %c0_53 = arith.constant 0 : index
    %140 = vector.load %arg9[%139, %c0_52, %c0_53] : memref<4x1x256xf32, #tpu.memory_space<vmem>>, vector<1x1x256xf32>
    %141 = vector.shape_cast %140 : vector<1x1x256xf32> to vector<1x256xf32>
    %142 = vector.broadcast %141 : vector<1x256xf32> to vector<8x256xf32>
    %143 = arith.addf %138, %142 : vector<8x256xf32>
    %144 = arith.negf %143 : vector<8x256xf32>
    %145 = math.exp %144 : vector<8x256xf32>
    %cst_54 = arith.constant 1.000000e+00 : f32
    %146 = vector.broadcast %cst_54 : f32 to vector<8x256xf32>
    %147 = arith.addf %146, %145 : vector<8x256xf32>
    %148 = arith.divf %146, %147 : vector<8x256xf32>
    %149 = arith.mulf %143, %148 : vector<8x256xf32>
    %150 = arith.truncf %149 : vector<8x256xf32> to vector<8x256xbf16>
    %151 = arith.index_cast %c1_i32 : i32 to index
    %c0_55 = arith.constant 0 : index
    %c0_56 = arith.constant 0 : index
    %152 = vector.load %arg10[%151, %c0_55, %c0_56] : memref<4x256x128xbf16, #tpu.memory_space<vmem>>, vector<1x256x128xbf16>
    %153 = vector.shape_cast %152 : vector<1x256x128xbf16> to vector<256x128xbf16>
    %cst_57 = arith.constant dense<0.000000e+00> : vector<8x128xf32>
    %154 = tpu.matmul %150, %153, %cst_57 {dimension_numbers = #tpu.dot_dimension_numbers<[1], [0], [0], [1], [0, 0, 1, 1], [], []>} : vector<8x256xbf16>, vector<256x128xbf16>, vector<8x128xf32> -> vector<8x128xf32>
    %155 = arith.addf %78, %154 : vector<8x128xf32>
    %c2_i32 = arith.constant 2 : i32
    %cst_58 = arith.constant dense<0.000000e+00> : vector<8xf32>
    %156 = vector.multi_reduction <add>, %155, %cst_58 [1] : vector<8x128xf32> to vector<8xf32>
    %157 = vector.shape_cast %156 : vector<8xf32> to vector<8x1xf32>
    %cst_59 = arith.constant 1.280000e+02 : f32
    %158 = vector.broadcast %cst_59 : f32 to vector<8x1xf32>
    %159 = arith.divf %157, %158 : vector<8x1xf32>
    %160 = vector.broadcast %159 : vector<8x1xf32> to vector<8x128xf32>
    %161 = arith.subf %155, %160 : vector<8x128xf32>
    %162 = arith.mulf %161, %161 : vector<8x128xf32>
    %cst_60 = arith.constant dense<0.000000e+00> : vector<8xf32>
    %163 = vector.multi_reduction <add>, %162, %cst_60 [1] : vector<8x128xf32> to vector<8xf32>
    %164 = vector.shape_cast %163 : vector<8xf32> to vector<8x1xf32>
    %cst_61 = arith.constant 1.280000e+02 : f32
    %165 = vector.broadcast %cst_61 : f32 to vector<8x1xf32>
    %166 = arith.divf %164, %165 : vector<8x1xf32>
    %167 = vector.broadcast %159 : vector<8x1xf32> to vector<8x128xf32>
    %168 = arith.subf %155, %167 : vector<8x128xf32>
    %cst_62 = arith.constant 9.99999974E-6 : f32
    %169 = vector.broadcast %cst_62 : f32 to vector<8x1xf32>
    %170 = arith.addf %166, %169 : vector<8x1xf32>
    %171 = math.rsqrt %170 : vector<8x1xf32>
    %172 = vector.broadcast %171 : vector<8x1xf32> to vector<8x128xf32>
    %173 = arith.mulf %168, %172 : vector<8x128xf32>
    %174 = arith.index_cast %c2_i32 : i32 to index
    %c0_63 = arith.constant 0 : index
    %c0_64 = arith.constant 0 : index
    %175 = vector.load %arg3[%174, %c0_63, %c0_64] : memref<4x1x128xf32, #tpu.memory_space<vmem>>, vector<1x1x128xf32>
    %176 = vector.shape_cast %175 : vector<1x1x128xf32> to vector<1x128xf32>
    %177 = vector.broadcast %176 : vector<1x128xf32> to vector<8x128xf32>
    %178 = arith.mulf %173, %177 : vector<8x128xf32>
    %179 = arith.index_cast %c2_i32 : i32 to index
    %c0_65 = arith.constant 0 : index
    %c0_66 = arith.constant 0 : index
    %180 = vector.load %arg4[%179, %c0_65, %c0_66] : memref<4x1x128xf32, #tpu.memory_space<vmem>>, vector<1x1x128xf32>
    %181 = vector.shape_cast %180 : vector<1x1x128xf32> to vector<1x128xf32>
    %182 = vector.broadcast %181 : vector<1x128xf32> to vector<8x128xf32>
    %183 = arith.addf %178, %182 : vector<8x128xf32>
    %184 = arith.negf %183 : vector<8x128xf32>
    %185 = math.exp %184 : vector<8x128xf32>
    %cst_67 = arith.constant 1.000000e+00 : f32
    %186 = vector.broadcast %cst_67 : f32 to vector<8x128xf32>
    %187 = arith.addf %186, %185 : vector<8x128xf32>
    %188 = arith.divf %186, %187 : vector<8x128xf32>
    %189 = arith.mulf %183, %188 : vector<8x128xf32>
    %190 = arith.truncf %189 : vector<8x128xf32> to vector<8x128xbf16>
    %191 = arith.index_cast %c2_i32 : i32 to index
    %c0_68 = arith.constant 0 : index
    %c0_69 = arith.constant 0 : index
    %192 = vector.load %arg5[%191, %c0_68, %c0_69] : memref<4x128x256xbf16, #tpu.memory_space<vmem>>, vector<1x128x256xbf16>
    %193 = vector.shape_cast %192 : vector<1x128x256xbf16> to vector<128x256xbf16>
    %cst_70 = arith.constant dense<0.000000e+00> : vector<8x256xf32>
    %194 = tpu.matmul %190, %193, %cst_70 {dimension_numbers = #tpu.dot_dimension_numbers<[1], [0], [0], [1], [0, 0, 1, 1], [], []>} : vector<8x128xbf16>, vector<128x256xbf16>, vector<8x256xf32> -> vector<8x256xf32>
    %195 = arith.index_cast %c2_i32 : i32 to index
    %c0_71 = arith.constant 0 : index
    %c0_72 = arith.constant 0 : index
    %196 = vector.load %arg6[%195, %c0_71, %c0_72] : memref<4x128x256xbf16, #tpu.memory_space<vmem>>, vector<1x128x256xbf16>
    %197 = vector.shape_cast %196 : vector<1x128x256xbf16> to vector<128x256xbf16>
    %cst_73 = arith.constant dense<0.000000e+00> : vector<8x256xf32>
    %198 = tpu.matmul %0, %197, %cst_73 {dimension_numbers = #tpu.dot_dimension_numbers<[1], [0], [0], [1], [0, 0, 1, 1], [], []>} : vector<8x128xbf16>, vector<128x256xbf16>, vector<8x256xf32> -> vector<8x256xf32>
    %199 = arith.addf %194, %198 : vector<8x256xf32>
    %200 = arith.index_cast %c2_i32 : i32 to index
    %c0_74 = arith.constant 0 : index
    %c0_75 = arith.constant 0 : index
    %201 = vector.load %arg7[%200, %c0_74, %c0_75] : memref<4x1x256xf32, #tpu.memory_space<vmem>>, vector<1x1x256xf32>
    %202 = vector.shape_cast %201 : vector<1x1x256xf32> to vector<1x256xf32>
    %203 = vector.broadcast %202 : vector<1x256xf32> to vector<8x256xf32>
    %204 = arith.addf %199, %203 : vector<8x256xf32>
    %205 = arith.negf %204 : vector<8x256xf32>
    %206 = math.exp %205 : vector<8x256xf32>
    %cst_76 = arith.constant 1.000000e+00 : f32
    %207 = vector.broadcast %cst_76 : f32 to vector<8x256xf32>
    %208 = arith.addf %207, %206 : vector<8x256xf32>
    %209 = arith.divf %207, %208 : vector<8x256xf32>
    %210 = arith.mulf %204, %209 : vector<8x256xf32>
    %211 = arith.truncf %210 : vector<8x256xf32> to vector<8x256xbf16>
    %212 = arith.index_cast %c2_i32 : i32 to index
    %c0_77 = arith.constant 0 : index
    %c0_78 = arith.constant 0 : index
    %213 = vector.load %arg8[%212, %c0_77, %c0_78] : memref<4x256x256xbf16, #tpu.memory_space<vmem>>, vector<1x256x256xbf16>
    %214 = vector.shape_cast %213 : vector<1x256x256xbf16> to vector<256x256xbf16>
    %cst_79 = arith.constant dense<0.000000e+00> : vector<8x256xf32>
    %215 = tpu.matmul %211, %214, %cst_79 {dimension_numbers = #tpu.dot_dimension_numbers<[1], [0], [0], [1], [0, 0, 1, 1], [], []>} : vector<8x256xbf16>, vector<256x256xbf16>, vector<8x256xf32> -> vector<8x256xf32>
    %216 = arith.index_cast %c2_i32 : i32 to index
    %c0_80 = arith.constant 0 : index
    %c0_81 = arith.constant 0 : index
    %217 = vector.load %arg9[%216, %c0_80, %c0_81] : memref<4x1x256xf32, #tpu.memory_space<vmem>>, vector<1x1x256xf32>
    %218 = vector.shape_cast %217 : vector<1x1x256xf32> to vector<1x256xf32>
    %219 = vector.broadcast %218 : vector<1x256xf32> to vector<8x256xf32>
    %220 = arith.addf %215, %219 : vector<8x256xf32>
    %221 = arith.negf %220 : vector<8x256xf32>
    %222 = math.exp %221 : vector<8x256xf32>
    %cst_82 = arith.constant 1.000000e+00 : f32
    %223 = vector.broadcast %cst_82 : f32 to vector<8x256xf32>
    %224 = arith.addf %223, %222 : vector<8x256xf32>
    %225 = arith.divf %223, %224 : vector<8x256xf32>
    %226 = arith.mulf %220, %225 : vector<8x256xf32>
    %227 = arith.truncf %226 : vector<8x256xf32> to vector<8x256xbf16>
    %228 = arith.index_cast %c2_i32 : i32 to index
    %c0_83 = arith.constant 0 : index
    %c0_84 = arith.constant 0 : index
    %229 = vector.load %arg10[%228, %c0_83, %c0_84] : memref<4x256x128xbf16, #tpu.memory_space<vmem>>, vector<1x256x128xbf16>
    %230 = vector.shape_cast %229 : vector<1x256x128xbf16> to vector<256x128xbf16>
    %cst_85 = arith.constant dense<0.000000e+00> : vector<8x128xf32>
    %231 = tpu.matmul %227, %230, %cst_85 {dimension_numbers = #tpu.dot_dimension_numbers<[1], [0], [0], [1], [0, 0, 1, 1], [], []>} : vector<8x256xbf16>, vector<256x128xbf16>, vector<8x128xf32> -> vector<8x128xf32>
    %232 = arith.addf %155, %231 : vector<8x128xf32>
    %c3_i32 = arith.constant 3 : i32
    %cst_86 = arith.constant dense<0.000000e+00> : vector<8xf32>
    %233 = vector.multi_reduction <add>, %232, %cst_86 [1] : vector<8x128xf32> to vector<8xf32>
    %234 = vector.shape_cast %233 : vector<8xf32> to vector<8x1xf32>
    %cst_87 = arith.constant 1.280000e+02 : f32
    %235 = vector.broadcast %cst_87 : f32 to vector<8x1xf32>
    %236 = arith.divf %234, %235 : vector<8x1xf32>
    %237 = vector.broadcast %236 : vector<8x1xf32> to vector<8x128xf32>
    %238 = arith.subf %232, %237 : vector<8x128xf32>
    %239 = arith.mulf %238, %238 : vector<8x128xf32>
    %cst_88 = arith.constant dense<0.000000e+00> : vector<8xf32>
    %240 = vector.multi_reduction <add>, %239, %cst_88 [1] : vector<8x128xf32> to vector<8xf32>
    %241 = vector.shape_cast %240 : vector<8xf32> to vector<8x1xf32>
    %cst_89 = arith.constant 1.280000e+02 : f32
    %242 = vector.broadcast %cst_89 : f32 to vector<8x1xf32>
    %243 = arith.divf %241, %242 : vector<8x1xf32>
    %244 = vector.broadcast %236 : vector<8x1xf32> to vector<8x128xf32>
    %245 = arith.subf %232, %244 : vector<8x128xf32>
    %cst_90 = arith.constant 9.99999974E-6 : f32
    %246 = vector.broadcast %cst_90 : f32 to vector<8x1xf32>
    %247 = arith.addf %243, %246 : vector<8x1xf32>
    %248 = math.rsqrt %247 : vector<8x1xf32>
    %249 = vector.broadcast %248 : vector<8x1xf32> to vector<8x128xf32>
    %250 = arith.mulf %245, %249 : vector<8x128xf32>
    %251 = arith.index_cast %c3_i32 : i32 to index
    %c0_91 = arith.constant 0 : index
    %c0_92 = arith.constant 0 : index
    %252 = vector.load %arg3[%251, %c0_91, %c0_92] : memref<4x1x128xf32, #tpu.memory_space<vmem>>, vector<1x1x128xf32>
    %253 = vector.shape_cast %252 : vector<1x1x128xf32> to vector<1x128xf32>
    %254 = vector.broadcast %253 : vector<1x128xf32> to vector<8x128xf32>
    %255 = arith.mulf %250, %254 : vector<8x128xf32>
    %256 = arith.index_cast %c3_i32 : i32 to index
    %c0_93 = arith.constant 0 : index
    %c0_94 = arith.constant 0 : index
    %257 = vector.load %arg4[%256, %c0_93, %c0_94] : memref<4x1x128xf32, #tpu.memory_space<vmem>>, vector<1x1x128xf32>
    %258 = vector.shape_cast %257 : vector<1x1x128xf32> to vector<1x128xf32>
    %259 = vector.broadcast %258 : vector<1x128xf32> to vector<8x128xf32>
    %260 = arith.addf %255, %259 : vector<8x128xf32>
    %261 = arith.negf %260 : vector<8x128xf32>
    %262 = math.exp %261 : vector<8x128xf32>
    %cst_95 = arith.constant 1.000000e+00 : f32
    %263 = vector.broadcast %cst_95 : f32 to vector<8x128xf32>
    %264 = arith.addf %263, %262 : vector<8x128xf32>
    %265 = arith.divf %263, %264 : vector<8x128xf32>
    %266 = arith.mulf %260, %265 : vector<8x128xf32>
    %267 = arith.truncf %266 : vector<8x128xf32> to vector<8x128xbf16>
    %268 = arith.index_cast %c3_i32 : i32 to index
    %c0_96 = arith.constant 0 : index
    %c0_97 = arith.constant 0 : index
    %269 = vector.load %arg5[%268, %c0_96, %c0_97] : memref<4x128x256xbf16, #tpu.memory_space<vmem>>, vector<1x128x256xbf16>
    %270 = vector.shape_cast %269 : vector<1x128x256xbf16> to vector<128x256xbf16>
    %cst_98 = arith.constant dense<0.000000e+00> : vector<8x256xf32>
    %271 = tpu.matmul %267, %270, %cst_98 {dimension_numbers = #tpu.dot_dimension_numbers<[1], [0], [0], [1], [0, 0, 1, 1], [], []>} : vector<8x128xbf16>, vector<128x256xbf16>, vector<8x256xf32> -> vector<8x256xf32>
    %272 = arith.index_cast %c3_i32 : i32 to index
    %c0_99 = arith.constant 0 : index
    %c0_100 = arith.constant 0 : index
    %273 = vector.load %arg6[%272, %c0_99, %c0_100] : memref<4x128x256xbf16, #tpu.memory_space<vmem>>, vector<1x128x256xbf16>
    %274 = vector.shape_cast %273 : vector<1x128x256xbf16> to vector<128x256xbf16>
    %cst_101 = arith.constant dense<0.000000e+00> : vector<8x256xf32>
    %275 = tpu.matmul %0, %274, %cst_101 {dimension_numbers = #tpu.dot_dimension_numbers<[1], [0], [0], [1], [0, 0, 1, 1], [], []>} : vector<8x128xbf16>, vector<128x256xbf16>, vector<8x256xf32> -> vector<8x256xf32>
    %276 = arith.addf %271, %275 : vector<8x256xf32>
    %277 = arith.index_cast %c3_i32 : i32 to index
    %c0_102 = arith.constant 0 : index
    %c0_103 = arith.constant 0 : index
    %278 = vector.load %arg7[%277, %c0_102, %c0_103] : memref<4x1x256xf32, #tpu.memory_space<vmem>>, vector<1x1x256xf32>
    %279 = vector.shape_cast %278 : vector<1x1x256xf32> to vector<1x256xf32>
    %280 = vector.broadcast %279 : vector<1x256xf32> to vector<8x256xf32>
    %281 = arith.addf %276, %280 : vector<8x256xf32>
    %282 = arith.negf %281 : vector<8x256xf32>
    %283 = math.exp %282 : vector<8x256xf32>
    %cst_104 = arith.constant 1.000000e+00 : f32
    %284 = vector.broadcast %cst_104 : f32 to vector<8x256xf32>
    %285 = arith.addf %284, %283 : vector<8x256xf32>
    %286 = arith.divf %284, %285 : vector<8x256xf32>
    %287 = arith.mulf %281, %286 : vector<8x256xf32>
    %288 = arith.truncf %287 : vector<8x256xf32> to vector<8x256xbf16>
    %289 = arith.index_cast %c3_i32 : i32 to index
    %c0_105 = arith.constant 0 : index
    %c0_106 = arith.constant 0 : index
    %290 = vector.load %arg8[%289, %c0_105, %c0_106] : memref<4x256x256xbf16, #tpu.memory_space<vmem>>, vector<1x256x256xbf16>
    %291 = vector.shape_cast %290 : vector<1x256x256xbf16> to vector<256x256xbf16>
    %cst_107 = arith.constant dense<0.000000e+00> : vector<8x256xf32>
    %292 = tpu.matmul %288, %291, %cst_107 {dimension_numbers = #tpu.dot_dimension_numbers<[1], [0], [0], [1], [0, 0, 1, 1], [], []>} : vector<8x256xbf16>, vector<256x256xbf16>, vector<8x256xf32> -> vector<8x256xf32>
    %293 = arith.index_cast %c3_i32 : i32 to index
    %c0_108 = arith.constant 0 : index
    %c0_109 = arith.constant 0 : index
    %294 = vector.load %arg9[%293, %c0_108, %c0_109] : memref<4x1x256xf32, #tpu.memory_space<vmem>>, vector<1x1x256xf32>
    %295 = vector.shape_cast %294 : vector<1x1x256xf32> to vector<1x256xf32>
    %296 = vector.broadcast %295 : vector<1x256xf32> to vector<8x256xf32>
    %297 = arith.addf %292, %296 : vector<8x256xf32>
    %298 = arith.negf %297 : vector<8x256xf32>
    %299 = math.exp %298 : vector<8x256xf32>
    %cst_110 = arith.constant 1.000000e+00 : f32
    %300 = vector.broadcast %cst_110 : f32 to vector<8x256xf32>
    %301 = arith.addf %300, %299 : vector<8x256xf32>
    %302 = arith.divf %300, %301 : vector<8x256xf32>
    %303 = arith.mulf %297, %302 : vector<8x256xf32>
    %304 = arith.truncf %303 : vector<8x256xf32> to vector<8x256xbf16>
    %305 = arith.index_cast %c3_i32 : i32 to index
    %c0_111 = arith.constant 0 : index
    %c0_112 = arith.constant 0 : index
    %306 = vector.load %arg10[%305, %c0_111, %c0_112] : memref<4x256x128xbf16, #tpu.memory_space<vmem>>, vector<1x256x128xbf16>
    %307 = vector.shape_cast %306 : vector<1x256x128xbf16> to vector<256x128xbf16>
    %cst_113 = arith.constant dense<0.000000e+00> : vector<8x128xf32>
    %308 = tpu.matmul %304, %307, %cst_113 {dimension_numbers = #tpu.dot_dimension_numbers<[1], [0], [0], [1], [0, 0, 1, 1], [], []>} : vector<8x256xbf16>, vector<256x128xbf16>, vector<8x128xf32> -> vector<8x128xf32>
    %309 = arith.addf %232, %308 : vector<8x128xf32>
    %c4_i32 = arith.constant 4 : i32
    %c0_114 = arith.constant 0 : index
    %c0_115 = arith.constant 0 : index
    %310 = vector.load %arg11[%c0_114, %c0_115] : memref<8x128xf32, #tpu.memory_space<vmem>>, vector<8x128xf32>
    tpu.vector_store %arg11[%c0_114, %c0_115], %309 {strides = array<i32>} : memref<8x128xf32, #tpu.memory_space<vmem>>, vector<8x128xf32>,
    return
  }
  func.func @transform_0(%arg0: i32) -> (i32, i32) {
    %c0_i32 = arith.constant 0 : i32
    %c0_i32_0 = arith.constant 0 : i32
    return %arg0, %c0_i32 : i32, i32
  }
  func.func @transform_1(%arg0: i32) -> (i32, i32) {
    %c0_i32 = arith.constant 0 : i32
    %c0_i32_0 = arith.constant 0 : i32
    return %arg0, %c0_i32 : i32, i32
  }
  func.func @transform_2(%arg0: i32) -> (i32, i32, i32) {
    %c0_i32 = arith.constant 0 : i32
    %c0_i32_0 = arith.constant 0 : i32
    %c0_i32_1 = arith.constant 0 : i32
    %c0_i32_2 = arith.constant 0 : i32
    return %c0_i32, %c0_i32_0, %c0_i32_1 : i32, i32, i32
  }
  func.func @transform_3(%arg0: i32) -> (i32, i32, i32) {
    %c0_i32 = arith.constant 0 : i32
    %c0_i32_0 = arith.constant 0 : i32
    %c0_i32_1 = arith.constant 0 : i32
    %c0_i32_2 = arith.constant 0 : i32
    return %c0_i32, %c0_i32_0, %c0_i32_1 : i32, i32, i32
  }
  func.func @transform_4(%arg0: i32) -> (i32, i32, i32) {
    %c0_i32 = arith.constant 0 : i32
    %c0_i32_0 = arith.constant 0 : i32
    %c0_i32_1 = arith.constant 0 : i32
    %c0_i32_2 = arith.constant 0 : i32
    return %c0_i32, %c0_i32_0, %c0_i32_1 : i32, i32, i32
  }
  func.func @transform_5(%arg0: i32) -> (i32, i32, i32) {
    %c0_i32 = arith.constant 0 : i32
    %c0_i32_0 = arith.constant 0 : i32
    %c0_i32_1 = arith.constant 0 : i32
    %c0_i32_2 = arith.constant 0 : i32
    return %c0_i32, %c0_i32_0, %c0_i32_1 : i32, i32, i32
  }
  func.func @transform_6(%arg0: i32) -> (i32, i32, i32) {
    %c0_i32 = arith.constant 0 : i32
    %c0_i32_0 = arith.constant 0 : i32
    %c0_i32_1 = arith.constant 0 : i32
    %c0_i32_2 = arith.constant 0 : i32
    return %c0_i32, %c0_i32_0, %c0_i32_1 : i32, i32, i32
  }
  func.func @transform_7(%arg0: i32) -> (i32, i32, i32) {
    %c0_i32 = arith.constant 0 : i32
    %c0_i32_0 = arith.constant 0 : i32
    %c0_i32_1 = arith.constant 0 : i32
    %c0_i32_2 = arith.constant 0 : i32
    return %c0_i32, %c0_i32_0, %c0_i32_1 : i32, i32, i32
  }
  func.func @transform_8(%arg0: i32) -> (i32, i32, i32) {
    %c0_i32 = arith.constant 0 : i32
    %c0_i32_0 = arith.constant 0 : i32
    %c0_i32_1 = arith.constant 0 : i32
    %c0_i32_2 = arith.constant 0 : i32
    return %c0_i32, %c0_i32_0, %c0_i32_1 : i32, i32, i32
  }
  func.func @transform_9(%arg0: i32) -> (i32, i32, i32) {
    %c0_i32 = arith.constant 0 : i32
    %c0_i32_0 = arith.constant 0 : i32
    %c0_i32_1 = arith.constant 0 : i32
    %c0_i32_2 = arith.constant 0 : i32
    return %c0_i32, %c0_i32_0, %c0_i32_1 : i32, i32, i32
  }
  func.func @transform_10(%arg0: i32) -> (i32, i32) {
    %c0_i32 = arith.constant 0 : i32
    %c0_i32_0 = arith.constant 0 : i32
    return %arg0, %c0_i32 : i32, i32
  }
}

</mosaic_0001>

<llo_original>
// kernel: tpu_custom_call.1
$region0: #{tpu_custom_call.1}
  #allocation0 [shape = 'u32[]', space=smem, size = 0x4, offset = 0x4, fixed_abs, tag = 'smem constant byte address 0x4 - core index']
  #allocation1 [shape = 'u32[144,128]{1,0:T(1,128)}', space=vmem, size = 0x12000, scoped, tag = 'internal scratch']
  %s0 = inlined_call_operand.hbm [shape: bf16[8,128], index: 0, kind: input, shape index: {}]
  %s1 = inlined_call_operand.hbm [shape: f32[8,128], index: 1, kind: input, shape index: {}]
  %s2 = inlined_call_operand.hbm [shape: f32[4,1,128], index: 2, kind: input, shape index: {}]
  %s3 = inlined_call_operand.hbm [shape: f32[4,1,128], index: 3, kind: input, shape index: {}]
  %s4 = inlined_call_operand.hbm [shape: bf16[4,128,256], index: 4, kind: input, shape index: {}]
  %s5 = inlined_call_operand.hbm [shape: bf16[4,128,256], index: 5, kind: input, shape index: {}]
  %s6 = inlined_call_operand.vmem [shape: f32[4,1,256], index: 6, kind: input, shape index: {}]
  %s7 = inlined_call_operand.hbm [shape: bf16[4,256,256], index: 7, kind: input, shape index: {}]
  %s8 = inlined_call_operand.vmem [shape: f32[4,1,256], index: 8, kind: input, shape index: {}]
  %s9 = inlined_call_operand.hbm [shape: bf16[4,256,128], index: 9, kind: input, shape index: {}]
  %s10 = inlined_call_operand.hbm [shape: f32[8,128], index: 10, kind: output, shape index: {}]
  %s11 = sld [smem:[#allocation0]]
  $region82: #{tpu_custom_call.1} parent=0
    _
  %s13 = ssub.s32 1, %s11
  %s14 = scalar_select 0, %s13, %s11
  $region1: #{tpu_custom_call.1} parent=0
    #allocation2 [shape = 'u8[2048]{0}', space=vmem, size = 0x800, scoped, tag = 'input window, operand 0, single buffered']
    #allocation3 [shape = 's32[1]{0}', space=sflag, size = 0x4, scoped, tag = 'scoped memory for tpu_custom_call.1']
    #allocation4 [shape = 's32[1]{0}', space=sflag, size = 0x4, scoped, tag = 'scoped memory for tpu_custom_call.1']
    #allocation5 [shape = 'u8[4096]{0}', space=vmem, size = 0x1000, scoped, tag = 'input window, operand 1, single buffered']
    #allocation6 [shape = 's32[1]{0}', space=sflag, size = 0x4, scoped, tag = 'scoped memory for tpu_custom_call.1']
    #allocation7 [shape = 'u8[2048]{0}', space=vmem, size = 0x800, scoped, tag = 'input window, operand 2, single buffered']
    #allocation8 [shape = 'u8[2048]{0}', space=vmem, size = 0x800, scoped, tag = 'input window, operand 3, single buffered']
    #allocation9 [shape = 's32[1]{0}', space=sflag, size = 0x4, scoped, tag = 'scoped memory for tpu_custom_call.1']
    #allocation10 [shape = 'u8[262144]{0}', space=vmem, size = 0x40000, scoped, tag = 'input window, operand 4, single buffered']
    #allocation11 [shape = 'u8[262144]{0}', space=vmem, size = 0x40000, scoped, tag = 'input window, operand 5, single buffered']
    #allocation12 [shape = 's32[1]{0}', space=sflag, size = 0x4, scoped, tag = 'scoped memory for tpu_custom_call.1']
    #allocation13 [shape = 'u8[524288]{0}', space=vmem, size = 0x80000, scoped, tag = 'input window, operand 7, single buffered']
    #allocation14 [shape = 'u8[262144]{0}', space=vmem, size = 0x40000, scoped, tag = 'input window, operand 9, single buffered']
    #allocation15 [shape = 's32[1]{0}', space=sflag, size = 0x4, scoped, tag = 'scoped memory for tpu_custom_call.1']
    #allocation16 [shape = 'u8[4096]{0}', space=vmem, size = 0x1000, scoped, tag = 'output window, operand 0, single buffered']
    %15 = vsyncpa [#allocation3], 0
    %16 = vsyncpa [#allocation6], 0
    %17 = vsyncpa [#allocation9], 0
    %18 = vsyncpa [#allocation12], 0
    %19 = vsyncpa [#allocation15], 0
    %20 = vsyncpa [#allocation4], 0
    // Predicated region
    $region2: #{tpu_custom_call.1} parent=1 // pred_check
      _
    $region3: #{tpu_custom_call.1} parent=1 // pred_check_branch
      %22 = sbr.rel (0) target = $region5
    $region4: #{tpu_custom_call.1} parent=1 // pred_region
      %s24 = ssub.s32 64, 64
      %25 = vsyncadd [#allocation3], %s24
      %s27 = sshll.u32 [#allocation2], 4
      %s28 = int_to_ptr.vmem [resolvable:$true] %s27
      %30 = dma.hbm_to_vmem [thread:$0]  %s0, 64, %s28, [#allocation3]
    $region5: #{tpu_custom_call.1} parent=1 // pred_fallthru
      _
    // Predicated region
    $region6: #{tpu_custom_call.1} parent=1 // pred_check
      _
    $region7: #{tpu_custom_call.1} parent=1 // pred_check_branch
      %32 = sbr.rel (0) target = $region9
    $region8: #{tpu_custom_call.1} parent=1 // pred_region
      %s34 = ssub.s32 128, 128
      %35 = vsyncadd [#allocation6], %s34
      %s37 = sshll.u32 [#allocation5], 4
      %s38 = int_to_ptr.vmem [resolvable:$true] %s37
      %40 = dma.hbm_to_vmem [thread:$0]  %s1, 128, %s38, [#allocation6]
    $region9: #{tpu_custom_call.1} parent=1 // pred_fallthru
      _
    // Predicated region
    $region10: #{tpu_custom_call.1} parent=1 // pred_check
      _
    $region11: #{tpu_custom_call.1} parent=1 // pred_check_branch
      %42 = sbr.rel (0) target = $region13
    $region12: #{tpu_custom_call.1} parent=1 // pred_region
      %s44 = ssub.s32 64, 64
      %45 = vsyncadd [#allocation6], %s44
      %s46 = sshll.u32 [#allocation7], 4
      %s47 = int_to_ptr.vmem [resolvable:$true] %s46
      %52 = dma.hbm_to_vmem [thread:$0]  %s2, 64, %s47, [#allocation6], 16, 16, 1
    $region13: #{tpu_custom_call.1} parent=1 // pred_fallthru
      _
    // Predicated region
    $region14: #{tpu_custom_call.1} parent=1 // pred_check
      _
    $region15: #{tpu_custom_call.1} parent=1 // pred_check_branch
      %54 = sbr.rel (0) target = $region17
    $region16: #{tpu_custom_call.1} parent=1 // pred_region
      %s56 = ssub.s32 64, 64
      %57 = vsyncadd [#allocation9], %s56
      %s58 = sshll.u32 [#allocation8], 4
      %s59 = int_to_ptr.vmem [resolvable:$true] %s58
      %64 = dma.hbm_to_vmem [thread:$0]  %s3, 64, %s59, [#allocation9], 16, 16, 1
    $region17: #{tpu_custom_call.1} parent=1 // pred_fallthru
      _
    // Predicated region
    $region18: #{tpu_custom_call.1} parent=1 // pred_check
      _
    $region19: #{tpu_custom_call.1} parent=1 // pred_check_branch
      %66 = sbr.rel (0) target = $region21
    $region20: #{tpu_custom_call.1} parent=1 // pred_region
      %s68 = ssub.s32 8192, 8192
      %69 = vsyncadd [#allocation9], %s68
      %s70 = sshll.u32 [#allocation10], 4
      %s71 = int_to_ptr.vmem [resolvable:$true] %s70
      %76 = dma.hbm_to_vmem [thread:$0]  %s4, 8192, %s71, [#allocation9], 128, 128, 8
    $region21: #{tpu_custom_call.1} parent=1 // pred_fallthru
      _
    // Predicated region
    $region22: #{tpu_custom_call.1} parent=1 // pred_check
      _
    $region23: #{tpu_custom_call.1} parent=1 // pred_check_branch
      %78 = sbr.rel (0) target = $region25
    $region24: #{tpu_custom_call.1} parent=1 // pred_region
      %s80 = ssub.s32 8192, 8192
      %81 = vsyncadd [#allocation12], %s80
      %s82 = sshll.u32 [#allocation11], 4
      %s83 = int_to_ptr.vmem [resolvable:$true] %s82
      %88 = dma.hbm_to_vmem [thread:$0]  %s5, 8192, %s83, [#allocation12], 128, 128, 8
    $region25: #{tpu_custom_call.1} parent=1 // pred_fallthru
      _
    // Predicated region
    $region26: #{tpu_custom_call.1} parent=1 // pred_check
      _
    $region27: #{tpu_custom_call.1} parent=1 // pred_check_branch
      %90 = sbr.rel (0) target = $region29
    $region28: #{tpu_custom_call.1} parent=1 // pred_region
      _
    $region29: #{tpu_custom_call.1} parent=1 // pred_fallthru
      _
    // Predicated region
    $region30: #{tpu_custom_call.1} parent=1 // pred_check
      _
    $region31: #{tpu_custom_call.1} parent=1 // pred_check_branch
      %92 = sbr.rel (0) target = $region33
    $region32: #{tpu_custom_call.1} parent=1 // pred_region
      %s94 = ssub.s32 16384, 16384
      %95 = vsyncadd [#allocation12], %s94
      %s96 = sshll.u32 [#allocation13], 4
      %s97 = int_to_ptr.vmem [resolvable:$true] %s96
      %102 = dma.hbm_to_vmem [thread:$0]  %s7, 16384, %s97, [#allocation12], 128, 128, 8
    $region33: #{tpu_custom_call.1} parent=1 // pred_fallthru
      _
    // Predicated region
    $region34: #{tpu_custom_call.1} parent=1 // pred_check
      _
    $region35: #{tpu_custom_call.1} parent=1 // pred_check_branch
      %104 = sbr.rel (0) target = $region37
    $region36: #{tpu_custom_call.1} parent=1 // pred_region
      _
    $region37: #{tpu_custom_call.1} parent=1 // pred_fallthru
      _
    // Predicated region
    $region38: #{tpu_custom_call.1} parent=1 // pred_check
      _
    $region39: #{tpu_custom_call.1} parent=1 // pred_check_branch
      %106 = sbr.rel (0) target = $region41
    $region40: #{tpu_custom_call.1} parent=1 // pred_region
      %s108 = ssub.s32 8192, 8192
      %109 = vsyncadd [#allocation15], %s108
      %s110 = sshll.u32 [#allocation14], 4
      %s111 = int_to_ptr.vmem [resolvable:$true] %s110
      %116 = dma.hbm_to_vmem [thread:$0]  %s9, 8192, %s111, [#allocation15], 64, 64, 4
    $region41: #{tpu_custom_call.1} parent=1 // pred_fallthru
      _
    // Predicated region
    $region42: #{tpu_custom_call.1} parent=1 // pred_check
      _
    $region43: #{tpu_custom_call.1} parent=1 // pred_check_branch
      %118 = sbr.rel (0) target = $region45
    $region44: #{tpu_custom_call.1} parent=1 // pred_region
      %119 = dma.done [#allocation3], 64
    $region45: #{tpu_custom_call.1} parent=1 // pred_fallthru
      _
    // Predicated region
    $region46: #{tpu_custom_call.1} parent=1 // pred_check
      _
    $region47: #{tpu_custom_call.1} parent=1 // pred_check_branch
      %121 = sbr.rel (0) target = $region49
    $region48: #{tpu_custom_call.1} parent=1 // pred_region
      %122 = dma.done [#allocation6], 128
    $region49: #{tpu_custom_call.1} parent=1 // pred_fallthru
      _
    // Predicated region
    $region50: #{tpu_custom_call.1} parent=1 // pred_check
      _
    $region51: #{tpu_custom_call.1} parent=1 // pred_check_branch
      %124 = sbr.rel (0) target = $region53
    $region52: #{tpu_custom_call.1} parent=1 // pred_region
      %125 = dma.done [#allocation6], 64
    $region53: #{tpu_custom_call.1} parent=1 // pred_fallthru
      _
    // Predicated region
    $region54: #{tpu_custom_call.1} parent=1 // pred_check
      _
    $region55: #{tpu_custom_call.1} parent=1 // pred_check_branch
      %127 = sbr.rel (0) target = $region57
    $region56: #{tpu_custom_call.1} parent=1 // pred_region
      %128 = dma.done [#allocation9], 64
    $region57: #{tpu_custom_call.1} parent=1 // pred_fallthru
      _
    // Predicated region
    $region58: #{tpu_custom_call.1} parent=1 // pred_check
      _
    $region59: #{tpu_custom_call.1} parent=1 // pred_check_branch
      %130 = sbr.rel (0) target = $region61
    $region60: #{tpu_custom_call.1} parent=1 // pred_region
      %131 = dma.done [#allocation9], 8192
    $region61: #{tpu_custom_call.1} parent=1 // pred_fallthru
      _
    // Predicated region
    $region62: #{tpu_custom_call.1} parent=1 // pred_check
      _
    $region63: #{tpu_custom_call.1} parent=1 // pred_check_branch
      %133 = sbr.rel (0) target = $region65
    $region64: #{tpu_custom_call.1} parent=1 // pred_region
      %134 = dma.done [#allocation12], 8192
    $region65: #{tpu_custom_call.1} parent=1 // pred_fallthru
      _
    // Predicated region
    $region66: #{tpu_custom_call.1} parent=1 // pred_check
      _
    $region67: #{tpu_custom_call.1} parent=1 // pred_check_branch
      %136 = sbr.rel (0) target = $region69
    $region68: #{tpu_custom_call.1} parent=1 // pred_region
      %137 = dma.done [#allocation12], 16384
    $region69: #{tpu_custom_call.1} parent=1 // pred_fallthru
      _
    // Predicated region
    $region70: #{tpu_custom_call.1} parent=1 // pred_check
      _
    $region71: #{tpu_custom_call.1} parent=1 // pred_check_branch
      %139 = sbr.rel (0) target = $region73
    $region72: #{tpu_custom_call.1} parent=1 // pred_region
      %140 = dma.done [#allocation15], 8192
    $region73: #{tpu_custom_call.1} parent=1 // pred_fallthru
      _
    %v142 = vld [vmem:[#allocation2] sm:$0xf]
    %v143 = vld [vmem:[#allocation5] sm:$0xff]
    %144 = vadd.xlane.f32.xlu0 %v143
    %v145 = vpop.xlane.xlu0 %144
    %v146 = vrcp.pop 128.0
    %v147 = vmul.f32 %v145, %v146
    %v148 = vsub.f32 %v143, %v147
    %v149 = vmul.f32 %v148, %v148
    %150 = vadd.xlane.f32.xlu0 %v149
    %v151 = vpop.xlane.xlu0 %150
    %v152 = vmul.f32 %v151, %v146
    %v153 = vadd.f32 %v152, 1e-05
    %v154 = vrsqrt.pop %v153
    %v155 = vmul.f32 %v148, %v154
    %v156 = vld [vmem:[#allocation7] sm:$0x1]
    %v158 = vlaneseq
    %v159 = vshrl.u32 %v158, 7
    %v160 = vsub.s32 0, %v159
    %v161 = vrot.slane %v156, %v160
    %v163 = vmul.f32 %v155, %v161
    %v164 = vld [vmem:[#allocation8] sm:$0x1]
    %v166 = vlaneseq
    %v167 = vshrl.u32 %v166, 7
    %v168 = vsub.s32 0, %v167
    %v169 = vrot.slane %v164, %v168
    %v171 = vadd.f32 %v163, %v169
    %v172 = vxor.u32 %v171, 2147483648
    %v173 = vmul.f32 %v172, 1.442695
    %v174 = vpow.pop %v173
    %v175 = vadd.f32 %v174, 1.0
    %v176 = vrcp.pop %v175
    %v177 = vmul.f32 1.0, %v176
    %v178 = vmul.f32 %v171, %v177
    %v179 = vpack.c.bf16 %v178, %v178
    %v180 = vld [vmem:[#allocation10] sm:$0xff]
    %v181 = vld [vmem:[#allocation10 + $0x8] sm:$0xff]
    %v182 = vld [vmem:[#allocation10 + $0x10] sm:$0xff]
    %v183 = vld [vmem:[#allocation10 + $0x18] sm:$0xff]
    %v184 = vld [vmem:[#allocation10 + $0x20] sm:$0xff]
    %v185 = vld [vmem:[#allocation10 + $0x28] sm:$0xff]
    %v186 = vld [vmem:[#allocation10 + $0x30] sm:$0xff]
    %v187 = vld [vmem:[#allocation10 + $0x38] sm:$0xff]
    %v188 = vld [vmem:[#allocation10 + $0x40] sm:$0xff]
    %v189 = vld [vmem:[#allocation10 + $0x48] sm:$0xff]
    %v190 = vld [vmem:[#allocation10 + $0x50] sm:$0xff]
    %v191 = vld [vmem:[#allocation10 + $0x58] sm:$0xff]
    %v192 = vld [vmem:[#allocation10 + $0x60] sm:$0xff]
    %v193 = vld [vmem:[#allocation10 + $0x68] sm:$0xff]
    %v194 = vld [vmem:[#allocation10 + $0x70] sm:$0xff]
    %v195 = vld [vmem:[#allocation10 + $0x78] sm:$0xff]
    %v196 = vld [vmem:[#allocation11] sm:$0xff]
    %v197 = vld [vmem:[#allocation11 + $0x8] sm:$0xff]
    %v198 = vld [vmem:[#allocation11 + $0x10] sm:$0xff]
    %v199 = vld [vmem:[#allocation11 + $0x18] sm:$0xff]
    %v200 = vld [vmem:[#allocation11 + $0x20] sm:$0xff]
    %v201 = vld [vmem:[#allocation11 + $0x28] sm:$0xff]
    %v202 = vld [vmem:[#allocation11 + $0x30] sm:$0xff]
    %v203 = vld [vmem:[#allocation11 + $0x38] sm:$0xff]
    %v204 = vld [vmem:[#allocation11 + $0x40] sm:$0xff]
    %v205 = vld [vmem:[#allocation11 + $0x48] sm:$0xff]
    %v206 = vld [vmem:[#allocation11 + $0x50] sm:$0xff]
    %v207 = vld [vmem:[#allocation11 + $0x58] sm:$0xff]
    %v208 = vld [vmem:[#allocation11 + $0x60] sm:$0xff]
    %v209 = vld [vmem:[#allocation11 + $0x68] sm:$0xff]
    %v210 = vld [vmem:[#allocation11 + $0x70] sm:$0xff]
    %v211 = vld [vmem:[#allocation11 + $0x78] sm:$0xff]
    %v228 = vunpack.c.l.b16 %v196
    %v229 = vunpack.c.h.b16 %v196
    %v230 = vunpack.c.l.b16 %v197
    %v231 = vunpack.c.h.b16 %v197
    %v232 = vunpack.c.l.b16 %v198
    %v233 = vunpack.c.h.b16 %v198
    %v234 = vunpack.c.l.b16 %v199
    %v235 = vunpack.c.h.b16 %v199
    %v236 = vunpack.c.l.b16 %v200
    %v237 = vunpack.c.h.b16 %v200
    %v238 = vunpack.c.l.b16 %v201
    %v239 = vunpack.c.h.b16 %v201
    %v240 = vunpack.c.l.b16 %v202
    %v241 = vunpack.c.h.b16 %v202
    %v242 = vunpack.c.l.b16 %v203
    %v243 = vunpack.c.h.b16 %v203
    %v244 = vunpack.c.l.b16 %v204
    %v245 = vunpack.c.h.b16 %v204
    %v246 = vunpack.c.l.b16 %v205
    %v247 = vunpack.c.h.b16 %v205
    %v248 = vunpack.c.l.b16 %v206
    %v249 = vunpack.c.h.b16 %v206
    %v250 = vunpack.c.l.b16 %v207
    %v251 = vunpack.c.h.b16 %v207
    %v252 = vunpack.c.l.b16 %v208
    %v253 = vunpack.c.h.b16 %v208
    %v254 = vunpack.c.l.b16 %v209
    %v255 = vunpack.c.h.b16 %v209
    %v256 = vunpack.c.l.b16 %v210
    %v257 = vunpack.c.h.b16 %v210
    %v258 = vunpack.c.l.b16 %v211
    %v259 = vunpack.c.h.b16 %v211
    %v260 = vpack.c.b16 %v230, %v228
    %v261 = vpack.c.b16 %v231, %v229
    %v262 = vpack.c.b16 %v234, %v232
    %v263 = vpack.c.b16 %v235, %v233
    %v264 = vpack.c.b16 %v238, %v236
    %v265 = vpack.c.b16 %v239, %v237
    %v266 = vpack.c.b16 %v242, %v240
    %v267 = vpack.c.b16 %v243, %v241
    %v268 = vpack.c.b16 %v246, %v244
    %v269 = vpack.c.b16 %v247, %v245
    %v270 = vpack.c.b16 %v250, %v248
    %v271 = vpack.c.b16 %v251, %v249
    %v272 = vpack.c.b16 %v254, %v252
    %v273 = vpack.c.b16 %v255, %v253
    %v274 = vpack.c.b16 %v258, %v256
    %v275 = vpack.c.b16 %v259, %v257
    %292 = vmatprep.subr.bf16.mxu0 %v261
    %293 = vmatpush1.bf16.msra.mxu0 %v260
    %294 = vmatprep.subr.bf16.mxu0 %v263
    %295 = vmatpush1.bf16.msra.mxu0 %v262
    %296 = vmatprep.subr.bf16.mxu0 %v265
    %297 = vmatpush1.bf16.msra.mxu0 %v264
    %298 = vmatprep.subr.bf16.mxu0 %v267
    %299 = vmatpush1.bf16.msra.mxu0 %v266
    %300 = vmatprep.subr.bf16.mxu0 %v269
    %301 = vmatpush1.bf16.msra.mxu0 %v268
    %302 = vmatprep.subr.bf16.mxu0 %v271
    %303 = vmatpush1.bf16.msra.mxu0 %v270
    %304 = vmatprep.subr.bf16.mxu0 %v273
    %305 = vmatpush1.bf16.msra.mxu0 %v272
    %306 = vmatprep.subr.bf16.mxu0 %v275
    %307 = vmatpush1.bf16.msra.mxu0 %v274
    %308 = vmatprep.subr.bf16.mxu0 0
    %309 = vmatpush1.bf16.msra.mxu0 0
    %310 = vmatprep.subr.bf16.mxu0 0
    %311 = vmatpush1.bf16.msra.mxu0 0
    %312 = vmatprep.subr.bf16.mxu0 0
    %313 = vmatpush1.bf16.msra.mxu0 0
    %314 = vmatprep.subr.bf16.mxu0 0
    %315 = vmatpush1.bf16.msra.mxu0 0
    %316 = vmatprep.subr.bf16.mxu0 0
    %317 = vmatpush1.bf16.msra.mxu0 0
    %318 = vmatprep.subr.bf16.mxu0 0
    %319 = vmatpush1.bf16.msra.mxu0 0
    %320 = vmatprep.subr.bf16.mxu0 0
    %321 = vmatpush1.bf16.msra.mxu0 0
    %322 = vmatprep.subr.bf16.mxu0 0
    %323 = vmatpush1.bf16.msra.mxu0 0
    %324 = vmatprep.mubr.bf16.mxu0 0
    %325 = vmatmul.mubr.bf16.gmra.mrb[0].mxu0 %v142
    %v326 = vpop.f32.mrb[0].mxu0
    %v327 = vadd.f32 0.0, %v326
    %v328 = vpop.f32.mrb[0].mxu0
    %v329 = vadd.f32 0.0, %v328
    %v330 = vpop.f32.mrb[0].mxu0
    %v331 = vpop.f32.mrb[0].mxu0
    %332 = vdwg.mxu0
    %v349 = vunpack.c.l.b16 %v180
    %v350 = vunpack.c.h.b16 %v180
    %v351 = vunpack.c.l.b16 %v181
    %v352 = vunpack.c.h.b16 %v181
    %v353 = vunpack.c.l.b16 %v182
    %v354 = vunpack.c.h.b16 %v182
    %v355 = vunpack.c.l.b16 %v183
    %v356 = vunpack.c.h.b16 %v183
    %v357 = vunpack.c.l.b16 %v184
    %v358 = vunpack.c.h.b16 %v184
    %v359 = vunpack.c.l.b16 %v185
    %v360 = vunpack.c.h.b16 %v185
    %v361 = vunpack.c.l.b16 %v186
    %v362 = vunpack.c.h.b16 %v186
    %v363 = vunpack.c.l.b16 %v187
    %v364 = vunpack.c.h.b16 %v187
    %v365 = vunpack.c.l.b16 %v188
    %v366 = vunpack.c.h.b16 %v188
    %v367 = vunpack.c.l.b16 %v189
    %v368 = vunpack.c.h.b16 %v189
    %v369 = vunpack.c.l.b16 %v190
    %v370 = vunpack.c.h.b16 %v190
    %v371 = vunpack.c.l.b16 %v191
    %v372 = vunpack.c.h.b16 %v191
    %v373 = vunpack.c.l.b16 %v192
    %v374 = vunpack.c.h.b16 %v192
    %v375 = vunpack.c.l.b16 %v193
    %v376 = vunpack.c.h.b16 %v193
    %v377 = vunpack.c.l.b16 %v194
    %v378 = vunpack.c.h.b16 %v194
    %v379 = vunpack.c.l.b16 %v195
    %v380 = vunpack.c.h.b16 %v195
    %v381 = vpack.c.b16 %v351, %v349
    %v382 = vpack.c.b16 %v352, %v350
    %v383 = vpack.c.b16 %v355, %v353
    %v384 = vpack.c.b16 %v356, %v354
    %v385 = vpack.c.b16 %v359, %v357
    %v386 = vpack.c.b16 %v360, %v358
    %v387 = vpack.c.b16 %v363, %v361
    %v388 = vpack.c.b16 %v364, %v362
    %v389 = vpack.c.b16 %v367, %v365
    %v390 = vpack.c.b16 %v368, %v366
    %v391 = vpack.c.b16 %v371, %v369
    %v392 = vpack.c.b16 %v372, %v370
    %v393 = vpack.c.b16 %v375, %v373
    %v394 = vpack.c.b16 %v376, %v374
    %v395 = vpack.c.b16 %v379, %v377
    %v396 = vpack.c.b16 %v380, %v378
    %413 = vmatprep.subr.bf16.mxu0 %v382
    %414 = vmatpush1.bf16.msra.mxu0 %v381
    %415 = vmatprep.subr.bf16.mxu0 %v384
    %416 = vmatpush1.bf16.msra.mxu0 %v383
    %417 = vmatprep.subr.bf16.mxu0 %v386
    %418 = vmatpush1.bf16.msra.mxu0 %v385
    %419 = vmatprep.subr.bf16.mxu0 %v388
    %420 = vmatpush1.bf16.msra.mxu0 %v387
    %421 = vmatprep.subr.bf16.mxu0 %v390
    %422 = vmatpush1.bf16.msra.mxu0 %v389
    %423 = vmatprep.subr.bf16.mxu0 %v392
    %424 = vmatpush1.bf16.msra.mxu0 %v391
    %425 = vmatprep.subr.bf16.mxu0 %v394
    %426 = vmatpush1.bf16.msra.mxu0 %v393
    %427 = vmatprep.subr.bf16.mxu0 %v396
    %428 = vmatpush1.bf16.msra.mxu0 %v395
    %429 = vmatprep.subr.bf16.mxu0 0
    %430 = vmatpush1.bf16.msra.mxu0 0
    %431 = vmatprep.subr.bf16.mxu0 0
    %432 = vmatpush1.bf16.msra.mxu0 0
    %433 = vmatprep.subr.bf16.mxu0 0
    %434 = vmatpush1.bf16.msra.mxu0 0
    %435 = vmatprep.subr.bf16.mxu0 0
    %436 = vmatpush1.bf16.msra.mxu0 0
    %437 = vmatprep.subr.bf16.mxu0 0
    %438 = vmatpush1.bf16.msra.mxu0 0
    %439 = vmatprep.subr.bf16.mxu0 0
    %440 = vmatpush1.bf16.msra.mxu0 0
    %441 = vmatprep.subr.bf16.mxu0 0
    %442 = vmatpush1.bf16.msra.mxu0 0
    %443 = vmatprep.subr.bf16.mxu0 0
    %444 = vmatpush1.bf16.msra.mxu0 0
    %445 = vmatprep.mubr.bf16.mxu0 0
    %446 = vmatmul.mubr.bf16.gmra.mrb[0].mxu0 %v179
    %v447 = vpop.f32.mrb[0].mxu0
    %v448 = vadd.f32 %v327, %v447
    %v449 = vpop.f32.mrb[0].mxu0
    %v450 = vadd.f32 %v329, %v449
    %v451 = vpop.f32.mrb[0].mxu0
    %v452 = vpop.f32.mrb[0].mxu0
    %453 = vdwg.mxu0
    %v454 = vld [vmem:[%s6] sm:$0x3]
    %v456 = vlaneseq
    %v457 = vshrl.u32 %v456, 7
    %v458 = vsub.s32 0, %v457
    %v459 = vrot.slane %v454, %v458
    %v460 = vlaneseq
    %v461 = vshrl.u32 %v460, 7
    %v462 = vsub.s32 1, %v461
    %v463 = vrot.slane %v454, %v462
    %v466 = vadd.f32 %v448, %v459
    %v467 = vadd.f32 %v450, %v463
    %v468 = vxor.u32 %v466, 2147483648
    %v469 = vxor.u32 %v467, 2147483648
    %v470 = vmul.f32 %v468, 1.442695
    %v471 = vpow.pop %v470
    %v472 = vmul.f32 %v469, 1.442695
    %v473 = vpow.pop %v472
    %v474 = vadd.f32 %v471, 1.0
    %v475 = vadd.f32 %v473, 1.0
    %v476 = vrcp.pop %v474
    %v477 = vmul.f32 1.0, %v476
    %v478 = vrcp.pop %v475
    %v479 = vmul.f32 1.0, %v478
    %v480 = vmul.f32 %v466, %v477
    %v481 = vmul.f32 %v467, %v479
    %v482 = vpack.c.bf16 %v480, %v480
    %v483 = vpack.c.bf16 %v481, %v481
    %v484 = vld [vmem:[#allocation13] sm:$0xff]
    %v485 = vld [vmem:[#allocation13 + $0x8] sm:$0xff]
    %v486 = vld [vmem:[#allocation13 + $0x10] sm:$0xff]
    %v487 = vld [vmem:[#allocation13 + $0x18] sm:$0xff]
    %v488 = vld [vmem:[#allocation13 + $0x20] sm:$0xff]
    %v489 = vld [vmem:[#allocation13 + $0x28] sm:$0xff]
    %v490 = vld [vmem:[#allocation13 + $0x30] sm:$0xff]
    %v491 = vld [vmem:[#allocation13 + $0x38] sm:$0xff]
    %v492 = vld [vmem:[#allocation13 + $0x40] sm:$0xff]
    %v493 = vld [vmem:[#allocation13 + $0x48] sm:$0xff]
    %v494 = vld [vmem:[#allocation13 + $0x50] sm:$0xff]
    %v495 = vld [vmem:[#allocation13 + $0x58] sm:$0xff]
    %v496 = vld [vmem:[#allocation13 + $0x60] sm:$0xff]
    %v497 = vld [vmem:[#allocation13 + $0x68] sm:$0xff]
    %v498 = vld [vmem:[#allocation13 + $0x70] sm:$0xff]
    %v499 = vld [vmem:[#allocation13 + $0x78] sm:$0xff]
    %v500 = vld [vmem:[#allocation13 + $0x80] sm:$0xff]
    %v501 = vld [vmem:[#allocation13 + $0x88] sm:$0xff]
    %v502 = vld [vmem:[#allocation13 + $0x90] sm:$0xff]
    %v503 = vld [vmem:[#allocation13 + $0x98] sm:$0xff]
    %v504 = vld [vmem:[#allocation13 + $0xa0] sm:$0xff]
    %v505 = vld [vmem:[#allocation13 + $0xa8] sm:$0xff]
    %v506 = vld [vmem:[#allocation13 + $0xb0] sm:$0xff]
    %v507 = vld [vmem:[#allocation13 + $0xb8] sm:$0xff]
    %v508 = vld [vmem:[#allocation13 + $0xc0] sm:$0xff]
    %v509 = vld [vmem:[#allocation13 + $0xc8] sm:$0xff]
    %v510 = vld [vmem:[#allocation13 + $0xd0] sm:$0xff]
    %v511 = vld [vmem:[#allocation13 + $0xd8] sm:$0xff]
    %v512 = vld [vmem:[#allocation13 + $0xe0] sm:$0xff]
    %v513 = vld [vmem:[#allocation13 + $0xe8] sm:$0xff]
    %v514 = vld [vmem:[#allocation13 + $0xf0] sm:$0xff]
    %v515 = vld [vmem:[#allocation13 + $0xf8] sm:$0xff]
    %v516 = vld [vmem:[%s8] sm:$0x3]
    %v518 = vlaneseq
    %v519 = vshrl.u32 %v518, 7
    %v520 = vsub.s32 0, %v519
    %v521 = vrot.slane %v516, %v520
    %v522 = vlaneseq
    %v523 = vshrl.u32 %v522, 7
    %v524 = vsub.s32 1, %v523
    %v525 = vrot.slane %v516, %v524
    %v560 = vunpack.c.l.b16 %v484
    %v561 = vunpack.c.h.b16 %v484
    %v562 = vunpack.c.l.b16 %v485
    %v563 = vunpack.c.h.b16 %v485
    %v564 = vunpack.c.l.b16 %v486
    %v565 = vunpack.c.h.b16 %v486
    %v566 = vunpack.c.l.b16 %v487
    %v567 = vunpack.c.h.b16 %v487
    %v568 = vunpack.c.l.b16 %v488
    %v569 = vunpack.c.h.b16 %v488
    %v570 = vunpack.c.l.b16 %v489
    %v571 = vunpack.c.h.b16 %v489
    %v572 = vunpack.c.l.b16 %v490
    %v573 = vunpack.c.h.b16 %v490
    %v574 = vunpack.c.l.b16 %v491
    %v575 = vunpack.c.h.b16 %v491
    %v576 = vunpack.c.l.b16 %v492
    %v577 = vunpack.c.h.b16 %v492
    %v578 = vunpack.c.l.b16 %v493
    %v579 = vunpack.c.h.b16 %v493
    %v580 = vunpack.c.l.b16 %v494
    %v581 = vunpack.c.h.b16 %v494
    %v582 = vunpack.c.l.b16 %v495
    %v583 = vunpack.c.h.b16 %v495
    %v584 = vunpack.c.l.b16 %v496
    %v585 = vunpack.c.h.b16 %v496
    %v586 = vunpack.c.l.b16 %v497
    %v587 = vunpack.c.h.b16 %v497
    %v588 = vunpack.c.l.b16 %v498
    %v589 = vunpack.c.h.b16 %v498
    %v590 = vunpack.c.l.b16 %v499
    %v591 = vunpack.c.h.b16 %v499
    %v592 = vunpack.c.l.b16 %v500
    %v593 = vunpack.c.h.b16 %v500
    %v594 = vunpack.c.l.b16 %v501
    %v595 = vunpack.c.h.b16 %v501
    %v596 = vunpack.c.l.b16 %v502
    %v597 = vunpack.c.h.b16 %v502
    %v598 = vunpack.c.l.b16 %v503
    %v599 = vunpack.c.h.b16 %v503
    %v600 = vunpack.c.l.b16 %v504
    %v601 = vunpack.c.h.b16 %v504
    %v602 = vunpack.c.l.b16 %v505
    %v603 = vunpack.c.h.b16 %v505
    %v604 = vunpack.c.l.b16 %v506
    %v605 = vunpack.c.h.b16 %v506
    %v606 = vunpack.c.l.b16 %v507
    %v607 = vunpack.c.h.b16 %v507
    %v608 = vunpack.c.l.b16 %v508
    %v609 = vunpack.c.h.b16 %v508
    %v610 = vunpack.c.l.b16 %v509
    %v611 = vunpack.c.h.b16 %v509
    %v612 = vunpack.c.l.b16 %v510
    %v613 = vunpack.c.h.b16 %v510
    %v614 = vunpack.c.l.b16 %v511
    %v615 = vunpack.c.h.b16 %v511
    %v616 = vunpack.c.l.b16 %v512
    %v617 = vunpack.c.h.b16 %v512
    %v618 = vunpack.c.l.b16 %v513
    %v619 = vunpack.c.h.b16 %v513
    %v620 = vunpack.c.l.b16 %v514
    %v621 = vunpack.c.h.b16 %v514
    %v622 = vunpack.c.l.b16 %v515
    %v623 = vunpack.c.h.b16 %v515
    %v624 = vpack.c.b16 %v562, %v560
    %v625 = vpack.c.b16 %v563, %v561
    %v626 = vpack.c.b16 %v566, %v564
    %v627 = vpack.c.b16 %v567, %v565
    %v628 = vpack.c.b16 %v570, %v568
    %v629 = vpack.c.b16 %v571, %v569
    %v630 = vpack.c.b16 %v574, %v572
    %v631 = vpack.c.b16 %v575, %v573
    %v632 = vpack.c.b16 %v578, %v576
    %v633 = vpack.c.b16 %v579, %v577
    %v634 = vpack.c.b16 %v582, %v580
    %v635 = vpack.c.b16 %v583, %v581
    %v636 = vpack.c.b16 %v586, %v584
    %v637 = vpack.c.b16 %v587, %v585
    %v638 = vpack.c.b16 %v590, %v588
    %v639 = vpack.c.b16 %v591, %v589
    %v640 = vpack.c.b16 %v594, %v592
    %v641 = vpack.c.b16 %v595, %v593
    %v642 = vpack.c.b16 %v598, %v596
    %v643 = vpack.c.b16 %v599, %v597
    %v644 = vpack.c.b16 %v602, %v600
    %v645 = vpack.c.b16 %v603, %v601
    %v646 = vpack.c.b16 %v606, %v604
    %v647 = vpack.c.b16 %v607, %v605
    %v648 = vpack.c.b16 %v610, %v608
    %v649 = vpack.c.b16 %v611, %v609
    %v650 = vpack.c.b16 %v614, %v612
    %v651 = vpack.c.b16 %v615, %v613
    %v652 = vpack.c.b16 %v618, %v616
    %v653 = vpack.c.b16 %v619, %v617
    %v654 = vpack.c.b16 %v622, %v620
    %v655 = vpack.c.b16 %v623, %v621
    %688 = vmatprep.subr.bf16.mxu0 %v625
    %689 = vmatpush1.bf16.msra.mxu0 %v624
    %690 = vmatprep.subr.bf16.mxu0 %v627
    %691 = vmatpush1.bf16.msra.mxu0 %v626
    %692 = vmatprep.subr.bf16.mxu0 %v629
    %693 = vmatpush1.bf16.msra.mxu0 %v628
    %694 = vmatprep.subr.bf16.mxu0 %v631
    %695 = vmatpush1.bf16.msra.mxu0 %v630
    %696 = vmatprep.subr.bf16.mxu0 %v633
    %697 = vmatpush1.bf16.msra.mxu0 %v632
    %698 = vmatprep.subr.bf16.mxu0 %v635
    %699 = vmatpush1.bf16.msra.mxu0 %v634
    %700 = vmatprep.subr.bf16.mxu0 %v637
    %701 = vmatpush1.bf16.msra.mxu0 %v636
    %702 = vmatprep.subr.bf16.mxu0 %v639
    %703 = vmatpush1.bf16.msra.mxu0 %v638
    %704 = vmatprep.subr.bf16.mxu0 %v641
    %705 = vmatpush1.bf16.msra.mxu0 %v640
    %706 = vmatprep.subr.bf16.mxu0 %v643
    %707 = vmatpush1.bf16.msra.mxu0 %v642
    %708 = vmatprep.subr.bf16.mxu0 %v645
    %709 = vmatpush1.bf16.msra.mxu0 %v644
    %710 = vmatprep.subr.bf16.mxu0 %v647
    %711 = vmatpush1.bf16.msra.mxu0 %v646
    %712 = vmatprep.subr.bf16.mxu0 %v649
    %713 = vmatpush1.bf16.msra.mxu0 %v648
    %714 = vmatprep.subr.bf16.mxu0 %v651
    %715 = vmatpush1.bf16.msra.mxu0 %v650
    %716 = vmatprep.subr.bf16.mxu0 %v653
    %717 = vmatpush1.bf16.msra.mxu0 %v652
    %718 = vmatprep.subr.bf16.mxu0 %v655
    %719 = vmatpush1.bf16.msra.mxu0 %v654
    %720 = vmatprep.mubr.bf16.mxu0 %v483
    %721 = vmatmul.mubr.bf16.gmra.mrb[0].mxu0 %v482
    %v722 = vpop.f32.mrb[0].mxu0
    %v723 = vadd.f32 %v521, %v722
    %v724 = vpop.f32.mrb[0].mxu0
    %v725 = vadd.f32 %v525, %v724
    %v726 = vpop.f32.mrb[0].mxu0
    %v727 = vpop.f32.mrb[0].mxu0
    %728 = vdwg.mxu0
    %v729 = vxor.u32 %v723, 2147483648
    %v730 = vxor.u32 %v725, 2147483648
    %v731 = vmul.f32 %v729, 1.442695
    %v732 = vpow.pop %v731
    %v733 = vmul.f32 %v730, 1.442695
    %v734 = vpow.pop %v733
    %v735 = vadd.f32 %v732, 1.0
    %v736 = vadd.f32 %v734, 1.0
    %v737 = vrcp.pop %v735
    %v738 = vmul.f32 1.0, %v737
    %v739 = vrcp.pop %v736
    %v740 = vmul.f32 1.0, %v739
    %v741 = vmul.f32 %v723, %v738
    %v742 = vmul.f32 %v725, %v740
    %v743 = vpack.c.bf16 %v741, %v741
    %v744 = vpack.c.bf16 %v742, %v742
    %v745 = vld [vmem:[#allocation14] sm:$0xf]
    %v746 = vld [vmem:[#allocation14 + $0x4] sm:$0xf]
    %v747 = vld [vmem:[#allocation14 + $0x8] sm:$0xf]
    %v748 = vld [vmem:[#allocation14 + $0xc] sm:$0xf]
    %v749 = vld [vmem:[#allocation14 + $0x10] sm:$0xf]
    %v750 = vld [vmem:[#allocation14 + $0x14] sm:$0xf]
    %v751 = vld [vmem:[#allocation14 + $0x18] sm:$0xf]
    %v752 = vld [vmem:[#allocation14 + $0x1c] sm:$0xf]
    %v753 = vld [vmem:[#allocation14 + $0x20] sm:$0xf]
    %v754 = vld [vmem:[#allocation14 + $0x24] sm:$0xf]
    %v755 = vld [vmem:[#allocation14 + $0x28] sm:$0xf]
    %v756 = vld [vmem:[#allocation14 + $0x2c] sm:$0xf]
    %v757 = vld [vmem:[#allocation14 + $0x30] sm:$0xf]
    %v758 = vld [vmem:[#allocation14 + $0x34] sm:$0xf]
    %v759 = vld [vmem:[#allocation14 + $0x38] sm:$0xf]
    %v760 = vld [vmem:[#allocation14 + $0x3c] sm:$0xf]
    %v761 = vld [vmem:[#allocation14 + $0x40] sm:$0xf]
    %v762 = vld [vmem:[#allocation14 + $0x44] sm:$0xf]
    %v763 = vld [vmem:[#allocation14 + $0x48] sm:$0xf]
    %v764 = vld [vmem:[#allocation14 + $0x4c] sm:$0xf]
    %v765 = vld [vmem:[#allocation14 + $0x50] sm:$0xf]
    %v766 = vld [vmem:[#allocation14 + $0x54] sm:$0xf]
    %v767 = vld [vmem:[#allocation14 + $0x58] sm:$0xf]
    %v768 = vld [vmem:[#allocation14 + $0x5c] sm:$0xf]
    %v769 = vld [vmem:[#allocation14 + $0x60] sm:$0xf]
    %v770 = vld [vmem:[#allocation14 + $0x64] sm:$0xf]
    %v771 = vld [vmem:[#allocation14 + $0x68] sm:$0xf]
    %v772 = vld [vmem:[#allocation14 + $0x6c] sm:$0xf]
    %v773 = vld [vmem:[#allocation14 + $0x70] sm:$0xf]
    %v774 = vld [vmem:[#allocation14 + $0x74] sm:$0xf]
    %v775 = vld [vmem:[#allocation14 + $0x78] sm:$0xf]
    %v776 = vld [vmem:[#allocation14 + $0x7c] sm:$0xf]
    %v809 = vunpack.c.l.b16 %v745
    %v810 = vunpack.c.l.b16 %v746
    %v811 = vunpack.c.l.b16 %v747
    %v812 = vunpack.c.l.b16 %v748
    %v813 = vunpack.c.l.b16 %v749
    %v814 = vunpack.c.l.b16 %v750
    %v815 = vunpack.c.l.b16 %v751
    %v816 = vunpack.c.l.b16 %v752
    %v817 = vunpack.c.l.b16 %v753
    %v818 = vunpack.c.l.b16 %v754
    %v819 = vunpack.c.l.b16 %v755
    %v820 = vunpack.c.l.b16 %v756
    %v821 = vunpack.c.l.b16 %v757
    %v822 = vunpack.c.l.b16 %v758
    %v823 = vunpack.c.l.b16 %v759
    %v824 = vunpack.c.l.b16 %v760
    %v825 = vunpack.c.l.b16 %v761
    %v826 = vunpack.c.l.b16 %v762
    %v827 = vunpack.c.l.b16 %v763
    %v828 = vunpack.c.l.b16 %v764
    %v829 = vunpack.c.l.b16 %v765
    %v830 = vunpack.c.l.b16 %v766
    %v831 = vunpack.c.l.b16 %v767
    %v832 = vunpack.c.l.b16 %v768
    %v833 = vunpack.c.l.b16 %v769
    %v834 = vunpack.c.l.b16 %v770
    %v835 = vunpack.c.l.b16 %v771
    %v836 = vunpack.c.l.b16 %v772
    %v837 = vunpack.c.l.b16 %v773
    %v838 = vunpack.c.l.b16 %v774
    %v839 = vunpack.c.l.b16 %v775
    %v840 = vunpack.c.l.b16 %v776
    %v841 = vpack.c.b16 %v810, %v809
    %v842 = vpack.c.b16 %v812, %v811
    %v843 = vpack.c.b16 %v814, %v813
    %v844 = vpack.c.b16 %v816, %v815
    %v845 = vpack.c.b16 %v818, %v817
    %v846 = vpack.c.b16 %v820, %v819
    %v847 = vpack.c.b16 %v822, %v821
    %v848 = vpack.c.b16 %v824, %v823
    %v849 = vpack.c.b16 %v826, %v825
    %v850 = vpack.c.b16 %v828, %v827
    %v851 = vpack.c.b16 %v830, %v829
    %v852 = vpack.c.b16 %v832, %v831
    %v853 = vpack.c.b16 %v834, %v833
    %v854 = vpack.c.b16 %v836, %v835
    %v855 = vpack.c.b16 %v838, %v837
    %v856 = vpack.c.b16 %v840, %v839
    %873 = vmatprep.subr.bf16.mxu0 0
    %874 = vmatpush1.bf16.msra.mxu0 %v841
    %875 = vmatprep.subr.bf16.mxu0 0
    %876 = vmatpush1.bf16.msra.mxu0 %v842
    %877 = vmatprep.subr.bf16.mxu0 0
    %878 = vmatpush1.bf16.msra.mxu0 %v843
    %879 = vmatprep.subr.bf16.mxu0 0
    %880 = vmatpush1.bf16.msra.mxu0 %v844
    %881 = vmatprep.subr.bf16.mxu0 0
    %882 = vmatpush1.bf16.msra.mxu0 %v845
    %883 = vmatprep.subr.bf16.mxu0 0
    %884 = vmatpush1.bf16.msra.mxu0 %v846
    %885 = vmatprep.subr.bf16.mxu0 0
    %886 = vmatpush1.bf16.msra.mxu0 %v847
    %887 = vmatprep.subr.bf16.mxu0 0
    %888 = vmatpush1.bf16.msra.mxu0 %v848
    %889 = vmatprep.subr.bf16.mxu0 0
    %890 = vmatpush1.bf16.msra.mxu0 %v849
    %891 = vmatprep.subr.bf16.mxu0 0
    %892 = vmatpush1.bf16.msra.mxu0 %v850
    %893 = vmatprep.subr.bf16.mxu0 0
    %894 = vmatpush1.bf16.msra.mxu0 %v851
    %895 = vmatprep.subr.bf16.mxu0 0
    %896 = vmatpush1.bf16.msra.mxu0 %v852
    %897 = vmatprep.subr.bf16.mxu0 0
    %898 = vmatpush1.bf16.msra.mxu0 %v853
    %899 = vmatprep.subr.bf16.mxu0 0
    %900 = vmatpush1.bf16.msra.mxu0 %v854
    %901 = vmatprep.subr.bf16.mxu0 0
    %902 = vmatpush1.bf16.msra.mxu0 %v855
    %903 = vmatprep.subr.bf16.mxu0 0
    %904 = vmatpush1.bf16.msra.mxu0 %v856
    %905 = vmatprep.mubr.bf16.mxu0 %v744
    %906 = vmatmul.mubr.bf16.gmra.mrb[0].mxu0 %v743
    %v907 = vpop.f32.mrb[0].mxu0
    %v908 = vadd.f32 0.0, %v907
    %v909 = vpop.f32.mrb[0].mxu0
    %v910 = vpop.f32.mrb[0].mxu0
    %v911 = vpop.f32.mrb[0].mxu0
    %912 = vdwg.mxu0
    %v913 = vadd.f32 %v143, %v908
    %914 = vadd.xlane.f32.xlu0 %v913
    %v915 = vpop.xlane.xlu0 %914
    %v916 = vmul.f32 %v915, %v146
    %v917 = vsub.f32 %v913, %v916
    %v918 = vmul.f32 %v917, %v917
    %919 = vadd.xlane.f32.xlu0 %v918
    %v920 = vpop.xlane.xlu0 %919
    %v921 = vmul.f32 %v920, %v146
    %v922 = vadd.f32 %v921, 1e-05
    %v923 = vrsqrt.pop %v922
    %v924 = vmul.f32 %v917, %v923
    %s925 = scalar_lea.vmem [#allocation7], 1
    %v926 = vld [vmem:[%s925] sm:$0x1]
    %v928 = vlaneseq
    %v929 = vshrl.u32 %v928, 7
    %v930 = vsub.s32 0, %v929
    %v931 = vrot.slane %v926, %v930
    %v933 = vmul.f32 %v924, %v931
    %s934 = scalar_lea.vmem [#allocation8], 1
    %v935 = vld [vmem:[%s934] sm:$0x1]
    %v937 = vlaneseq
    %v938 = vshrl.u32 %v937, 7
    %v939 = vsub.s32 0, %v938
    %v940 = vrot.slane %v935, %v939
    %v942 = vadd.f32 %v933, %v940
    %v943 = vxor.u32 %v942, 2147483648
    %v944 = vmul.f32 %v943, 1.442695
    %v945 = vpow.pop %v944
    %v946 = vadd.f32 %v945, 1.0
    %v947 = vrcp.pop %v946
    %v948 = vmul.f32 1.0, %v947
    %v949 = vmul.f32 %v942, %v948
    %v950 = vpack.c.bf16 %v949, %v949
    %s951 = scalar_lea.vmem [#allocation10], 128
    %v952 = vld [vmem:[%s951] sm:$0xff]
    %v953 = vld [vmem:[%s951 + $0x8] sm:$0xff]
    %v954 = vld [vmem:[%s951 + $0x10] sm:$0xff]
    %v955 = vld [vmem:[%s951 + $0x18] sm:$0xff]
    %v956 = vld [vmem:[%s951 + $0x20] sm:$0xff]
    %v957 = vld [vmem:[%s951 + $0x28] sm:$0xff]
    %v958 = vld [vmem:[%s951 + $0x30] sm:$0xff]
    %v959 = vld [vmem:[%s951 + $0x38] sm:$0xff]
    %v960 = vld [vmem:[%s951 + $0x40] sm:$0xff]
    %v961 = vld [vmem:[%s951 + $0x48] sm:$0xff]
    %v962 = vld [vmem:[%s951 + $0x50] sm:$0xff]
    %v963 = vld [vmem:[%s951 + $0x58] sm:$0xff]
    %v964 = vld [vmem:[%s951 + $0x60] sm:$0xff]
    %v965 = vld [vmem:[%s951 + $0x68] sm:$0xff]
    %v966 = vld [vmem:[%s951 + $0x70] sm:$0xff]
    %v967 = vld [vmem:[%s951 + $0x78] sm:$0xff]
    %s968 = scalar_lea.vmem [#allocation11], 128
    %v969 = vld [vmem:[%s968] sm:$0xff]
    %v970 = vld [vmem:[%s968 + $0x8] sm:$0xff]
    %v971 = vld [vmem:[%s968 + $0x10] sm:$0xff]
    %v972 = vld [vmem:[%s968 + $0x18] sm:$0xff]
    %v973 = vld [vmem:[%s968 + $0x20] sm:$0xff]
    %v974 = vld [vmem:[%s968 + $0x28] sm:$0xff]
    %v975 = vld [vmem:[%s968 + $0x30] sm:$0xff]
    %v976 = vld [vmem:[%s968 + $0x38] sm:$0xff]
    %v977 = vld [vmem:[%s968 + $0x40] sm:$0xff]
    %v978 = vld [vmem:[%s968 + $0x48] sm:$0xff]
    %v979 = vld [vmem:[%s968 + $0x50] sm:$0xff]
    %v980 = vld [vmem:[%s968 + $0x58] sm:$0xff]
    %v981 = vld [vmem:[%s968 + $0x60] sm:$0xff]
    %v982 = vld [vmem:[%s968 + $0x68] sm:$0xff]
    %v983 = vld [vmem:[%s968 + $0x70] sm:$0xff]
    %v984 = vld [vmem:[%s968 + $0x78] sm:$0xff]
    %v1001 = vunpack.c.l.b16 %v969
    %v1002 = vunpack.c.h.b16 %v969
    %v1003 = vunpack.c.l.b16 %v970
    %v1004 = vunpack.c.h.b16 %v970
    %v1005 = vunpack.c.l.b16 %v971
    %v1006 = vunpack.c.h.b16 %v971
    %v1007 = vunpack.c.l.b16 %v972
    %v1008 = vunpack.c.h.b16 %v972
    %v1009 = vunpack.c.l.b16 %v973
    %v1010 = vunpack.c.h.b16 %v973
    %v1011 = vunpack.c.l.b16 %v974
    %v1012 = vunpack.c.h.b16 %v974
    %v1013 = vunpack.c.l.b16 %v975
    %v1014 = vunpack.c.h.b16 %v975
    %v1015 = vunpack.c.l.b16 %v976
    %v1016 = vunpack.c.h.b16 %v976
    %v1017 = vunpack.c.l.b16 %v977
    %v1018 = vunpack.c.h.b16 %v977
    %v1019 = vunpack.c.l.b16 %v978
    %v1020 = vunpack.c.h.b16 %v978
    %v1021 = vunpack.c.l.b16 %v979
    %v1022 = vunpack.c.h.b16 %v979
    %v1023 = vunpack.c.l.b16 %v980
    %v1024 = vunpack.c.h.b16 %v980
    %v1025 = vunpack.c.l.b16 %v981
    %v1026 = vunpack.c.h.b16 %v981
    %v1027 = vunpack.c.l.b16 %v982
    %v1028 = vunpack.c.h.b16 %v982
    %v1029 = vunpack.c.l.b16 %v983
    %v1030 = vunpack.c.h.b16 %v983
    %v1031 = vunpack.c.l.b16 %v984
    %v1032 = vunpack.c.h.b16 %v984
    %v1033 = vpack.c.b16 %v1003, %v1001
    %v1034 = vpack.c.b16 %v1004, %v1002
    %v1035 = vpack.c.b16 %v1007, %v1005
    %v1036 = vpack.c.b16 %v1008, %v1006
    %v1037 = vpack.c.b16 %v1011, %v1009
    %v1038 = vpack.c.b16 %v1012, %v1010
    %v1039 = vpack.c.b16 %v1015, %v1013
    %v1040 = vpack.c.b16 %v1016, %v1014
    %v1041 = vpack.c.b16 %v1019, %v1017
    %v1042 = vpack.c.b16 %v1020, %v1018
    %v1043 = vpack.c.b16 %v1023, %v1021
    %v1044 = vpack.c.b16 %v1024, %v1022
    %v1045 = vpack.c.b16 %v1027, %v1025
    %v1046 = vpack.c.b16 %v1028, %v1026
    %v1047 = vpack.c.b16 %v1031, %v1029
    %v1048 = vpack.c.b16 %v1032, %v1030
    %1065 = vmatprep.subr.bf16.mxu0 %v1034
    %1066 = vmatpush1.bf16.msra.mxu0 %v1033
    %1067 = vmatprep.subr.bf16.mxu0 %v1036
    %1068 = vmatpush1.bf16.msra.mxu0 %v1035
    %1069 = vmatprep.subr.bf16.mxu0 %v1038
    %1070 = vmatpush1.bf16.msra.mxu0 %v1037
    %1071 = vmatprep.subr.bf16.mxu0 %v1040
    %1072 = vmatpush1.bf16.msra.mxu0 %v1039
    %1073 = vmatprep.subr.bf16.mxu0 %v1042
    %1074 = vmatpush1.bf16.msra.mxu0 %v1041
    %1075 = vmatprep.subr.bf16.mxu0 %v1044
    %1076 = vmatpush1.bf16.msra.mxu0 %v1043
    %1077 = vmatprep.subr.bf16.mxu0 %v1046
    %1078 = vmatpush1.bf16.msra.mxu0 %v1045
    %1079 = vmatprep.subr.bf16.mxu0 %v1048
    %1080 = vmatpush1.bf16.msra.mxu0 %v1047
    %1081 = vmatprep.subr.bf16.mxu0 0
    %1082 = vmatpush1.bf16.msra.mxu0 0
    %1083 = vmatprep.subr.bf16.mxu0 0
    %1084 = vmatpush1.bf16.msra.mxu0 0
    %1085 = vmatprep.subr.bf16.mxu0 0
    %1086 = vmatpush1.bf16.msra.mxu0 0
    %1087 = vmatprep.subr.bf16.mxu0 0
    %1088 = vmatpush1.bf16.msra.mxu0 0
    %1089 = vmatprep.subr.bf16.mxu0 0
    %1090 = vmatpush1.bf16.msra.mxu0 0
    %1091 = vmatprep.subr.bf16.mxu0 0
    %1092 = vmatpush1.bf16.msra.mxu0 0
    %1093 = vmatprep.subr.bf16.mxu0 0
    %1094 = vmatpush1.bf16.msra.mxu0 0
    %1095 = vmatprep.subr.bf16.mxu0 0
    %1096 = vmatpush1.bf16.msra.mxu0 0
    %1097 = vmatprep.mubr.bf16.mxu0 0
    %1098 = vmatmul.mubr.bf16.gmra.mrb[0].mxu0 %v142
    %v1099 = vpop.f32.mrb[0].mxu0
    %v1100 = vadd.f32 0.0, %v1099
    %v1101 = vpop.f32.mrb[0].mxu0
    %v1102 = vadd.f32 0.0, %v1101
    %v1103 = vpop.f32.mrb[0].mxu0
    %v1104 = vpop.f32.mrb[0].mxu0
    %1105 = vdwg.mxu0
    %v1122 = vunpack.c.l.b16 %v952
    %v1123 = vunpack.c.h.b16 %v952
    %v1124 = vunpack.c.l.b16 %v953
    %v1125 = vunpack.c.h.b16 %v953
    %v1126 = vunpack.c.l.b16 %v954
    %v1127 = vunpack.c.h.b16 %v954
    %v1128 = vunpack.c.l.b16 %v955
    %v1129 = vunpack.c.h.b16 %v955
    %v1130 = vunpack.c.l.b16 %v956
    %v1131 = vunpack.c.h.b16 %v956
    %v1132 = vunpack.c.l.b16 %v957
    %v1133 = vunpack.c.h.b16 %v957
    %v1134 = vunpack.c.l.b16 %v958
    %v1135 = vunpack.c.h.b16 %v958
    %v1136 = vunpack.c.l.b16 %v959
    %v1137 = vunpack.c.h.b16 %v959
    %v1138 = vunpack.c.l.b16 %v960
    %v1139 = vunpack.c.h.b16 %v960
    %v1140 = vunpack.c.l.b16 %v961
    %v1141 = vunpack.c.h.b16 %v961
    %v1142 = vunpack.c.l.b16 %v962
    %v1143 = vunpack.c.h.b16 %v962
    %v1144 = vunpack.c.l.b16 %v963
    %v1145 = vunpack.c.h.b16 %v963
    %v1146 = vunpack.c.l.b16 %v964
    %v1147 = vunpack.c.h.b16 %v964
    %v1148 = vunpack.c.l.b16 %v965
    %v1149 = vunpack.c.h.b16 %v965
    %v1150 = vunpack.c.l.b16 %v966
    %v1151 = vunpack.c.h.b16 %v966
    %v1152 = vunpack.c.l.b16 %v967
    %v1153 = vunpack.c.h.b16 %v967
    %v1154 = vpack.c.b16 %v1124, %v1122
    %v1155 = vpack.c.b16 %v1125, %v1123
    %v1156 = vpack.c.b16 %v1128, %v1126
    %v1157 = vpack.c.b16 %v1129, %v1127
    %v1158 = vpack.c.b16 %v1132, %v1130
    %v1159 = vpack.c.b16 %v1133, %v1131
    %v1160 = vpack.c.b16 %v1136, %v1134
    %v1161 = vpack.c.b16 %v1137, %v1135
    %v1162 = vpack.c.b16 %v1140, %v1138
    %v1163 = vpack.c.b16 %v1141, %v1139
    %v1164 = vpack.c.b16 %v1144, %v1142
    %v1165 = vpack.c.b16 %v1145, %v1143
    %v1166 = vpack.c.b16 %v1148, %v1146
    %v1167 = vpack.c.b16 %v1149, %v1147
    %v1168 = vpack.c.b16 %v1152, %v1150
    %v1169 = vpack.c.b16 %v1153, %v1151
    %1186 = vmatprep.subr.bf16.mxu0 %v1155
    %1187 = vmatpush1.bf16.msra.mxu0 %v1154
    %1188 = vmatprep.subr.bf16.mxu0 %v1157
    %1189 = vmatpush1.bf16.msra.mxu0 %v1156
    %1190 = vmatprep.subr.bf16.mxu0 %v1159
    %1191 = vmatpush1.bf16.msra.mxu0 %v1158
    %1192 = vmatprep.subr.bf16.mxu0 %v1161
    %1193 = vmatpush1.bf16.msra.mxu0 %v1160
    %1194 = vmatprep.subr.bf16.mxu0 %v1163
    %1195 = vmatpush1.bf16.msra.mxu0 %v1162
    %1196 = vmatprep.subr.bf16.mxu0 %v1165
    %1197 = vmatpush1.bf16.msra.mxu0 %v1164
    %1198 = vmatprep.subr.bf16.mxu0 %v1167
    %1199 = vmatpush1.bf16.msra.mxu0 %v1166
    %1200 = vmatprep.subr.bf16.mxu0 %v1169
    %1201 = vmatpush1.bf16.msra.mxu0 %v1168
    %1202 = vmatprep.subr.bf16.mxu0 0
    %1203 = vmatpush1.bf16.msra.mxu0 0
    %1204 = vmatprep.subr.bf16.mxu0 0
    %1205 = vmatpush1.bf16.msra.mxu0 0
    %1206 = vmatprep.subr.bf16.mxu0 0
    %1207 = vmatpush1.bf16.msra.mxu0 0
    %1208 = vmatprep.subr.bf16.mxu0 0
    %1209 = vmatpush1.bf16.msra.mxu0 0
    %1210 = vmatprep.subr.bf16.mxu0 0
    %1211 = vmatpush1.bf16.msra.mxu0 0
    %1212 = vmatprep.subr.bf16.mxu0 0
    %1213 = vmatpush1.bf16.msra.mxu0 0
    %1214 = vmatprep.subr.bf16.mxu0 0
    %1215 = vmatpush1.bf16.msra.mxu0 0
    %1216 = vmatprep.subr.bf16.mxu0 0
    %1217 = vmatpush1.bf16.msra.mxu0 0
    %1218 = vmatprep.mubr.bf16.mxu0 0
    %1219 = vmatmul.mubr.bf16.gmra.mrb[0].mxu0 %v950
    %v1220 = vpop.f32.mrb[0].mxu0
    %v1221 = vadd.f32 %v1100, %v1220
    %v1222 = vpop.f32.mrb[0].mxu0
    %v1223 = vadd.f32 %v1102, %v1222
    %v1224 = vpop.f32.mrb[0].mxu0
    %v1225 = vpop.f32.mrb[0].mxu0
    %1226 = vdwg.mxu0
    %s1227 = scalar_lea.vmem %s6, 2
    %v1228 = vld [vmem:[%s1227] sm:$0x3]
    %v1230 = vlaneseq
    %v1231 = vshrl.u32 %v1230, 7
    %v1232 = vsub.s32 0, %v1231
    %v1233 = vrot.slane %v1228, %v1232
    %v1234 = vlaneseq
    %v1235 = vshrl.u32 %v1234, 7
    %v1236 = vsub.s32 1, %v1235
    %v1237 = vrot.slane %v1228, %v1236
    %v1240 = vadd.f32 %v1221, %v1233
    %v1241 = vadd.f32 %v1223, %v1237
    %v1242 = vxor.u32 %v1240, 2147483648
    %v1243 = vxor.u32 %v1241, 2147483648
    %v1244 = vmul.f32 %v1242, 1.442695
    %v1245 = vpow.pop %v1244
    %v1246 = vmul.f32 %v1243, 1.442695
    %v1247 = vpow.pop %v1246
    %v1248 = vadd.f32 %v1245, 1.0
    %v1249 = vadd.f32 %v1247, 1.0
    %v1250 = vrcp.pop %v1248
    %v1251 = vmul.f32 1.0, %v1250
    %v1252 = vrcp.pop %v1249
    %v1253 = vmul.f32 1.0, %v1252
    %v1254 = vmul.f32 %v1240, %v1251
    %v1255 = vmul.f32 %v1241, %v1253
    %v1256 = vpack.c.bf16 %v1254, %v1254
    %v1257 = vpack.c.bf16 %v1255, %v1255
    %s1258 = scalar_lea.vmem [#allocation13], 256
    %v1259 = vld [vmem:[%s1258] sm:$0xff]
    %v1260 = vld [vmem:[%s1258 + $0x8] sm:$0xff]
    %v1261 = vld [vmem:[%s1258 + $0x10] sm:$0xff]
    %v1262 = vld [vmem:[%s1258 + $0x18] sm:$0xff]
    %v1263 = vld [vmem:[%s1258 + $0x20] sm:$0xff]
    %v1264 = vld [vmem:[%s1258 + $0x28] sm:$0xff]
    %v1265 = vld [vmem:[%s1258 + $0x30] sm:$0xff]
    %v1266 = vld [vmem:[%s1258 + $0x38] sm:$0xff]
    %v1267 = vld [vmem:[%s1258 + $0x40] sm:$0xff]
    %v1268 = vld [vmem:[%s1258 + $0x48] sm:$0xff]
    %v1269 = vld [vmem:[%s1258 + $0x50] sm:$0xff]
    %v1270 = vld [vmem:[%s1258 + $0x58] sm:$0xff]
    %v1271 = vld [vmem:[%s1258 + $0x60] sm:$0xff]
    %v1272 = vld [vmem:[%s1258 + $0x68] sm:$0xff]
    %v1273 = vld [vmem:[%s1258 + $0x70] sm:$0xff]
    %v1274 = vld [vmem:[%s1258 + $0x78] sm:$0xff]
    %v1275 = vld [vmem:[%s1258 + $0x80] sm:$0xff]
    %v1276 = vld [vmem:[%s1258 + $0x88] sm:$0xff]
    %v1277 = vld [vmem:[%s1258 + $0x90] sm:$0xff]
    %v1278 = vld [vmem:[%s1258 + $0x98] sm:$0xff]
    %v1279 = vld [vmem:[%s1258 + $0xa0] sm:$0xff]
    %v1280 = vld [vmem:[%s1258 + $0xa8] sm:$0xff]
    %v1281 = vld [vmem:[%s1258 + $0xb0] sm:$0xff]
    %v1282 = vld [vmem:[%s1258 + $0xb8] sm:$0xff]
    %v1283 = vld [vmem:[%s1258 + $0xc0] sm:$0xff]
    %v1284 = vld [vmem:[%s1258 + $0xc8] sm:$0xff]
    %v1285 = vld [vmem:[%s1258 + $0xd0] sm:$0xff]
    %v1286 = vld [vmem:[%s1258 + $0xd8] sm:$0xff]
    %v1287 = vld [vmem:[%s1258 + $0xe0] sm:$0xff]
    %v1288 = vld [vmem:[%s1258 + $0xe8] sm:$0xff]
    %v1289 = vld [vmem:[%s1258 + $0xf0] sm:$0xff]
    %v1290 = vld [vmem:[%s1258 + $0xf8] sm:$0xff]
    %s1291 = scalar_lea.vmem %s8, 2
    %v1292 = vld [vmem:[%s1291] sm:$0x3]
    %v1294 = vlaneseq
    %v1295 = vshrl.u32 %v1294, 7
    %v1296 = vsub.s32 0, %v1295
    %v1297 = vrot.slane %v1292, %v1296
    %v1298 = vlaneseq
    %v1299 = vshrl.u32 %v1298, 7
    %v1300 = vsub.s32 1, %v1299
    %v1301 = vrot.slane %v1292, %v1300
    %v1336 = vunpack.c.l.b16 %v1259
    %v1337 = vunpack.c.h.b16 %v1259
    %v1338 = vunpack.c.l.b16 %v1260
    %v1339 = vunpack.c.h.b16 %v1260
    %v1340 = vunpack.c.l.b16 %v1261
    %v1341 = vunpack.c.h.b16 %v1261
    %v1342 = vunpack.c.l.b16 %v1262
    %v1343 = vunpack.c.h.b16 %v1262
    %v1344 = vunpack.c.l.b16 %v1263
    %v1345 = vunpack.c.h.b16 %v1263
    %v1346 = vunpack.c.l.b16 %v1264
    %v1347 = vunpack.c.h.b16 %v1264
    %v1348 = vunpack.c.l.b16 %v1265
    %v1349 = vunpack.c.h.b16 %v1265
    %v1350 = vunpack.c.l.b16 %v1266
    %v1351 = vunpack.c.h.b16 %v1266
    %v1352 = vunpack.c.l.b16 %v1267
    %v1353 = vunpack.c.h.b16 %v1267
    %v1354 = vunpack.c.l.b16 %v1268
    %v1355 = vunpack.c.h.b16 %v1268
    %v1356 = vunpack.c.l.b16 %v1269
    %v1357 = vunpack.c.h.b16 %v1269
    %v1358 = vunpack.c.l.b16 %v1270
    %v1359 = vunpack.c.h.b16 %v1270
    %v1360 = vunpack.c.l.b16 %v1271
    %v1361 = vunpack.c.h.b16 %v1271
    %v1362 = vunpack.c.l.b16 %v1272
    %v1363 = vunpack.c.h.b16 %v1272
    %v1364 = vunpack.c.l.b16 %v1273
    %v1365 = vunpack.c.h.b16 %v1273
    %v1366 = vunpack.c.l.b16 %v1274
    %v1367 = vunpack.c.h.b16 %v1274
    %v1368 = vunpack.c.l.b16 %v1275
    %v1369 = vunpack.c.h.b16 %v1275
    %v1370 = vunpack.c.l.b16 %v1276
    %v1371 = vunpack.c.h.b16 %v1276
    %v1372 = vunpack.c.l.b16 %v1277
    %v1373 = vunpack.c.h.b16 %v1277
    %v1374 = vunpack.c.l.b16 %v1278
    %v1375 = vunpack.c.h.b16 %v1278
    %v1376 = vunpack.c.l.b16 %v1279
    %v1377 = vunpack.c.h.b16 %v1279
    %v1378 = vunpack.c.l.b16 %v1280
    %v1379 = vunpack.c.h.b16 %v1280
    %v1380 = vunpack.c.l.b16 %v1281
    %v1381 = vunpack.c.h.b16 %v1281
    %v1382 = vunpack.c.l.b16 %v1282
    %v1383 = vunpack.c.h.b16 %v1282
    %v1384 = vunpack.c.l.b16 %v1283
    %v1385 = vunpack.c.h.b16 %v1283
    %v1386 = vunpack.c.l.b16 %v1284
    %v1387 = vunpack.c.h.b16 %v1284
    %v1388 = vunpack.c.l.b16 %v1285
    %v1389 = vunpack.c.h.b16 %v1285
    %v1390 = vunpack.c.l.b16 %v1286
    %v1391 = vunpack.c.h.b16 %v1286
    %v1392 = vunpack.c.l.b16 %v1287
    %v1393 = vunpack.c.h.b16 %v1287
    %v1394 = vunpack.c.l.b16 %v1288
    %v1395 = vunpack.c.h.b16 %v1288
    %v1396 = vunpack.c.l.b16 %v1289
    %v1397 = vunpack.c.h.b16 %v1289
    %v1398 = vunpack.c.l.b16 %v1290
    %v1399 = vunpack.c.h.b16 %v1290
    %v1400 = vpack.c.b16 %v1338, %v1336
    %v1401 = vpack.c.b16 %v1339, %v1337
    %v1402 = vpack.c.b16 %v1342, %v1340
    %v1403 = vpack.c.b16 %v1343, %v1341
    %v1404 = vpack.c.b16 %v1346, %v1344
    %v1405 = vpack.c.b16 %v1347, %v1345
    %v1406 = vpack.c.b16 %v1350, %v1348
    %v1407 = vpack.c.b16 %v1351, %v1349
    %v1408 = vpack.c.b16 %v1354, %v1352
    %v1409 = vpack.c.b16 %v1355, %v1353
    %v1410 = vpack.c.b16 %v1358, %v1356
    %v1411 = vpack.c.b16 %v1359, %v1357
    %v1412 = vpack.c.b16 %v1362, %v1360
    %v1413 = vpack.c.b16 %v1363, %v1361
    %v1414 = vpack.c.b16 %v1366, %v1364
    %v1415 = vpack.c.b16 %v1367, %v1365
    %v1416 = vpack.c.b16 %v1370, %v1368
    %v1417 = vpack.c.b16 %v1371, %v1369
    %v1418 = vpack.c.b16 %v1374, %v1372
    %v1419 = vpack.c.b16 %v1375, %v1373
    %v1420 = vpack.c.b16 %v1378, %v1376
    %v1421 = vpack.c.b16 %v1379, %v1377
    %v1422 = vpack.c.b16 %v1382, %v1380
    %v1423 = vpack.c.b16 %v1383, %v1381
    %v1424 = vpack.c.b16 %v1386, %v1384
    %v1425 = vpack.c.b16 %v1387, %v1385
    %v1426 = vpack.c.b16 %v1390, %v1388
    %v1427 = vpack.c.b16 %v1391, %v1389
    %v1428 = vpack.c.b16 %v1394, %v1392
    %v1429 = vpack.c.b16 %v1395, %v1393
    %v1430 = vpack.c.b16 %v1398, %v1396
    %v1431 = vpack.c.b16 %v1399, %v1397
    %1464 = vmatprep.subr.bf16.mxu0 %v1401
    %1465 = vmatpush1.bf16.msra.mxu0 %v1400
    %1466 = vmatprep.subr.bf16.mxu0 %v1403
    %1467 = vmatpush1.bf16.msra.mxu0 %v1402
    %1468 = vmatprep.subr.bf16.mxu0 %v1405
    %1469 = vmatpush1.bf16.msra.mxu0 %v1404
    %1470 = vmatprep.subr.bf16.mxu0 %v1407
    %1471 = vmatpush1.bf16.msra.mxu0 %v1406
    %1472 = vmatprep.subr.bf16.mxu0 %v1409
    %1473 = vmatpush1.bf16.msra.mxu0 %v1408
    %1474 = vmatprep.subr.bf16.mxu0 %v1411
    %1475 = vmatpush1.bf16.msra.mxu0 %v1410
    %1476 = vmatprep.subr.bf16.mxu0 %v1413
    %1477 = vmatpush1.bf16.msra.mxu0 %v1412
    %1478 = vmatprep.subr.bf16.mxu0 %v1415
    %1479 = vmatpush1.bf16.msra.mxu0 %v1414
    %1480 = vmatprep.subr.bf16.mxu0 %v1417
    %1481 = vmatpush1.bf16.msra.mxu0 %v1416
    %1482 = vmatprep.subr.bf16.mxu0 %v1419
    %1483 = vmatpush1.bf16.msra.mxu0 %v1418
    %1484 = vmatprep.subr.bf16.mxu0 %v1421
    %1485 = vmatpush1.bf16.msra.mxu0 %v1420
    %1486 = vmatprep.subr.bf16.mxu0 %v1423
    %1487 = vmatpush1.bf16.msra.mxu0 %v1422
    %1488 = vmatprep.subr.bf16.mxu0 %v1425
    %1489 = vmatpush1.bf16.msra.mxu0 %v1424
    %1490 = vmatprep.subr.bf16.mxu0 %v1427
    %1491 = vmatpush1.bf16.msra.mxu0 %v1426
    %1492 = vmatprep.subr.bf16.mxu0 %v1429
    %1493 = vmatpush1.bf16.msra.mxu0 %v1428
    %1494 = vmatprep.subr.bf16.mxu0 %v1431
    %1495 = vmatpush1.bf16.msra.mxu0 %v1430
    %1496 = vmatprep.mubr.bf16.mxu0 %v1257
    %1497 = vmatmul.mubr.bf16.gmra.mrb[0].mxu0 %v1256
    %v1498 = vpop.f32.mrb[0].mxu0
    %v1499 = vadd.f32 %v1297, %v1498
    %v1500 = vpop.f32.mrb[0].mxu0
    %v1501 = vadd.f32 %v1301, %v1500
    %v1502 = vpop.f32.mrb[0].mxu0
    %v1503 = vpop.f32.mrb[0].mxu0
    %1504 = vdwg.mxu0
    %v1505 = vxor.u32 %v1499, 2147483648
    %v1506 = vxor.u32 %v1501, 2147483648
    %v1507 = vmul.f32 %v1505, 1.442695
    %v1508 = vpow.pop %v1507
    %v1509 = vmul.f32 %v1506, 1.442695
    %v1510 = vpow.pop %v1509
    %v1511 = vadd.f32 %v1508, 1.0
    %v1512 = vadd.f32 %v1510, 1.0
    %v1513 = vrcp.pop %v1511
    %v1514 = vmul.f32 1.0, %v1513
    %v1515 = vrcp.pop %v1512
    %v1516 = vmul.f32 1.0, %v1515
    %v1517 = vmul.f32 %v1499, %v1514
    %v1518 = vmul.f32 %v1501, %v1516
    %v1519 = vpack.c.bf16 %v1517, %v1517
    %v1520 = vpack.c.bf16 %v1518, %v1518
    %s1521 = scalar_lea.vmem [#allocation14], 128
    %v1522 = vld [vmem:[%s1521] sm:$0xf]
    %v1523 = vld [vmem:[%s1521 + $0x4] sm:$0xf]
    %v1524 = vld [vmem:[%s1521 + $0x8] sm:$0xf]
    %v1525 = vld [vmem:[%s1521 + $0xc] sm:$0xf]
    %v1526 = vld [vmem:[%s1521 + $0x10] sm:$0xf]
    %v1527 = vld [vmem:[%s1521 + $0x14] sm:$0xf]
    %v1528 = vld [vmem:[%s1521 + $0x18] sm:$0xf]
    %v1529 = vld [vmem:[%s1521 + $0x1c] sm:$0xf]
    %v1530 = vld [vmem:[%s1521 + $0x20] sm:$0xf]
    %v1531 = vld [vmem:[%s1521 + $0x24] sm:$0xf]
    %v1532 = vld [vmem:[%s1521 + $0x28] sm:$0xf]
    %v1533 = vld [vmem:[%s1521 + $0x2c] sm:$0xf]
    %v1534 = vld [vmem:[%s1521 + $0x30] sm:$0xf]
    %v1535 = vld [vmem:[%s1521 + $0x34] sm:$0xf]
    %v1536 = vld [vmem:[%s1521 + $0x38] sm:$0xf]
    %v1537 = vld [vmem:[%s1521 + $0x3c] sm:$0xf]
    %v1538 = vld [vmem:[%s1521 + $0x40] sm:$0xf]
    %v1539 = vld [vmem:[%s1521 + $0x44] sm:$0xf]
    %v1540 = vld [vmem:[%s1521 + $0x48] sm:$0xf]
    %v1541 = vld [vmem:[%s1521 + $0x4c] sm:$0xf]
    %v1542 = vld [vmem:[%s1521 + $0x50] sm:$0xf]
    %v1543 = vld [vmem:[%s1521 + $0x54] sm:$0xf]
    %v1544 = vld [vmem:[%s1521 + $0x58] sm:$0xf]
    %v1545 = vld [vmem:[%s1521 + $0x5c] sm:$0xf]
    %v1546 = vld [vmem:[%s1521 + $0x60] sm:$0xf]
    %v1547 = vld [vmem:[%s1521 + $0x64] sm:$0xf]
    %v1548 = vld [vmem:[%s1521 + $0x68] sm:$0xf]
    %v1549 = vld [vmem:[%s1521 + $0x6c] sm:$0xf]
    %v1550 = vld [vmem:[%s1521 + $0x70] sm:$0xf]
    %v1551 = vld [vmem:[%s1521 + $0x74] sm:$0xf]
    %v1552 = vld [vmem:[%s1521 + $0x78] sm:$0xf]
    %v1553 = vld [vmem:[%s1521 + $0x7c] sm:$0xf]
    %v1586 = vunpack.c.l.b16 %v1522
    %v1587 = vunpack.c.l.b16 %v1523
    %v1588 = vunpack.c.l.b16 %v1524
    %v1589 = vunpack.c.l.b16 %v1525
    %v1590 = vunpack.c.l.b16 %v1526
    %v1591 = vunpack.c.l.b16 %v1527
    %v1592 = vunpack.c.l.b16 %v1528
    %v1593 = vunpack.c.l.b16 %v1529
    %v1594 = vunpack.c.l.b16 %v1530
    %v1595 = vunpack.c.l.b16 %v1531
    %v1596 = vunpack.c.l.b16 %v1532
    %v1597 = vunpack.c.l.b16 %v1533
    %v1598 = vunpack.c.l.b16 %v1534
    %v1599 = vunpack.c.l.b16 %v1535
    %v1600 = vunpack.c.l.b16 %v1536
    %v1601 = vunpack.c.l.b16 %v1537
    %v1602 = vunpack.c.l.b16 %v1538
    %v1603 = vunpack.c.l.b16 %v1539
    %v1604 = vunpack.c.l.b16 %v1540
    %v1605 = vunpack.c.l.b16 %v1541
    %v1606 = vunpack.c.l.b16 %v1542
    %v1607 = vunpack.c.l.b16 %v1543
    %v1608 = vunpack.c.l.b16 %v1544
    %v1609 = vunpack.c.l.b16 %v1545
    %v1610 = vunpack.c.l.b16 %v1546
    %v1611 = vunpack.c.l.b16 %v1547
    %v1612 = vunpack.c.l.b16 %v1548
    %v1613 = vunpack.c.l.b16 %v1549
    %v1614 = vunpack.c.l.b16 %v1550
    %v1615 = vunpack.c.l.b16 %v1551
    %v1616 = vunpack.c.l.b16 %v1552
    %v1617 = vunpack.c.l.b16 %v1553
    %v1618 = vpack.c.b16 %v1587, %v1586
    %v1619 = vpack.c.b16 %v1589, %v1588
    %v1620 = vpack.c.b16 %v1591, %v1590
    %v1621 = vpack.c.b16 %v1593, %v1592
    %v1622 = vpack.c.b16 %v1595, %v1594
    %v1623 = vpack.c.b16 %v1597, %v1596
    %v1624 = vpack.c.b16 %v1599, %v1598
    %v1625 = vpack.c.b16 %v1601, %v1600
    %v1626 = vpack.c.b16 %v1603, %v1602
    %v1627 = vpack.c.b16 %v1605, %v1604
    %v1628 = vpack.c.b16 %v1607, %v1606
    %v1629 = vpack.c.b16 %v1609, %v1608
    %v1630 = vpack.c.b16 %v1611, %v1610
    %v1631 = vpack.c.b16 %v1613, %v1612
    %v1632 = vpack.c.b16 %v1615, %v1614
    %v1633 = vpack.c.b16 %v1617, %v1616
    %1650 = vmatprep.subr.bf16.mxu0 0
    %1651 = vmatpush1.bf16.msra.mxu0 %v1618
    %1652 = vmatprep.subr.bf16.mxu0 0
    %1653 = vmatpush1.bf16.msra.mxu0 %v1619
    %1654 = vmatprep.subr.bf16.mxu0 0
    %1655 = vmatpush1.bf16.msra.mxu0 %v1620
    %1656 = vmatprep.subr.bf16.mxu0 0
    %1657 = vmatpush1.bf16.msra.mxu0 %v1621
    %1658 = vmatprep.subr.bf16.mxu0 0
    %1659 = vmatpush1.bf16.msra.mxu0 %v1622
    %1660 = vmatprep.subr.bf16.mxu0 0
    %1661 = vmatpush1.bf16.msra.mxu0 %v1623
    %1662 = vmatprep.subr.bf16.mxu0 0
    %1663 = vmatpush1.bf16.msra.mxu0 %v1624
    %1664 = vmatprep.subr.bf16.mxu0 0
    %1665 = vmatpush1.bf16.msra.mxu0 %v1625
    %1666 = vmatprep.subr.bf16.mxu0 0
    %1667 = vmatpush1.bf16.msra.mxu0 %v1626
    %1668 = vmatprep.subr.bf16.mxu0 0
    %1669 = vmatpush1.bf16.msra.mxu0 %v1627
    %1670 = vmatprep.subr.bf16.mxu0 0
    %1671 = vmatpush1.bf16.msra.mxu0 %v1628
    %1672 = vmatprep.subr.bf16.mxu0 0
    %1673 = vmatpush1.bf16.msra.mxu0 %v1629
    %1674 = vmatprep.subr.bf16.mxu0 0
    %1675 = vmatpush1.bf16.msra.mxu0 %v1630
    %1676 = vmatprep.subr.bf16.mxu0 0
    %1677 = vmatpush1.bf16.msra.mxu0 %v1631
    %1678 = vmatprep.subr.bf16.mxu0 0
    %1679 = vmatpush1.bf16.msra.mxu0 %v1632
    %1680 = vmatprep.subr.bf16.mxu0 0
    %1681 = vmatpush1.bf16.msra.mxu0 %v1633
    %1682 = vmatprep.mubr.bf16.mxu0 %v1520
    %1683 = vmatmul.mubr.bf16.gmra.mrb[0].mxu0 %v1519
    %v1684 = vpop.f32.mrb[0].mxu0
    %v1685 = vadd.f32 0.0, %v1684
    %v1686 = vpop.f32.mrb[0].mxu0
    %v1687 = vpop.f32.mrb[0].mxu0
    %v1688 = vpop.f32.mrb[0].mxu0
    %1689 = vdwg.mxu0
    %v1690 = vadd.f32 %v913, %v1685
    %1691 = vadd.xlane.f32.xlu0 %v1690
    %v1692 = vpop.xlane.xlu0 %1691
    %v1693 = vmul.f32 %v1692, %v146
    %v1694 = vsub.f32 %v1690, %v1693
    %v1695 = vmul.f32 %v1694, %v1694
    %1696 = vadd.xlane.f32.xlu0 %v1695
    %v1697 = vpop.xlane.xlu0 %1696
    %v1698 = vmul.f32 %v1697, %v146
    %v1699 = vadd.f32 %v1698, 1e-05
    %v1700 = vrsqrt.pop %v1699
    %v1701 = vmul.f32 %v1694, %v1700
    %s1702 = scalar_lea.vmem [#allocation7], 2
    %v1703 = vld [vmem:[%s1702] sm:$0x1]
    %v1705 = vlaneseq
    %v1706 = vshrl.u32 %v1705, 7
    %v1707 = vsub.s32 0, %v1706
    %v1708 = vrot.slane %v1703, %v1707
    %v1710 = vmul.f32 %v1701, %v1708
    %s1711 = scalar_lea.vmem [#allocation8], 2
    %v1712 = vld [vmem:[%s1711] sm:$0x1]
    %v1714 = vlaneseq
    %v1715 = vshrl.u32 %v1714, 7
    %v1716 = vsub.s32 0, %v1715
    %v1717 = vrot.slane %v1712, %v1716
    %v1719 = vadd.f32 %v1710, %v1717
    %v1720 = vxor.u32 %v1719, 2147483648
    %v1721 = vmul.f32 %v1720, 1.442695
    %v1722 = vpow.pop %v1721
    %v1723 = vadd.f32 %v1722, 1.0
    %v1724 = vrcp.pop %v1723
    %v1725 = vmul.f32 1.0, %v1724
    %v1726 = vmul.f32 %v1719, %v1725
    %v1727 = vpack.c.bf16 %v1726, %v1726
    %s1728 = scalar_lea.vmem [#allocation10], 256
    %v1729 = vld [vmem:[%s1728] sm:$0xff]
    %v1730 = vld [vmem:[%s1728 + $0x8] sm:$0xff]
    %v1731 = vld [vmem:[%s1728 + $0x10] sm:$0xff]
    %v1732 = vld [vmem:[%s1728 + $0x18] sm:$0xff]
    %v1733 = vld [vmem:[%s1728 + $0x20] sm:$0xff]
    %v1734 = vld [vmem:[%s1728 + $0x28] sm:$0xff]
    %v1735 = vld [vmem:[%s1728 + $0x30] sm:$0xff]
    %v1736 = vld [vmem:[%s1728 + $0x38] sm:$0xff]
    %v1737 = vld [vmem:[%s1728 + $0x40] sm:$0xff]
    %v1738 = vld [vmem:[%s1728 + $0x48] sm:$0xff]
    %v1739 = vld [vmem:[%s1728 + $0x50] sm:$0xff]
    %v1740 = vld [vmem:[%s1728 + $0x58] sm:$0xff]
    %v1741 = vld [vmem:[%s1728 + $0x60] sm:$0xff]
    %v1742 = vld [vmem:[%s1728 + $0x68] sm:$0xff]
    %v1743 = vld [vmem:[%s1728 + $0x70] sm:$0xff]
    %v1744 = vld [vmem:[%s1728 + $0x78] sm:$0xff]
    %s1745 = scalar_lea.vmem [#allocation11], 256
    %v1746 = vld [vmem:[%s1745] sm:$0xff]
    %v1747 = vld [vmem:[%s1745 + $0x8] sm:$0xff]
    %v1748 = vld [vmem:[%s1745 + $0x10] sm:$0xff]
    %v1749 = vld [vmem:[%s1745 + $0x18] sm:$0xff]
    %v1750 = vld [vmem:[%s1745 + $0x20] sm:$0xff]
    %v1751 = vld [vmem:[%s1745 + $0x28] sm:$0xff]
    %v1752 = vld [vmem:[%s1745 + $0x30] sm:$0xff]
    %v1753 = vld [vmem:[%s1745 + $0x38] sm:$0xff]
    %v1754 = vld [vmem:[%s1745 + $0x40] sm:$0xff]
    %v1755 = vld [vmem:[%s1745 + $0x48] sm:$0xff]
    %v1756 = vld [vmem:[%s1745 + $0x50] sm:$0xff]
    %v1757 = vld [vmem:[%s1745 + $0x58] sm:$0xff]
    %v1758 = vld [vmem:[%s1745 + $0x60] sm:$0xff]
    %v1759 = vld [vmem:[%s1745 + $0x68] sm:$0xff]
    %v1760 = vld [vmem:[%s1745 + $0x70] sm:$0xff]
    %v1761 = vld [vmem:[%s1745 + $0x78] sm:$0xff]
    %v1778 = vunpack.c.l.b16 %v1746
    %v1779 = vunpack.c.h.b16 %v1746
    %v1780 = vunpack.c.l.b16 %v1747
    %v1781 = vunpack.c.h.b16 %v1747
    %v1782 = vunpack.c.l.b16 %v1748
    %v1783 = vunpack.c.h.b16 %v1748
    %v1784 = vunpack.c.l.b16 %v1749
    %v1785 = vunpack.c.h.b16 %v1749
    %v1786 = vunpack.c.l.b16 %v1750
    %v1787 = vunpack.c.h.b16 %v1750
    %v1788 = vunpack.c.l.b16 %v1751
    %v1789 = vunpack.c.h.b16 %v1751
    %v1790 = vunpack.c.l.b16 %v1752
    %v1791 = vunpack.c.h.b16 %v1752
    %v1792 = vunpack.c.l.b16 %v1753
    %v1793 = vunpack.c.h.b16 %v1753
    %v1794 = vunpack.c.l.b16 %v1754
    %v1795 = vunpack.c.h.b16 %v1754
    %v1796 = vunpack.c.l.b16 %v1755
    %v1797 = vunpack.c.h.b16 %v1755
    %v1798 = vunpack.c.l.b16 %v1756
    %v1799 = vunpack.c.h.b16 %v1756
    %v1800 = vunpack.c.l.b16 %v1757
    %v1801 = vunpack.c.h.b16 %v1757
    %v1802 = vunpack.c.l.b16 %v1758
    %v1803 = vunpack.c.h.b16 %v1758
    %v1804 = vunpack.c.l.b16 %v1759
    %v1805 = vunpack.c.h.b16 %v1759
    %v1806 = vunpack.c.l.b16 %v1760
    %v1807 = vunpack.c.h.b16 %v1760
    %v1808 = vunpack.c.l.b16 %v1761
    %v1809 = vunpack.c.h.b16 %v1761
    %v1810 = vpack.c.b16 %v1780, %v1778
    %v1811 = vpack.c.b16 %v1781, %v1779
    %v1812 = vpack.c.b16 %v1784, %v1782
    %v1813 = vpack.c.b16 %v1785, %v1783
    %v1814 = vpack.c.b16 %v1788, %v1786
    %v1815 = vpack.c.b16 %v1789, %v1787
    %v1816 = vpack.c.b16 %v1792, %v1790
    %v1817 = vpack.c.b16 %v1793, %v1791
    %v1818 = vpack.c.b16 %v1796, %v1794
    %v1819 = vpack.c.b16 %v1797, %v1795
    %v1820 = vpack.c.b16 %v1800, %v1798
    %v1821 = vpack.c.b16 %v1801, %v1799
    %v1822 = vpack.c.b16 %v1804, %v1802
    %v1823 = vpack.c.b16 %v1805, %v1803
    %v1824 = vpack.c.b16 %v1808, %v1806
    %v1825 = vpack.c.b16 %v1809, %v1807
    %1842 = vmatprep.subr.bf16.mxu0 %v1811
    %1843 = vmatpush1.bf16.msra.mxu0 %v1810
    %1844 = vmatprep.subr.bf16.mxu0 %v1813
    %1845 = vmatpush1.bf16.msra.mxu0 %v1812
    %1846 = vmatprep.subr.bf16.mxu0 %v1815
    %1847 = vmatpush1.bf16.msra.mxu0 %v1814
    %1848 = vmatprep.subr.bf16.mxu0 %v1817
    %1849 = vmatpush1.bf16.msra.mxu0 %v1816
    %1850 = vmatprep.subr.bf16.mxu0 %v1819
    %1851 = vmatpush1.bf16.msra.mxu0 %v1818
    %1852 = vmatprep.subr.bf16.mxu0 %v1821
    %1853 = vmatpush1.bf16.msra.mxu0 %v1820
    %1854 = vmatprep.subr.bf16.mxu0 %v1823
    %1855 = vmatpush1.bf16.msra.mxu0 %v1822
    %1856 = vmatprep.subr.bf16.mxu0 %v1825
    %1857 = vmatpush1.bf16.msra.mxu0 %v1824
    %1858 = vmatprep.subr.bf16.mxu0 0
    %1859 = vmatpush1.bf16.msra.mxu0 0
    %1860 = vmatprep.subr.bf16.mxu0 0
    %1861 = vmatpush1.bf16.msra.mxu0 0
    %1862 = vmatprep.subr.bf16.mxu0 0
    %1863 = vmatpush1.bf16.msra.mxu0 0
    %1864 = vmatprep.subr.bf16.mxu0 0
    %1865 = vmatpush1.bf16.msra.mxu0 0
    %1866 = vmatprep.subr.bf16.mxu0 0
    %1867 = vmatpush1.bf16.msra.mxu0 0
    %1868 = vmatprep.subr.bf16.mxu0 0
    %1869 = vmatpush1.bf16.msra.mxu0 0
    %1870 = vmatprep.subr.bf16.mxu0 0
    %1871 = vmatpush1.bf16.msra.mxu0 0
    %1872 = vmatprep.subr.bf16.mxu0 0
    %1873 = vmatpush1.bf16.msra.mxu0 0
    %1874 = vmatprep.mubr.bf16.mxu0 0
    %1875 = vmatmul.mubr.bf16.gmra.mrb[0].mxu0 %v142
    %v1876 = vpop.f32.mrb[0].mxu0
    %v1877 = vadd.f32 0.0, %v1876
    %v1878 = vpop.f32.mrb[0].mxu0
    %v1879 = vadd.f32 0.0, %v1878
    %v1880 = vpop.f32.mrb[0].mxu0
    %v1881 = vpop.f32.mrb[0].mxu0
    %1882 = vdwg.mxu0
    %v1899 = vunpack.c.l.b16 %v1729
    %v1900 = vunpack.c.h.b16 %v1729
    %v1901 = vunpack.c.l.b16 %v1730
    %v1902 = vunpack.c.h.b16 %v1730
    %v1903 = vunpack.c.l.b16 %v1731
    %v1904 = vunpack.c.h.b16 %v1731
    %v1905 = vunpack.c.l.b16 %v1732
    %v1906 = vunpack.c.h.b16 %v1732
    %v1907 = vunpack.c.l.b16 %v1733
    %v1908 = vunpack.c.h.b16 %v1733
    %v1909 = vunpack.c.l.b16 %v1734
    %v1910 = vunpack.c.h.b16 %v1734
    %v1911 = vunpack.c.l.b16 %v1735
    %v1912 = vunpack.c.h.b16 %v1735
    %v1913 = vunpack.c.l.b16 %v1736
    %v1914 = vunpack.c.h.b16 %v1736
    %v1915 = vunpack.c.l.b16 %v1737
    %v1916 = vunpack.c.h.b16 %v1737
    %v1917 = vunpack.c.l.b16 %v1738
    %v1918 = vunpack.c.h.b16 %v1738
    %v1919 = vunpack.c.l.b16 %v1739
    %v1920 = vunpack.c.h.b16 %v1739
    %v1921 = vunpack.c.l.b16 %v1740
    %v1922 = vunpack.c.h.b16 %v1740
    %v1923 = vunpack.c.l.b16 %v1741
    %v1924 = vunpack.c.h.b16 %v1741
    %v1925 = vunpack.c.l.b16 %v1742
    %v1926 = vunpack.c.h.b16 %v1742
    %v1927 = vunpack.c.l.b16 %v1743
    %v1928 = vunpack.c.h.b16 %v1743
    %v1929 = vunpack.c.l.b16 %v1744
    %v1930 = vunpack.c.h.b16 %v1744
    %v1931 = vpack.c.b16 %v1901, %v1899
    %v1932 = vpack.c.b16 %v1902, %v1900
    %v1933 = vpack.c.b16 %v1905, %v1903
    %v1934 = vpack.c.b16 %v1906, %v1904
    %v1935 = vpack.c.b16 %v1909, %v1907
    %v1936 = vpack.c.b16 %v1910, %v1908
    %v1937 = vpack.c.b16 %v1913, %v1911
    %v1938 = vpack.c.b16 %v1914, %v1912
    %v1939 = vpack.c.b16 %v1917, %v1915
    %v1940 = vpack.c.b16 %v1918, %v1916
    %v1941 = vpack.c.b16 %v1921, %v1919
    %v1942 = vpack.c.b16 %v1922, %v1920
    %v1943 = vpack.c.b16 %v1925, %v1923
    %v1944 = vpack.c.b16 %v1926, %v1924
    %v1945 = vpack.c.b16 %v1929, %v1927
    %v1946 = vpack.c.b16 %v1930, %v1928
    %1963 = vmatprep.subr.bf16.mxu0 %v1932
    %1964 = vmatpush1.bf16.msra.mxu0 %v1931
    %1965 = vmatprep.subr.bf16.mxu0 %v1934
    %1966 = vmatpush1.bf16.msra.mxu0 %v1933
    %1967 = vmatprep.subr.bf16.mxu0 %v1936
    %1968 = vmatpush1.bf16.msra.mxu0 %v1935
    %1969 = vmatprep.subr.bf16.mxu0 %v1938
    %1970 = vmatpush1.bf16.msra.mxu0 %v1937
    %1971 = vmatprep.subr.bf16.mxu0 %v1940
    %1972 = vmatpush1.bf16.msra.mxu0 %v1939
    %1973 = vmatprep.subr.bf16.mxu0 %v1942
    %1974 = vmatpush1.bf16.msra.mxu0 %v1941
    %1975 = vmatprep.subr.bf16.mxu0 %v1944
    %1976 = vmatpush1.bf16.msra.mxu0 %v1943
    %1977 = vmatprep.subr.bf16.mxu0 %v1946
    %1978 = vmatpush1.bf16.msra.mxu0 %v1945
    %1979 = vmatprep.subr.bf16.mxu0 0
    %1980 = vmatpush1.bf16.msra.mxu0 0
    %1981 = vmatprep.subr.bf16.mxu0 0
    %1982 = vmatpush1.bf16.msra.mxu0 0
    %1983 = vmatprep.subr.bf16.mxu0 0
    %1984 = vmatpush1.bf16.msra.mxu0 0
    %1985 = vmatprep.subr.bf16.mxu0 0
    %1986 = vmatpush1.bf16.msra.mxu0 0
    %1987 = vmatprep.subr.bf16.mxu0 0
    %1988 = vmatpush1.bf16.msra.mxu0 0
    %1989 = vmatprep.subr.bf16.mxu0 0
    %1990 = vmatpush1.bf16.msra.mxu0 0
    %1991 = vmatprep.subr.bf16.mxu0 0
    %1992 = vmatpush1.bf16.msra.mxu0 0
    %1993 = vmatprep.subr.bf16.mxu0 0
    %1994 = vmatpush1.bf16.msra.mxu0 0
    %1995 = vmatprep.mubr.bf16.mxu0 0
    %1996 = vmatmul.mubr.bf16.gmra.mrb[0].mxu0 %v1727
    %v1997 = vpop.f32.mrb[0].mxu0
    %v1998 = vadd.f32 %v1877, %v1997
    %v1999 = vpop.f32.mrb[0].mxu0
    %v2000 = vadd.f32 %v1879, %v1999
    %v2001 = vpop.f32.mrb[0].mxu0
    %v2002 = vpop.f32.mrb[0].mxu0
    %2003 = vdwg.mxu0
    %s2004 = scalar_lea.vmem %s6, 4
    %v2005 = vld [vmem:[%s2004] sm:$0x3]
    %v2007 = vlaneseq
    %v2008 = vshrl.u32 %v2007, 7
    %v2009 = vsub.s32 0, %v2008
    %v2010 = vrot.slane %v2005, %v2009
    %v2011 = vlaneseq
    %v2012 = vshrl.u32 %v2011, 7
    %v2013 = vsub.s32 1, %v2012
    %v2014 = vrot.slane %v2005, %v2013
    %v2017 = vadd.f32 %v1998, %v2010
    %v2018 = vadd.f32 %v2000, %v2014
    %v2019 = vxor.u32 %v2017, 2147483648
    %v2020 = vxor.u32 %v2018, 2147483648
    %v2021 = vmul.f32 %v2019, 1.442695
    %v2022 = vpow.pop %v2021
    %v2023 = vmul.f32 %v2020, 1.442695
    %v2024 = vpow.pop %v2023
    %v2025 = vadd.f32 %v2022, 1.0
    %v2026 = vadd.f32 %v2024, 1.0
    %v2027 = vrcp.pop %v2025
    %v2028 = vmul.f32 1.0, %v2027
    %v2029 = vrcp.pop %v2026
    %v2030 = vmul.f32 1.0, %v2029
    %v2031 = vmul.f32 %v2017, %v2028
    %v2032 = vmul.f32 %v2018, %v2030
    %v2033 = vpack.c.bf16 %v2031, %v2031
    %v2034 = vpack.c.bf16 %v2032, %v2032
    %s2035 = scalar_lea.vmem [#allocation13], 512
    %v2036 = vld [vmem:[%s2035] sm:$0xff]
    %v2037 = vld [vmem:[%s2035 + $0x8] sm:$0xff]
    %v2038 = vld [vmem:[%s2035 + $0x10] sm:$0xff]
    %v2039 = vld [vmem:[%s2035 + $0x18] sm:$0xff]
    %v2040 = vld [vmem:[%s2035 + $0x20] sm:$0xff]
    %v2041 = vld [vmem:[%s2035 + $0x28] sm:$0xff]
    %v2042 = vld [vmem:[%s2035 + $0x30] sm:$0xff]
    %v2043 = vld [vmem:[%s2035 + $0x38] sm:$0xff]
    %v2044 = vld [vmem:[%s2035 + $0x40] sm:$0xff]
    %v2045 = vld [vmem:[%s2035 + $0x48] sm:$0xff]
    %v2046 = vld [vmem:[%s2035 + $0x50] sm:$0xff]
    %v2047 = vld [vmem:[%s2035 + $0x58] sm:$0xff]
    %v2048 = vld [vmem:[%s2035 + $0x60] sm:$0xff]
    %v2049 = vld [vmem:[%s2035 + $0x68] sm:$0xff]
    %v2050 = vld [vmem:[%s2035 + $0x70] sm:$0xff]
    %v2051 = vld [vmem:[%s2035 + $0x78] sm:$0xff]
    %v2052 = vld [vmem:[%s2035 + $0x80] sm:$0xff]
    %v2053 = vld [vmem:[%s2035 + $0x88] sm:$0xff]
    %v2054 = vld [vmem:[%s2035 + $0x90] sm:$0xff]
    %v2055 = vld [vmem:[%s2035 + $0x98] sm:$0xff]
    %v2056 = vld [vmem:[%s2035 + $0xa0] sm:$0xff]
    %v2057 = vld [vmem:[%s2035 + $0xa8] sm:$0xff]
    %v2058 = vld [vmem:[%s2035 + $0xb0] sm:$0xff]
    %v2059 = vld [vmem:[%s2035 + $0xb8] sm:$0xff]
    %v2060 = vld [vmem:[%s2035 + $0xc0] sm:$0xff]
    %v2061 = vld [vmem:[%s2035 + $0xc8] sm:$0xff]
    %v2062 = vld [vmem:[%s2035 + $0xd0] sm:$0xff]
    %v2063 = vld [vmem:[%s2035 + $0xd8] sm:$0xff]
    %v2064 = vld [vmem:[%s2035 + $0xe0] sm:$0xff]
    %v2065 = vld [vmem:[%s2035 + $0xe8] sm:$0xff]
    %v2066 = vld [vmem:[%s2035 + $0xf0] sm:$0xff]
    %v2067 = vld [vmem:[%s2035 + $0xf8] sm:$0xff]
    %s2068 = scalar_lea.vmem %s8, 4
    %v2069 = vld [vmem:[%s2068] sm:$0x3]
    %v2071 = vlaneseq
    %v2072 = vshrl.u32 %v2071, 7
    %v2073 = vsub.s32 0, %v2072
    %v2074 = vrot.slane %v2069, %v2073
    %v2075 = vlaneseq
    %v2076 = vshrl.u32 %v2075, 7
    %v2077 = vsub.s32 1, %v2076
    %v2078 = vrot.slane %v2069, %v2077
    %v2113 = vunpack.c.l.b16 %v2036
    %v2114 = vunpack.c.h.b16 %v2036
    %v2115 = vunpack.c.l.b16 %v2037
    %v2116 = vunpack.c.h.b16 %v2037
    %v2117 = vunpack.c.l.b16 %v2038
    %v2118 = vunpack.c.h.b16 %v2038
    %v2119 = vunpack.c.l.b16 %v2039
    %v2120 = vunpack.c.h.b16 %v2039
    %v2121 = vunpack.c.l.b16 %v2040
    %v2122 = vunpack.c.h.b16 %v2040
    %v2123 = vunpack.c.l.b16 %v2041
    %v2124 = vunpack.c.h.b16 %v2041
    %v2125 = vunpack.c.l.b16 %v2042
    %v2126 = vunpack.c.h.b16 %v2042
    %v2127 = vunpack.c.l.b16 %v2043
    %v2128 = vunpack.c.h.b16 %v2043
    %v2129 = vunpack.c.l.b16 %v2044
    %v2130 = vunpack.c.h.b16 %v2044
    %v2131 = vunpack.c.l.b16 %v2045
    %v2132 = vunpack.c.h.b16 %v2045
    %v2133 = vunpack.c.l.b16 %v2046
    %v2134 = vunpack.c.h.b16 %v2046
    %v2135 = vunpack.c.l.b16 %v2047
    %v2136 = vunpack.c.h.b16 %v2047
    %v2137 = vunpack.c.l.b16 %v2048
    %v2138 = vunpack.c.h.b16 %v2048
    %v2139 = vunpack.c.l.b16 %v2049
    %v2140 = vunpack.c.h.b16 %v2049
    %v2141 = vunpack.c.l.b16 %v2050
    %v2142 = vunpack.c.h.b16 %v2050
    %v2143 = vunpack.c.l.b16 %v2051
    %v2144 = vunpack.c.h.b16 %v2051
    %v2145 = vunpack.c.l.b16 %v2052
    %v2146 = vunpack.c.h.b16 %v2052
    %v2147 = vunpack.c.l.b16 %v2053
    %v2148 = vunpack.c.h.b16 %v2053
    %v2149 = vunpack.c.l.b16 %v2054
    %v2150 = vunpack.c.h.b16 %v2054
    %v2151 = vunpack.c.l.b16 %v2055
    %v2152 = vunpack.c.h.b16 %v2055
    %v2153 = vunpack.c.l.b16 %v2056
    %v2154 = vunpack.c.h.b16 %v2056
    %v2155 = vunpack.c.l.b16 %v2057
    %v2156 = vunpack.c.h.b16 %v2057
    %v2157 = vunpack.c.l.b16 %v2058
    %v2158 = vunpack.c.h.b16 %v2058
    %v2159 = vunpack.c.l.b16 %v2059
    %v2160 = vunpack.c.h.b16 %v2059
    %v2161 = vunpack.c.l.b16 %v2060
    %v2162 = vunpack.c.h.b16 %v2060
    %v2163 = vunpack.c.l.b16 %v2061
    %v2164 = vunpack.c.h.b16 %v2061
    %v2165 = vunpack.c.l.b16 %v2062
    %v2166 = vunpack.c.h.b16 %v2062
    %v2167 = vunpack.c.l.b16 %v2063
    %v2168 = vunpack.c.h.b16 %v2063
    %v2169 = vunpack.c.l.b16 %v2064
    %v2170 = vunpack.c.h.b16 %v2064
    %v2171 = vunpack.c.l.b16 %v2065
    %v2172 = vunpack.c.h.b16 %v2065
    %v2173 = vunpack.c.l.b16 %v2066
    %v2174 = vunpack.c.h.b16 %v2066
    %v2175 = vunpack.c.l.b16 %v2067
    %v2176 = vunpack.c.h.b16 %v2067
    %v2177 = vpack.c.b16 %v2115, %v2113
    %v2178 = vpack.c.b16 %v2116, %v2114
    %v2179 = vpack.c.b16 %v2119, %v2117
    %v2180 = vpack.c.b16 %v2120, %v2118
    %v2181 = vpack.c.b16 %v2123, %v2121
    %v2182 = vpack.c.b16 %v2124, %v2122
    %v2183 = vpack.c.b16 %v2127, %v2125
    %v2184 = vpack.c.b16 %v2128, %v2126
    %v2185 = vpack.c.b16 %v2131, %v2129
    %v2186 = vpack.c.b16 %v2132, %v2130
    %v2187 = vpack.c.b16 %v2135, %v2133
    %v2188 = vpack.c.b16 %v2136, %v2134
    %v2189 = vpack.c.b16 %v2139, %v2137
    %v2190 = vpack.c.b16 %v2140, %v2138
    %v2191 = vpack.c.b16 %v2143, %v2141
    %v2192 = vpack.c.b16 %v2144, %v2142
    %v2193 = vpack.c.b16 %v2147, %v2145
    %v2194 = vpack.c.b16 %v2148, %v2146
    %v2195 = vpack.c.b16 %v2151, %v2149
    %v2196 = vpack.c.b16 %v2152, %v2150
    %v2197 = vpack.c.b16 %v2155, %v2153
    %v2198 = vpack.c.b16 %v2156, %v2154
    %v2199 = vpack.c.b16 %v2159, %v2157
    %v2200 = vpack.c.b16 %v2160, %v2158
    %v2201 = vpack.c.b16 %v2163, %v2161
    %v2202 = vpack.c.b16 %v2164, %v2162
    %v2203 = vpack.c.b16 %v2167, %v2165
    %v2204 = vpack.c.b16 %v2168, %v2166
    %v2205 = vpack.c.b16 %v2171, %v2169
    %v2206 = vpack.c.b16 %v2172, %v2170
    %v2207 = vpack.c.b16 %v2175, %v2173
    %v2208 = vpack.c.b16 %v2176, %v2174
    %2241 = vmatprep.subr.bf16.mxu0 %v2178
    %2242 = vmatpush1.bf16.msra.mxu0 %v2177
    %2243 = vmatprep.subr.bf16.mxu0 %v2180
    %2244 = vmatpush1.bf16.msra.mxu0 %v2179
    %2245 = vmatprep.subr.bf16.mxu0 %v2182
    %2246 = vmatpush1.bf16.msra.mxu0 %v2181
    %2247 = vmatprep.subr.bf16.mxu0 %v2184
    %2248 = vmatpush1.bf16.msra.mxu0 %v2183
    %2249 = vmatprep.subr.bf16.mxu0 %v2186
    %2250 = vmatpush1.bf16.msra.mxu0 %v2185
    %2251 = vmatprep.subr.bf16.mxu0 %v2188
    %2252 = vmatpush1.bf16.msra.mxu0 %v2187
    %2253 = vmatprep.subr.bf16.mxu0 %v2190
    %2254 = vmatpush1.bf16.msra.mxu0 %v2189
    %2255 = vmatprep.subr.bf16.mxu0 %v2192
    %2256 = vmatpush1.bf16.msra.mxu0 %v2191
    %2257 = vmatprep.subr.bf16.mxu0 %v2194
    %2258 = vmatpush1.bf16.msra.mxu0 %v2193
    %2259 = vmatprep.subr.bf16.mxu0 %v2196
    %2260 = vmatpush1.bf16.msra.mxu0 %v2195
    %2261 = vmatprep.subr.bf16.mxu0 %v2198
    %2262 = vmatpush1.bf16.msra.mxu0 %v2197
    %2263 = vmatprep.subr.bf16.mxu0 %v2200
    %2264 = vmatpush1.bf16.msra.mxu0 %v2199
    %2265 = vmatprep.subr.bf16.mxu0 %v2202
    %2266 = vmatpush1.bf16.msra.mxu0 %v2201
    %2267 = vmatprep.subr.bf16.mxu0 %v2204
    %2268 = vmatpush1.bf16.msra.mxu0 %v2203
    %2269 = vmatprep.subr.bf16.mxu0 %v2206
    %2270 = vmatpush1.bf16.msra.mxu0 %v2205
    %2271 = vmatprep.subr.bf16.mxu0 %v2208
    %2272 = vmatpush1.bf16.msra.mxu0 %v2207
    %2273 = vmatprep.mubr.bf16.mxu0 %v2034
    %2274 = vmatmul.mubr.bf16.gmra.mrb[0].mxu0 %v2033
    %v2275 = vpop.f32.mrb[0].mxu0
    %v2276 = vadd.f32 %v2074, %v2275
    %v2277 = vpop.f32.mrb[0].mxu0
    %v2278 = vadd.f32 %v2078, %v2277
    %v2279 = vpop.f32.mrb[0].mxu0
    %v2280 = vpop.f32.mrb[0].mxu0
    %2281 = vdwg.mxu0
    %v2282 = vxor.u32 %v2276, 2147483648
    %v2283 = vxor.u32 %v2278, 2147483648
    %v2284 = vmul.f32 %v2282, 1.442695
    %v2285 = vpow.pop %v2284
    %v2286 = vmul.f32 %v2283, 1.442695
    %v2287 = vpow.pop %v2286
    %v2288 = vadd.f32 %v2285, 1.0
    %v2289 = vadd.f32 %v2287, 1.0
    %v2290 = vrcp.pop %v2288
    %v2291 = vmul.f32 1.0, %v2290
    %v2292 = vrcp.pop %v2289
    %v2293 = vmul.f32 1.0, %v2292
    %v2294 = vmul.f32 %v2276, %v2291
    %v2295 = vmul.f32 %v2278, %v2293
    %v2296 = vpack.c.bf16 %v2294, %v2294
    %v2297 = vpack.c.bf16 %v2295, %v2295
    %s2298 = scalar_lea.vmem [#allocation14], 256
    %v2299 = vld [vmem:[%s2298] sm:$0xf]
    %v2300 = vld [vmem:[%s2298 + $0x4] sm:$0xf]
    %v2301 = vld [vmem:[%s2298 + $0x8] sm:$0xf]
    %v2302 = vld [vmem:[%s2298 + $0xc] sm:$0xf]
    %v2303 = vld [vmem:[%s2298 + $0x10] sm:$0xf]
    %v2304 = vld [vmem:[%s2298 + $0x14] sm:$0xf]
    %v2305 = vld [vmem:[%s2298 + $0x18] sm:$0xf]
    %v2306 = vld [vmem:[%s2298 + $0x1c] sm:$0xf]
    %v2307 = vld [vmem:[%s2298 + $0x20] sm:$0xf]
    %v2308 = vld [vmem:[%s2298 + $0x24] sm:$0xf]
    %v2309 = vld [vmem:[%s2298 + $0x28] sm:$0xf]
    %v2310 = vld [vmem:[%s2298 + $0x2c] sm:$0xf]
    %v2311 = vld [vmem:[%s2298 + $0x30] sm:$0xf]
    %v2312 = vld [vmem:[%s2298 + $0x34] sm:$0xf]
    %v2313 = vld [vmem:[%s2298 + $0x38] sm:$0xf]
    %v2314 = vld [vmem:[%s2298 + $0x3c] sm:$0xf]
    %v2315 = vld [vmem:[%s2298 + $0x40] sm:$0xf]
    %v2316 = vld [vmem:[%s2298 + $0x44] sm:$0xf]
    %v2317 = vld [vmem:[%s2298 + $0x48] sm:$0xf]
    %v2318 = vld [vmem:[%s2298 + $0x4c] sm:$0xf]
    %v2319 = vld [vmem:[%s2298 + $0x50] sm:$0xf]
    %v2320 = vld [vmem:[%s2298 + $0x54] sm:$0xf]
    %v2321 = vld [vmem:[%s2298 + $0x58] sm:$0xf]
    %v2322 = vld [vmem:[%s2298 + $0x5c] sm:$0xf]
    %v2323 = vld [vmem:[%s2298 + $0x60] sm:$0xf]
    %v2324 = vld [vmem:[%s2298 + $0x64] sm:$0xf]
    %v2325 = vld [vmem:[%s2298 + $0x68] sm:$0xf]
    %v2326 = vld [vmem:[%s2298 + $0x6c] sm:$0xf]
    %v2327 = vld [vmem:[%s2298 + $0x70] sm:$0xf]
    %v2328 = vld [vmem:[%s2298 + $0x74] sm:$0xf]
    %v2329 = vld [vmem:[%s2298 + $0x78] sm:$0xf]
    %v2330 = vld [vmem:[%s2298 + $0x7c] sm:$0xf]
    %v2363 = vunpack.c.l.b16 %v2299
    %v2364 = vunpack.c.l.b16 %v2300
    %v2365 = vunpack.c.l.b16 %v2301
    %v2366 = vunpack.c.l.b16 %v2302
    %v2367 = vunpack.c.l.b16 %v2303
    %v2368 = vunpack.c.l.b16 %v2304
    %v2369 = vunpack.c.l.b16 %v2305
    %v2370 = vunpack.c.l.b16 %v2306
    %v2371 = vunpack.c.l.b16 %v2307
    %v2372 = vunpack.c.l.b16 %v2308
    %v2373 = vunpack.c.l.b16 %v2309
    %v2374 = vunpack.c.l.b16 %v2310
    %v2375 = vunpack.c.l.b16 %v2311
    %v2376 = vunpack.c.l.b16 %v2312
    %v2377 = vunpack.c.l.b16 %v2313
    %v2378 = vunpack.c.l.b16 %v2314
    %v2379 = vunpack.c.l.b16 %v2315
    %v2380 = vunpack.c.l.b16 %v2316
    %v2381 = vunpack.c.l.b16 %v2317
    %v2382 = vunpack.c.l.b16 %v2318
    %v2383 = vunpack.c.l.b16 %v2319
    %v2384 = vunpack.c.l.b16 %v2320
    %v2385 = vunpack.c.l.b16 %v2321
    %v2386 = vunpack.c.l.b16 %v2322
    %v2387 = vunpack.c.l.b16 %v2323
    %v2388 = vunpack.c.l.b16 %v2324
    %v2389 = vunpack.c.l.b16 %v2325
    %v2390 = vunpack.c.l.b16 %v2326
    %v2391 = vunpack.c.l.b16 %v2327
    %v2392 = vunpack.c.l.b16 %v2328
    %v2393 = vunpack.c.l.b16 %v2329
    %v2394 = vunpack.c.l.b16 %v2330
    %v2395 = vpack.c.b16 %v2364, %v2363
    %v2396 = vpack.c.b16 %v2366, %v2365
    %v2397 = vpack.c.b16 %v2368, %v2367
    %v2398 = vpack.c.b16 %v2370, %v2369
    %v2399 = vpack.c.b16 %v2372, %v2371
    %v2400 = vpack.c.b16 %v2374, %v2373
    %v2401 = vpack.c.b16 %v2376, %v2375
    %v2402 = vpack.c.b16 %v2378, %v2377
    %v2403 = vpack.c.b16 %v2380, %v2379
    %v2404 = vpack.c.b16 %v2382, %v2381
    %v2405 = vpack.c.b16 %v2384, %v2383
    %v2406 = vpack.c.b16 %v2386, %v2385
    %v2407 = vpack.c.b16 %v2388, %v2387
    %v2408 = vpack.c.b16 %v2390, %v2389
    %v2409 = vpack.c.b16 %v2392, %v2391
    %v2410 = vpack.c.b16 %v2394, %v2393
    %2427 = vmatprep.subr.bf16.mxu0 0
    %2428 = vmatpush1.bf16.msra.mxu0 %v2395
    %2429 = vmatprep.subr.bf16.mxu0 0
    %2430 = vmatpush1.bf16.msra.mxu0 %v2396
    %2431 = vmatprep.subr.bf16.mxu0 0
    %2432 = vmatpush1.bf16.msra.mxu0 %v2397
    %2433 = vmatprep.subr.bf16.mxu0 0
    %2434 = vmatpush1.bf16.msra.mxu0 %v2398
    %2435 = vmatprep.subr.bf16.mxu0 0
    %2436 = vmatpush1.bf16.msra.mxu0 %v2399
    %2437 = vmatprep.subr.bf16.mxu0 0
    %2438 = vmatpush1.bf16.msra.mxu0 %v2400
    %2439 = vmatprep.subr.bf16.mxu0 0
    %2440 = vmatpush1.bf16.msra.mxu0 %v2401
    %2441 = vmatprep.subr.bf16.mxu0 0
    %2442 = vmatpush1.bf16.msra.mxu0 %v2402
    %2443 = vmatprep.subr.bf16.mxu0 0
    %2444 = vmatpush1.bf16.msra.mxu0 %v2403
    %2445 = vmatprep.subr.bf16.mxu0 0
    %2446 = vmatpush1.bf16.msra.mxu0 %v2404
    %2447 = vmatprep.subr.bf16.mxu0 0
    %2448 = vmatpush1.bf16.msra.mxu0 %v2405
    %2449 = vmatprep.subr.bf16.mxu0 0
    %2450 = vmatpush1.bf16.msra.mxu0 %v2406
    %2451 = vmatprep.subr.bf16.mxu0 0
    %2452 = vmatpush1.bf16.msra.mxu0 %v2407
    %2453 = vmatprep.subr.bf16.mxu0 0
    %2454 = vmatpush1.bf16.msra.mxu0 %v2408
    %2455 = vmatprep.subr.bf16.mxu0 0
    %2456 = vmatpush1.bf16.msra.mxu0 %v2409
    %2457 = vmatprep.subr.bf16.mxu0 0
    %2458 = vmatpush1.bf16.msra.mxu0 %v2410
    %2459 = vmatprep.mubr.bf16.mxu0 %v2297
    %2460 = vmatmul.mubr.bf16.gmra.mrb[0].mxu0 %v2296
    %v2461 = vpop.f32.mrb[0].mxu0
    %v2462 = vadd.f32 0.0, %v2461
    %v2463 = vpop.f32.mrb[0].mxu0
    %v2464 = vpop.f32.mrb[0].mxu0
    %v2465 = vpop.f32.mrb[0].mxu0
    %2466 = vdwg.mxu0
    %v2467 = vadd.f32 %v1690, %v2462
    %2468 = vadd.xlane.f32.xlu0 %v2467
    %v2469 = vpop.xlane.xlu0 %2468
    %v2470 = vmul.f32 %v2469, %v146
    %v2471 = vsub.f32 %v2467, %v2470
    %v2472 = vmul.f32 %v2471, %v2471
    %2473 = vadd.xlane.f32.xlu0 %v2472
    %v2474 = vpop.xlane.xlu0 %2473
    %v2475 = vmul.f32 %v2474, %v146
    %v2476 = vadd.f32 %v2475, 1e-05
    %v2477 = vrsqrt.pop %v2476
    %v2478 = vmul.f32 %v2471, %v2477
    %s2479 = scalar_lea.vmem [#allocation7], 3
    %v2480 = vld [vmem:[%s2479] sm:$0x1]
    %v2482 = vlaneseq
    %v2483 = vshrl.u32 %v2482, 7
    %v2484 = vsub.s32 0, %v2483
    %v2485 = vrot.slane %v2480, %v2484
    %v2487 = vmul.f32 %v2478, %v2485
    %s2488 = scalar_lea.vmem [#allocation8], 3
    %v2489 = vld [vmem:[%s2488] sm:$0x1]
    %v2491 = vlaneseq
    %v2492 = vshrl.u32 %v2491, 7
    %v2493 = vsub.s32 0, %v2492
    %v2494 = vrot.slane %v2489, %v2493
    %v2496 = vadd.f32 %v2487, %v2494
    %v2497 = vxor.u32 %v2496, 2147483648
    %v2498 = vmul.f32 %v2497, 1.442695
    %v2499 = vpow.pop %v2498
    %v2500 = vadd.f32 %v2499, 1.0
    %v2501 = vrcp.pop %v2500
    %v2502 = vmul.f32 1.0, %v2501
    %v2503 = vmul.f32 %v2496, %v2502
    %v2504 = vpack.c.bf16 %v2503, %v2503
    %s2505 = scalar_lea.vmem [#allocation10], 384
    %v2506 = vld [vmem:[%s2505] sm:$0xff]
    %v2507 = vld [vmem:[%s2505 + $0x8] sm:$0xff]
    %v2508 = vld [vmem:[%s2505 + $0x10] sm:$0xff]
    %v2509 = vld [vmem:[%s2505 + $0x18] sm:$0xff]
    %v2510 = vld [vmem:[%s2505 + $0x20] sm:$0xff]
    %v2511 = vld [vmem:[%s2505 + $0x28] sm:$0xff]
    %v2512 = vld [vmem:[%s2505 + $0x30] sm:$0xff]
    %v2513 = vld [vmem:[%s2505 + $0x38] sm:$0xff]
    %v2514 = vld [vmem:[%s2505 + $0x40] sm:$0xff]
    %v2515 = vld [vmem:[%s2505 + $0x48] sm:$0xff]
    %v2516 = vld [vmem:[%s2505 + $0x50] sm:$0xff]
    %v2517 = vld [vmem:[%s2505 + $0x58] sm:$0xff]
    %v2518 = vld [vmem:[%s2505 + $0x60] sm:$0xff]
    %v2519 = vld [vmem:[%s2505 + $0x68] sm:$0xff]
    %v2520 = vld [vmem:[%s2505 + $0x70] sm:$0xff]
    %v2521 = vld [vmem:[%s2505 + $0x78] sm:$0xff]
    %s2522 = scalar_lea.vmem [#allocation11], 384
    %v2523 = vld [vmem:[%s2522] sm:$0xff]
    %v2524 = vld [vmem:[%s2522 + $0x8] sm:$0xff]
    %v2525 = vld [vmem:[%s2522 + $0x10] sm:$0xff]
    %v2526 = vld [vmem:[%s2522 + $0x18] sm:$0xff]
    %v2527 = vld [vmem:[%s2522 + $0x20] sm:$0xff]
    %v2528 = vld [vmem:[%s2522 + $0x28] sm:$0xff]
    %v2529 = vld [vmem:[%s2522 + $0x30] sm:$0xff]
    %v2530 = vld [vmem:[%s2522 + $0x38] sm:$0xff]
    %v2531 = vld [vmem:[%s2522 + $0x40] sm:$0xff]
    %v2532 = vld [vmem:[%s2522 + $0x48] sm:$0xff]
    %v2533 = vld [vmem:[%s2522 + $0x50] sm:$0xff]
    %v2534 = vld [vmem:[%s2522 + $0x58] sm:$0xff]
    %v2535 = vld [vmem:[%s2522 + $0x60] sm:$0xff]
    %v2536 = vld [vmem:[%s2522 + $0x68] sm:$0xff]
    %v2537 = vld [vmem:[%s2522 + $0x70] sm:$0xff]
    %v2538 = vld [vmem:[%s2522 + $0x78] sm:$0xff]
    %v2555 = vunpack.c.l.b16 %v2523
    %v2556 = vunpack.c.h.b16 %v2523
    %v2557 = vunpack.c.l.b16 %v2524
    %v2558 = vunpack.c.h.b16 %v2524
    %v2559 = vunpack.c.l.b16 %v2525
    %v2560 = vunpack.c.h.b16 %v2525
    %v2561 = vunpack.c.l.b16 %v2526
    %v2562 = vunpack.c.h.b16 %v2526
    %v2563 = vunpack.c.l.b16 %v2527
    %v2564 = vunpack.c.h.b16 %v2527
    %v2565 = vunpack.c.l.b16 %v2528
    %v2566 = vunpack.c.h.b16 %v2528
    %v2567 = vunpack.c.l.b16 %v2529
    %v2568 = vunpack.c.h.b16 %v2529
    %v2569 = vunpack.c.l.b16 %v2530
    %v2570 = vunpack.c.h.b16 %v2530
    %v2571 = vunpack.c.l.b16 %v2531
    %v2572 = vunpack.c.h.b16 %v2531
    %v2573 = vunpack.c.l.b16 %v2532
    %v2574 = vunpack.c.h.b16 %v2532
    %v2575 = vunpack.c.l.b16 %v2533
    %v2576 = vunpack.c.h.b16 %v2533
    %v2577 = vunpack.c.l.b16 %v2534
    %v2578 = vunpack.c.h.b16 %v2534
    %v2579 = vunpack.c.l.b16 %v2535
    %v2580 = vunpack.c.h.b16 %v2535
    %v2581 = vunpack.c.l.b16 %v2536
    %v2582 = vunpack.c.h.b16 %v2536
    %v2583 = vunpack.c.l.b16 %v2537
    %v2584 = vunpack.c.h.b16 %v2537
    %v2585 = vunpack.c.l.b16 %v2538
    %v2586 = vunpack.c.h.b16 %v2538
    %v2587 = vpack.c.b16 %v2557, %v2555
    %v2588 = vpack.c.b16 %v2558, %v2556
    %v2589 = vpack.c.b16 %v2561, %v2559
    %v2590 = vpack.c.b16 %v2562, %v2560
    %v2591 = vpack.c.b16 %v2565, %v2563
    %v2592 = vpack.c.b16 %v2566, %v2564
    %v2593 = vpack.c.b16 %v2569, %v2567
    %v2594 = vpack.c.b16 %v2570, %v2568
    %v2595 = vpack.c.b16 %v2573, %v2571
    %v2596 = vpack.c.b16 %v2574, %v2572
    %v2597 = vpack.c.b16 %v2577, %v2575
    %v2598 = vpack.c.b16 %v2578, %v2576
    %v2599 = vpack.c.b16 %v2581, %v2579
    %v2600 = vpack.c.b16 %v2582, %v2580
    %v2601 = vpack.c.b16 %v2585, %v2583
    %v2602 = vpack.c.b16 %v2586, %v2584
    %2619 = vmatprep.subr.bf16.mxu0 %v2588
    %2620 = vmatpush1.bf16.msra.mxu0 %v2587
    %2621 = vmatprep.subr.bf16.mxu0 %v2590
    %2622 = vmatpush1.bf16.msra.mxu0 %v2589
    %2623 = vmatprep.subr.bf16.mxu0 %v2592
    %2624 = vmatpush1.bf16.msra.mxu0 %v2591
    %2625 = vmatprep.subr.bf16.mxu0 %v2594
    %2626 = vmatpush1.bf16.msra.mxu0 %v2593
    %2627 = vmatprep.subr.bf16.mxu0 %v2596
    %2628 = vmatpush1.bf16.msra.mxu0 %v2595
    %2629 = vmatprep.subr.bf16.mxu0 %v2598
    %2630 = vmatpush1.bf16.msra.mxu0 %v2597
    %2631 = vmatprep.subr.bf16.mxu0 %v2600
    %2632 = vmatpush1.bf16.msra.mxu0 %v2599
    %2633 = vmatprep.subr.bf16.mxu0 %v2602
    %2634 = vmatpush1.bf16.msra.mxu0 %v2601
    %2635 = vmatprep.subr.bf16.mxu0 0
    %2636 = vmatpush1.bf16.msra.mxu0 0
    %2637 = vmatprep.subr.bf16.mxu0 0
    %2638 = vmatpush1.bf16.msra.mxu0 0
    %2639 = vmatprep.subr.bf16.mxu0 0
    %2640 = vmatpush1.bf16.msra.mxu0 0
    %2641 = vmatprep.subr.bf16.mxu0 0
    %2642 = vmatpush1.bf16.msra.mxu0 0
    %2643 = vmatprep.subr.bf16.mxu0 0
    %2644 = vmatpush1.bf16.msra.mxu0 0
    %2645 = vmatprep.subr.bf16.mxu0 0
    %2646 = vmatpush1.bf16.msra.mxu0 0
    %2647 = vmatprep.subr.bf16.mxu0 0
    %2648 = vmatpush1.bf16.msra.mxu0 0
    %2649 = vmatprep.subr.bf16.mxu0 0
    %2650 = vmatpush1.bf16.msra.mxu0 0
    %2651 = vmatprep.mubr.bf16.mxu0 0
    %2652 = vmatmul.mubr.bf16.gmra.mrb[0].mxu0 %v142
    %v2653 = vpop.f32.mrb[0].mxu0
    %v2654 = vadd.f32 0.0, %v2653
    %v2655 = vpop.f32.mrb[0].mxu0
    %v2656 = vadd.f32 0.0, %v2655
    %v2657 = vpop.f32.mrb[0].mxu0
    %v2658 = vpop.f32.mrb[0].mxu0
    %2659 = vdwg.mxu0
    %v2676 = vunpack.c.l.b16 %v2506
    %v2677 = vunpack.c.h.b16 %v2506
    %v2678 = vunpack.c.l.b16 %v2507
    %v2679 = vunpack.c.h.b16 %v2507
    %v2680 = vunpack.c.l.b16 %v2508
    %v2681 = vunpack.c.h.b16 %v2508
    %v2682 = vunpack.c.l.b16 %v2509
    %v2683 = vunpack.c.h.b16 %v2509
    %v2684 = vunpack.c.l.b16 %v2510
    %v2685 = vunpack.c.h.b16 %v2510
    %v2686 = vunpack.c.l.b16 %v2511
    %v2687 = vunpack.c.h.b16 %v2511
    %v2688 = vunpack.c.l.b16 %v2512
    %v2689 = vunpack.c.h.b16 %v2512
    %v2690 = vunpack.c.l.b16 %v2513
    %v2691 = vunpack.c.h.b16 %v2513
    %v2692 = vunpack.c.l.b16 %v2514
    %v2693 = vunpack.c.h.b16 %v2514
    %v2694 = vunpack.c.l.b16 %v2515
    %v2695 = vunpack.c.h.b16 %v2515
    %v2696 = vunpack.c.l.b16 %v2516
    %v2697 = vunpack.c.h.b16 %v2516
    %v2698 = vunpack.c.l.b16 %v2517
    %v2699 = vunpack.c.h.b16 %v2517
    %v2700 = vunpack.c.l.b16 %v2518
    %v2701 = vunpack.c.h.b16 %v2518
    %v2702 = vunpack.c.l.b16 %v2519
    %v2703 = vunpack.c.h.b16 %v2519
    %v2704 = vunpack.c.l.b16 %v2520
    %v2705 = vunpack.c.h.b16 %v2520
    %v2706 = vunpack.c.l.b16 %v2521
    %v2707 = vunpack.c.h.b16 %v2521
    %v2708 = vpack.c.b16 %v2678, %v2676
    %v2709 = vpack.c.b16 %v2679, %v2677
    %v2710 = vpack.c.b16 %v2682, %v2680
    %v2711 = vpack.c.b16 %v2683, %v2681
    %v2712 = vpack.c.b16 %v2686, %v2684
    %v2713 = vpack.c.b16 %v2687, %v2685
    %v2714 = vpack.c.b16 %v2690, %v2688
    %v2715 = vpack.c.b16 %v2691, %v2689
    %v2716 = vpack.c.b16 %v2694, %v2692
    %v2717 = vpack.c.b16 %v2695, %v2693
    %v2718 = vpack.c.b16 %v2698, %v2696
    %v2719 = vpack.c.b16 %v2699, %v2697
    %v2720 = vpack.c.b16 %v2702, %v2700
    %v2721 = vpack.c.b16 %v2703, %v2701
    %v2722 = vpack.c.b16 %v2706, %v2704
    %v2723 = vpack.c.b16 %v2707, %v2705
    %2740 = vmatprep.subr.bf16.mxu0 %v2709
    %2741 = vmatpush1.bf16.msra.mxu0 %v2708
    %2742 = vmatprep.subr.bf16.mxu0 %v2711
    %2743 = vmatpush1.bf16.msra.mxu0 %v2710
    %2744 = vmatprep.subr.bf16.mxu0 %v2713
    %2745 = vmatpush1.bf16.msra.mxu0 %v2712
    %2746 = vmatprep.subr.bf16.mxu0 %v2715
    %2747 = vmatpush1.bf16.msra.mxu0 %v2714
    %2748 = vmatprep.subr.bf16.mxu0 %v2717
    %2749 = vmatpush1.bf16.msra.mxu0 %v2716
    %2750 = vmatprep.subr.bf16.mxu0 %v2719
    %2751 = vmatpush1.bf16.msra.mxu0 %v2718
    %2752 = vmatprep.subr.bf16.mxu0 %v2721
    %2753 = vmatpush1.bf16.msra.mxu0 %v2720
    %2754 = vmatprep.subr.bf16.mxu0 %v2723
    %2755 = vmatpush1.bf16.msra.mxu0 %v2722
    %2756 = vmatprep.subr.bf16.mxu0 0
    %2757 = vmatpush1.bf16.msra.mxu0 0
    %2758 = vmatprep.subr.bf16.mxu0 0
    %2759 = vmatpush1.bf16.msra.mxu0 0
    %2760 = vmatprep.subr.bf16.mxu0 0
    %2761 = vmatpush1.bf16.msra.mxu0 0
    %2762 = vmatprep.subr.bf16.mxu0 0
    %2763 = vmatpush1.bf16.msra.mxu0 0
    %2764 = vmatprep.subr.bf16.mxu0 0
    %2765 = vmatpush1.bf16.msra.mxu0 0
    %2766 = vmatprep.subr.bf16.mxu0 0
    %2767 = vmatpush1.bf16.msra.mxu0 0
    %2768 = vmatprep.subr.bf16.mxu0 0
    %2769 = vmatpush1.bf16.msra.mxu0 0
    %2770 = vmatprep.subr.bf16.mxu0 0
    %2771 = vmatpush1.bf16.msra.mxu0 0
    %2772 = vmatprep.mubr.bf16.mxu0 0
    %2773 = vmatmul.mubr.bf16.gmra.mrb[0].mxu0 %v2504
    %v2774 = vpop.f32.mrb[0].mxu0
    %v2775 = vadd.f32 %v2654, %v2774
    %v2776 = vpop.f32.mrb[0].mxu0
    %v2777 = vadd.f32 %v2656, %v2776
    %v2778 = vpop.f32.mrb[0].mxu0
    %v2779 = vpop.f32.mrb[0].mxu0
    %2780 = vdwg.mxu0
    %s2781 = scalar_lea.vmem %s6, 6
    %v2782 = vld [vmem:[%s2781] sm:$0x3]
    %v2784 = vlaneseq
    %v2785 = vshrl.u32 %v2784, 7
    %v2786 = vsub.s32 0, %v2785
    %v2787 = vrot.slane %v2782, %v2786
    %v2788 = vlaneseq
    %v2789 = vshrl.u32 %v2788, 7
    %v2790 = vsub.s32 1, %v2789
    %v2791 = vrot.slane %v2782, %v2790
    %v2794 = vadd.f32 %v2775, %v2787
    %v2795 = vadd.f32 %v2777, %v2791
    %v2796 = vxor.u32 %v2794, 2147483648
    %v2797 = vxor.u32 %v2795, 2147483648
    %v2798 = vmul.f32 %v2796, 1.442695
    %v2799 = vpow.pop %v2798
    %v2800 = vmul.f32 %v2797, 1.442695
    %v2801 = vpow.pop %v2800
    %v2802 = vadd.f32 %v2799, 1.0
    %v2803 = vadd.f32 %v2801, 1.0
    %v2804 = vrcp.pop %v2802
    %v2805 = vmul.f32 1.0, %v2804
    %v2806 = vrcp.pop %v2803
    %v2807 = vmul.f32 1.0, %v2806
    %v2808 = vmul.f32 %v2794, %v2805
    %v2809 = vmul.f32 %v2795, %v2807
    %v2810 = vpack.c.bf16 %v2808, %v2808
    %v2811 = vpack.c.bf16 %v2809, %v2809
    %s2812 = scalar_lea.vmem [#allocation13], 768
    %v2813 = vld [vmem:[%s2812] sm:$0xff]
    %v2814 = vld [vmem:[%s2812 + $0x8] sm:$0xff]
    %v2815 = vld [vmem:[%s2812 + $0x10] sm:$0xff]
    %v2816 = vld [vmem:[%s2812 + $0x18] sm:$0xff]
    %v2817 = vld [vmem:[%s2812 + $0x20] sm:$0xff]
    %v2818 = vld [vmem:[%s2812 + $0x28] sm:$0xff]
    %v2819 = vld [vmem:[%s2812 + $0x30] sm:$0xff]
    %v2820 = vld [vmem:[%s2812 + $0x38] sm:$0xff]
    %v2821 = vld [vmem:[%s2812 + $0x40] sm:$0xff]
    %v2822 = vld [vmem:[%s2812 + $0x48] sm:$0xff]
    %v2823 = vld [vmem:[%s2812 + $0x50] sm:$0xff]
    %v2824 = vld [vmem:[%s2812 + $0x58] sm:$0xff]
    %v2825 = vld [vmem:[%s2812 + $0x60] sm:$0xff]
    %v2826 = vld [vmem:[%s2812 + $0x68] sm:$0xff]
    %v2827 = vld [vmem:[%s2812 + $0x70] sm:$0xff]
    %v2828 = vld [vmem:[%s2812 + $0x78] sm:$0xff]
    %v2829 = vld [vmem:[%s2812 + $0x80] sm:$0xff]
    %v2830 = vld [vmem:[%s2812 + $0x88] sm:$0xff]
    %v2831 = vld [vmem:[%s2812 + $0x90] sm:$0xff]
    %v2832 = vld [vmem:[%s2812 + $0x98] sm:$0xff]
    %v2833 = vld [vmem:[%s2812 + $0xa0] sm:$0xff]
    %v2834 = vld [vmem:[%s2812 + $0xa8] sm:$0xff]
    %v2835 = vld [vmem:[%s2812 + $0xb0] sm:$0xff]
    %v2836 = vld [vmem:[%s2812 + $0xb8] sm:$0xff]
    %v2837 = vld [vmem:[%s2812 + $0xc0] sm:$0xff]
    %v2838 = vld [vmem:[%s2812 + $0xc8] sm:$0xff]
    %v2839 = vld [vmem:[%s2812 + $0xd0] sm:$0xff]
    %v2840 = vld [vmem:[%s2812 + $0xd8] sm:$0xff]
    %v2841 = vld [vmem:[%s2812 + $0xe0] sm:$0xff]
    %v2842 = vld [vmem:[%s2812 + $0xe8] sm:$0xff]
    %v2843 = vld [vmem:[%s2812 + $0xf0] sm:$0xff]
    %v2844 = vld [vmem:[%s2812 + $0xf8] sm:$0xff]
    %s2845 = scalar_lea.vmem %s8, 6
    %v2846 = vld [vmem:[%s2845] sm:$0x3]
    %v2848 = vlaneseq
    %v2849 = vshrl.u32 %v2848, 7
    %v2850 = vsub.s32 0, %v2849
    %v2851 = vrot.slane %v2846, %v2850
    %v2852 = vlaneseq
    %v2853 = vshrl.u32 %v2852, 7
    %v2854 = vsub.s32 1, %v2853
    %v2855 = vrot.slane %v2846, %v2854
    %v2890 = vunpack.c.l.b16 %v2813
    %v2891 = vunpack.c.h.b16 %v2813
    %v2892 = vunpack.c.l.b16 %v2814
    %v2893 = vunpack.c.h.b16 %v2814
    %v2894 = vunpack.c.l.b16 %v2815
    %v2895 = vunpack.c.h.b16 %v2815
    %v2896 = vunpack.c.l.b16 %v2816
    %v2897 = vunpack.c.h.b16 %v2816
    %v2898 = vunpack.c.l.b16 %v2817
    %v2899 = vunpack.c.h.b16 %v2817
    %v2900 = vunpack.c.l.b16 %v2818
    %v2901 = vunpack.c.h.b16 %v2818
    %v2902 = vunpack.c.l.b16 %v2819
    %v2903 = vunpack.c.h.b16 %v2819
    %v2904 = vunpack.c.l.b16 %v2820
    %v2905 = vunpack.c.h.b16 %v2820
    %v2906 = vunpack.c.l.b16 %v2821
    %v2907 = vunpack.c.h.b16 %v2821
    %v2908 = vunpack.c.l.b16 %v2822
    %v2909 = vunpack.c.h.b16 %v2822
    %v2910 = vunpack.c.l.b16 %v2823
    %v2911 = vunpack.c.h.b16 %v2823
    %v2912 = vunpack.c.l.b16 %v2824
    %v2913 = vunpack.c.h.b16 %v2824
    %v2914 = vunpack.c.l.b16 %v2825
    %v2915 = vunpack.c.h.b16 %v2825
    %v2916 = vunpack.c.l.b16 %v2826
    %v2917 = vunpack.c.h.b16 %v2826
    %v2918 = vunpack.c.l.b16 %v2827
    %v2919 = vunpack.c.h.b16 %v2827
    %v2920 = vunpack.c.l.b16 %v2828
    %v2921 = vunpack.c.h.b16 %v2828
    %v2922 = vunpack.c.l.b16 %v2829
    %v2923 = vunpack.c.h.b16 %v2829
    %v2924 = vunpack.c.l.b16 %v2830
    %v2925 = vunpack.c.h.b16 %v2830
    %v2926 = vunpack.c.l.b16 %v2831
    %v2927 = vunpack.c.h.b16 %v2831
    %v2928 = vunpack.c.l.b16 %v2832
    %v2929 = vunpack.c.h.b16 %v2832
    %v2930 = vunpack.c.l.b16 %v2833
    %v2931 = vunpack.c.h.b16 %v2833
    %v2932 = vunpack.c.l.b16 %v2834
    %v2933 = vunpack.c.h.b16 %v2834
    %v2934 = vunpack.c.l.b16 %v2835
    %v2935 = vunpack.c.h.b16 %v2835
    %v2936 = vunpack.c.l.b16 %v2836
    %v2937 = vunpack.c.h.b16 %v2836
    %v2938 = vunpack.c.l.b16 %v2837
    %v2939 = vunpack.c.h.b16 %v2837
    %v2940 = vunpack.c.l.b16 %v2838
    %v2941 = vunpack.c.h.b16 %v2838
    %v2942 = vunpack.c.l.b16 %v2839
    %v2943 = vunpack.c.h.b16 %v2839
    %v2944 = vunpack.c.l.b16 %v2840
    %v2945 = vunpack.c.h.b16 %v2840
    %v2946 = vunpack.c.l.b16 %v2841
    %v2947 = vunpack.c.h.b16 %v2841
    %v2948 = vunpack.c.l.b16 %v2842
    %v2949 = vunpack.c.h.b16 %v2842
    %v2950 = vunpack.c.l.b16 %v2843
    %v2951 = vunpack.c.h.b16 %v2843
    %v2952 = vunpack.c.l.b16 %v2844
    %v2953 = vunpack.c.h.b16 %v2844
    %v2954 = vpack.c.b16 %v2892, %v2890
    %v2955 = vpack.c.b16 %v2893, %v2891
    %v2956 = vpack.c.b16 %v2896, %v2894
    %v2957 = vpack.c.b16 %v2897, %v2895
    %v2958 = vpack.c.b16 %v2900, %v2898
    %v2959 = vpack.c.b16 %v2901, %v2899
    %v2960 = vpack.c.b16 %v2904, %v2902
    %v2961 = vpack.c.b16 %v2905, %v2903
    %v2962 = vpack.c.b16 %v2908, %v2906
    %v2963 = vpack.c.b16 %v2909, %v2907
    %v2964 = vpack.c.b16 %v2912, %v2910
    %v2965 = vpack.c.b16 %v2913, %v2911
    %v2966 = vpack.c.b16 %v2916, %v2914
    %v2967 = vpack.c.b16 %v2917, %v2915
    %v2968 = vpack.c.b16 %v2920, %v2918
    %v2969 = vpack.c.b16 %v2921, %v2919
    %v2970 = vpack.c.b16 %v2924, %v2922
    %v2971 = vpack.c.b16 %v2925, %v2923
    %v2972 = vpack.c.b16 %v2928, %v2926
    %v2973 = vpack.c.b16 %v2929, %v2927
    %v2974 = vpack.c.b16 %v2932, %v2930
    %v2975 = vpack.c.b16 %v2933, %v2931
    %v2976 = vpack.c.b16 %v2936, %v2934
    %v2977 = vpack.c.b16 %v2937, %v2935
    %v2978 = vpack.c.b16 %v2940, %v2938
    %v2979 = vpack.c.b16 %v2941, %v2939
    %v2980 = vpack.c.b16 %v2944, %v2942
    %v2981 = vpack.c.b16 %v2945, %v2943
    %v2982 = vpack.c.b16 %v2948, %v2946
    %v2983 = vpack.c.b16 %v2949, %v2947
    %v2984 = vpack.c.b16 %v2952, %v2950
    %v2985 = vpack.c.b16 %v2953, %v2951
    %3018 = vmatprep.subr.bf16.mxu0 %v2955
    %3019 = vmatpush1.bf16.msra.mxu0 %v2954
    %3020 = vmatprep.subr.bf16.mxu0 %v2957
    %3021 = vmatpush1.bf16.msra.mxu0 %v2956
    %3022 = vmatprep.subr.bf16.mxu0 %v2959
    %3023 = vmatpush1.bf16.msra.mxu0 %v2958
    %3024 = vmatprep.subr.bf16.mxu0 %v2961
    %3025 = vmatpush1.bf16.msra.mxu0 %v2960
    %3026 = vmatprep.subr.bf16.mxu0 %v2963
    %3027 = vmatpush1.bf16.msra.mxu0 %v2962
    %3028 = vmatprep.subr.bf16.mxu0 %v2965
    %3029 = vmatpush1.bf16.msra.mxu0 %v2964
    %3030 = vmatprep.subr.bf16.mxu0 %v2967
    %3031 = vmatpush1.bf16.msra.mxu0 %v2966
    %3032 = vmatprep.subr.bf16.mxu0 %v2969
    %3033 = vmatpush1.bf16.msra.mxu0 %v2968
    %3034 = vmatprep.subr.bf16.mxu0 %v2971
    %3035 = vmatpush1.bf16.msra.mxu0 %v2970
    %3036 = vmatprep.subr.bf16.mxu0 %v2973
    %3037 = vmatpush1.bf16.msra.mxu0 %v2972
    %3038 = vmatprep.subr.bf16.mxu0 %v2975
    %3039 = vmatpush1.bf16.msra.mxu0 %v2974
    %3040 = vmatprep.subr.bf16.mxu0 %v2977
    %3041 = vmatpush1.bf16.msra.mxu0 %v2976
    %3042 = vmatprep.subr.bf16.mxu0 %v2979
    %3043 = vmatpush1.bf16.msra.mxu0 %v2978
    %3044 = vmatprep.subr.bf16.mxu0 %v2981
    %3045 = vmatpush1.bf16.msra.mxu0 %v2980
    %3046 = vmatprep.subr.bf16.mxu0 %v2983
    %3047 = vmatpush1.bf16.msra.mxu0 %v2982
    %3048 = vmatprep.subr.bf16.mxu0 %v2985
    %3049 = vmatpush1.bf16.msra.mxu0 %v2984
    %3050 = vmatprep.mubr.bf16.mxu0 %v2811
    %3051 = vmatmul.mubr.bf16.gmra.mrb[0].mxu0 %v2810
    %v3052 = vpop.f32.mrb[0].mxu0
    %v3053 = vadd.f32 %v2851, %v3052
    %v3054 = vpop.f32.mrb[0].mxu0
    %v3055 = vadd.f32 %v2855, %v3054
    %v3056 = vpop.f32.mrb[0].mxu0
    %v3057 = vpop.f32.mrb[0].mxu0
    %3058 = vdwg.mxu0
    %v3059 = vxor.u32 %v3053, 2147483648
    %v3060 = vxor.u32 %v3055, 2147483648
    %v3061 = vmul.f32 %v3059, 1.442695
    %v3062 = vpow.pop %v3061
    %v3063 = vmul.f32 %v3060, 1.442695
    %v3064 = vpow.pop %v3063
    %v3065 = vadd.f32 %v3062, 1.0
    %v3066 = vadd.f32 %v3064, 1.0
    %v3067 = vrcp.pop %v3065
    %v3068 = vmul.f32 1.0, %v3067
    %v3069 = vrcp.pop %v3066
    %v3070 = vmul.f32 1.0, %v3069
    %v3071 = vmul.f32 %v3053, %v3068
    %v3072 = vmul.f32 %v3055, %v3070
    %v3073 = vpack.c.bf16 %v3071, %v3071
    %v3074 = vpack.c.bf16 %v3072, %v3072
    %s3075 = scalar_lea.vmem [#allocation14], 384
    %v3076 = vld [vmem:[%s3075] sm:$0xf]
    %v3077 = vld [vmem:[%s3075 + $0x4] sm:$0xf]
    %v3078 = vld [vmem:[%s3075 + $0x8] sm:$0xf]
    %v3079 = vld [vmem:[%s3075 + $0xc] sm:$0xf]
    %v3080 = vld [vmem:[%s3075 + $0x10] sm:$0xf]
    %v3081 = vld [vmem:[%s3075 + $0x14] sm:$0xf]
    %v3082 = vld [vmem:[%s3075 + $0x18] sm:$0xf]
    %v3083 = vld [vmem:[%s3075 + $0x1c] sm:$0xf]
    %v3084 = vld [vmem:[%s3075 + $0x20] sm:$0xf]
    %v3085 = vld [vmem:[%s3075 + $0x24] sm:$0xf]
    %v3086 = vld [vmem:[%s3075 + $0x28] sm:$0xf]
    %v3087 = vld [vmem:[%s3075 + $0x2c] sm:$0xf]
    %v3088 = vld [vmem:[%s3075 + $0x30] sm:$0xf]
    %v3089 = vld [vmem:[%s3075 + $0x34] sm:$0xf]
    %v3090 = vld [vmem:[%s3075 + $0x38] sm:$0xf]
    %v3091 = vld [vmem:[%s3075 + $0x3c] sm:$0xf]
    %v3092 = vld [vmem:[%s3075 + $0x40] sm:$0xf]
    %v3093 = vld [vmem:[%s3075 + $0x44] sm:$0xf]
    %v3094 = vld [vmem:[%s3075 + $0x48] sm:$0xf]
    %v3095 = vld [vmem:[%s3075 + $0x4c] sm:$0xf]
    %v3096 = vld [vmem:[%s3075 + $0x50] sm:$0xf]
    %v3097 = vld [vmem:[%s3075 + $0x54] sm:$0xf]
    %v3098 = vld [vmem:[%s3075 + $0x58] sm:$0xf]
    %v3099 = vld [vmem:[%s3075 + $0x5c] sm:$0xf]
    %v3100 = vld [vmem:[%s3075 + $0x60] sm:$0xf]
    %v3101 = vld [vmem:[%s3075 + $0x64] sm:$0xf]
    %v3102 = vld [vmem:[%s3075 + $0x68] sm:$0xf]
    %v3103 = vld [vmem:[%s3075 + $0x6c] sm:$0xf]
    %v3104 = vld [vmem:[%s3075 + $0x70] sm:$0xf]
    %v3105 = vld [vmem:[%s3075 + $0x74] sm:$0xf]
    %v3106 = vld [vmem:[%s3075 + $0x78] sm:$0xf]
    %v3107 = vld [vmem:[%s3075 + $0x7c] sm:$0xf]
    %v3140 = vunpack.c.l.b16 %v3076
    %v3141 = vunpack.c.l.b16 %v3077
    %v3142 = vunpack.c.l.b16 %v3078
    %v3143 = vunpack.c.l.b16 %v3079
    %v3144 = vunpack.c.l.b16 %v3080
    %v3145 = vunpack.c.l.b16 %v3081
    %v3146 = vunpack.c.l.b16 %v3082
    %v3147 = vunpack.c.l.b16 %v3083
    %v3148 = vunpack.c.l.b16 %v3084
    %v3149 = vunpack.c.l.b16 %v3085
    %v3150 = vunpack.c.l.b16 %v3086
    %v3151 = vunpack.c.l.b16 %v3087
    %v3152 = vunpack.c.l.b16 %v3088
    %v3153 = vunpack.c.l.b16 %v3089
    %v3154 = vunpack.c.l.b16 %v3090
    %v3155 = vunpack.c.l.b16 %v3091
    %v3156 = vunpack.c.l.b16 %v3092
    %v3157 = vunpack.c.l.b16 %v3093
    %v3158 = vunpack.c.l.b16 %v3094
    %v3159 = vunpack.c.l.b16 %v3095
    %v3160 = vunpack.c.l.b16 %v3096
    %v3161 = vunpack.c.l.b16 %v3097
    %v3162 = vunpack.c.l.b16 %v3098
    %v3163 = vunpack.c.l.b16 %v3099
    %v3164 = vunpack.c.l.b16 %v3100
    %v3165 = vunpack.c.l.b16 %v3101
    %v3166 = vunpack.c.l.b16 %v3102
    %v3167 = vunpack.c.l.b16 %v3103
    %v3168 = vunpack.c.l.b16 %v3104
    %v3169 = vunpack.c.l.b16 %v3105
    %v3170 = vunpack.c.l.b16 %v3106
    %v3171 = vunpack.c.l.b16 %v3107
    %v3172 = vpack.c.b16 %v3141, %v3140
    %v3173 = vpack.c.b16 %v3143, %v3142
    %v3174 = vpack.c.b16 %v3145, %v3144
    %v3175 = vpack.c.b16 %v3147, %v3146
    %v3176 = vpack.c.b16 %v3149, %v3148
    %v3177 = vpack.c.b16 %v3151, %v3150
    %v3178 = vpack.c.b16 %v3153, %v3152
    %v3179 = vpack.c.b16 %v3155, %v3154
    %v3180 = vpack.c.b16 %v3157, %v3156
    %v3181 = vpack.c.b16 %v3159, %v3158
    %v3182 = vpack.c.b16 %v3161, %v3160
    %v3183 = vpack.c.b16 %v3163, %v3162
    %v3184 = vpack.c.b16 %v3165, %v3164
    %v3185 = vpack.c.b16 %v3167, %v3166
    %v3186 = vpack.c.b16 %v3169, %v3168
    %v3187 = vpack.c.b16 %v3171, %v3170
    %3204 = vmatprep.subr.bf16.mxu0 0
    %3205 = vmatpush1.bf16.msra.mxu0 %v3172
    %3206 = vmatprep.subr.bf16.mxu0 0
    %3207 = vmatpush1.bf16.msra.mxu0 %v3173
    %3208 = vmatprep.subr.bf16.mxu0 0
    %3209 = vmatpush1.bf16.msra.mxu0 %v3174
    %3210 = vmatprep.subr.bf16.mxu0 0
    %3211 = vmatpush1.bf16.msra.mxu0 %v3175
    %3212 = vmatprep.subr.bf16.mxu0 0
    %3213 = vmatpush1.bf16.msra.mxu0 %v3176
    %3214 = vmatprep.subr.bf16.mxu0 0
    %3215 = vmatpush1.bf16.msra.mxu0 %v3177
    %3216 = vmatprep.subr.bf16.mxu0 0
    %3217 = vmatpush1.bf16.msra.mxu0 %v3178
    %3218 = vmatprep.subr.bf16.mxu0 0
    %3219 = vmatpush1.bf16.msra.mxu0 %v3179
    %3220 = vmatprep.subr.bf16.mxu0 0
    %3221 = vmatpush1.bf16.msra.mxu0 %v3180
    %3222 = vmatprep.subr.bf16.mxu0 0
    %3223 = vmatpush1.bf16.msra.mxu0 %v3181
    %3224 = vmatprep.subr.bf16.mxu0 0
    %3225 = vmatpush1.bf16.msra.mxu0 %v3182
    %3226 = vmatprep.subr.bf16.mxu0 0
    %3227 = vmatpush1.bf16.msra.mxu0 %v3183
    %3228 = vmatprep.subr.bf16.mxu0 0
    %3229 = vmatpush1.bf16.msra.mxu0 %v3184
    %3230 = vmatprep.subr.bf16.mxu0 0
    %3231 = vmatpush1.bf16.msra.mxu0 %v3185
    %3232 = vmatprep.subr.bf16.mxu0 0
    %3233 = vmatpush1.bf16.msra.mxu0 %v3186
    %3234 = vmatprep.subr.bf16.mxu0 0
    %3235 = vmatpush1.bf16.msra.mxu0 %v3187
    %3236 = vmatprep.mubr.bf16.mxu0 %v3074
    %3237 = vmatmul.mubr.bf16.gmra.mrb[0].mxu0 %v3073
    %v3238 = vpop.f32.mrb[0].mxu0
    %v3239 = vadd.f32 0.0, %v3238
    %v3240 = vpop.f32.mrb[0].mxu0
    %v3241 = vpop.f32.mrb[0].mxu0
    %v3242 = vpop.f32.mrb[0].mxu0
    %3243 = vdwg.mxu0
    %v3244 = vadd.f32 %v2467, %v3239
    %3245 = vst [vmem:[#allocation16] sm:$0xff] %v3244
    // Predicated region
    $region74: #{tpu_custom_call.1} parent=1 // pred_check
      _
    $region75: #{tpu_custom_call.1} parent=1 // pred_check_branch
      %3247 = sbr.rel (0) target = $region77
    $region76: #{tpu_custom_call.1} parent=1 // pred_region
      %s3249 = ssub.s32 128, 128
      %3250 = vsyncadd [#allocation4], %s3249
      %s3252 = sshll.u32 [#allocation16], 4
      %s3253 = int_to_ptr.vmem [resolvable:$true] %s3252
      %3255 = dma.vmem_to_hbm [thread:$0]  %s3253, 128, %s10, [#allocation4]
    $region77: #{tpu_custom_call.1} parent=1 // pred_fallthru
      _
    // Predicated region
    $region78: #{tpu_custom_call.1} parent=1 // pred_check
      _
    $region79: #{tpu_custom_call.1} parent=1 // pred_check_branch
      %3257 = sbr.rel (0) target = $region81
    $region80: #{tpu_custom_call.1} parent=1 // pred_region
      %3258 = dma.done [#allocation4], 128
    $region81: #{tpu_custom_call.1} parent=1 // pred_fallthru
      _
    %3259 = vsyncpa [#allocation3], 1
    %3260 = vsyncpa [#allocation6], 1
    %3261 = vsyncpa [#allocation9], 1
    %3262 = vsyncpa [#allocation12], 1
    %3263 = vsyncpa [#allocation15], 1
    %3264 = vsyncpa [#allocation4], 1

</llo_original>
